<compile_context>
chip_gen: v7x
topology: tpu7x:2x2x1
jax: 0.10.0
libtpu: 0.0.40
codegen_flags: <defaults>
</compile_context>

<pallas_src>
import functools

import jax
import jax.numpy as jnp
from jax import lax
from jax.experimental import pallas as pl
from jax.experimental.pallas import tpu as pltpu

COMPUTE_DTYPE = jnp.bfloat16  # MXU input dtype (accumulation stays f32)


# ---------------------------------------------------------------------------
# Fused kernel: one batch element per grid step.
#
# planes_ref : (8, Hp, Wp, Cin)   phase planes of the zero-padded input,
#                                 plane (rp, cp) = xpad[rp::2, cp::4] at index rp*4+cp
# w6_ref     : (9, Cin, Cout)     conv-p6 weight, tap index kh*3+kw
# b6_ref     : (1, Cout) f32
# w7_ref     : (9, Cout, Cout)    conv-p7 weight
# b7_ref     : (1, Cout) f32
# p6e_ref    : (1, H6, W7, Cout)  p6 even output columns
# p6o_ref    : (1, H6, Wo, Cout)  p6 odd output columns
# p7_ref     : (1, H7, W7, Cout)
# acc_e/acc_o/acc7 : f32 VMEM accumulators; q_ref : relu(p6) phase planes (bf16)
# ---------------------------------------------------------------------------
def _fused_p6p7_kernel(planes_ref, w6_ref, b6_ref, w7_ref, b7_ref,
                       p6e_ref, p6o_ref, p7_ref,
                       acc_e, acc_o, q_ref, acc7,
                       *, H6, H7, W7, Wo, Cin, Cout):
    ne = H6 * W7          # real rows of the even-column half of p6
    no = H6 * Wo          # real rows of the odd-column half of p6
    n7 = H7 * W7

    # ---- conv1: 3x3 / stride-2 / pad-1 on x, as two column-parity halves ----
    acc_e[...] = jnp.zeros_like(acc_e)
    acc_o[...] = jnp.zeros_like(acc_o)
    for kh in range(3):
        rp, dh = kh % 2, kh // 2
        for kw in range(3):
            w_tap = w6_ref[kh * 3 + kw]                            # (Cin, Cout)
            # even output cols: padded-x col 4b+kw   -> plane (rp, kw),       col b
            tap_e = planes_ref[rp * 4 + kw, dh:dh + H6, 0:W7, :].reshape(ne, Cin)
            acc_e[0:ne, :] += jnp.dot(tap_e, w_tap,
                                      preferred_element_type=jnp.float32)
            # odd output cols:  padded-x col 4b+2+kw -> plane (rp, (kw+2)%4), col b+(kw+2)//4
            cp, dw = (kw + 2) % 4, (kw + 2) // 4
            tap_o = planes_ref[rp * 4 + cp, dh:dh + H6, dw:dw + Wo, :].reshape(no, Cin)
            acc_o[0:no, :] += jnp.dot(tap_o, w_tap,
                                      preferred_element_type=jnp.float32)
    b6 = b6_ref[...]                                               # (1, Cout) f32
    acc_e[0:ne, :] += b6
    acc_o[0:no, :] += b6
    # rows >= ne / >= no of the accumulators stay exactly 0: they are p6's
    # bottom zero padding for conv2 (relu(0) == 0).

    # ---- emit p6 (pre-relu, bias included) ----------------------------------
    p6e_ref[0] = acc_e[0:ne, :].reshape(H6, W7, Cout).astype(p6e_ref.dtype)
    p6o_ref[0] = acc_o[0:no, :].reshape(H6, Wo, Cout).astype(p6o_ref.dtype)

    # ---- re-phase relu(p6) for conv2 (zero-padded, bf16, VMEM resident) -----
    # q_ref[rp*2+cp][a, b, :] == relu(p6)_pad1[2a+rp, 2b+cp, :]
    q_ref[...] = jnp.zeros_like(q_ref)
    e = jnp.maximum(acc_e[...], 0.0).reshape(2 * H7, W7, Cout)
    e = e.reshape(H7, 2, W7, Cout).astype(q_ref.dtype)
    o = jnp.maximum(acc_o[...], 0.0).reshape(2 * H7, Wo, Cout)
    o = o.reshape(H7, 2, Wo, Cout).astype(q_ref.dtype)
    # p6 row 2a  -> pad row 2a+1 (rp=1, a'=a);  p6 row 2a+1 -> pad row 2a+2 (rp=0, a'=a+1)
    # p6 col 2b  -> pad col 2b+1 (cp=1, b'=b);  p6 col 2b+1 -> pad col 2b+2 (cp=0, b'=b+1)
    q_ref[1 * 2 + 1, 0:H7, 0:W7, :] = e[:, 0]
    q_ref[0 * 2 + 1, 1:H7 + 1, 0:W7, :] = e[:, 1]
    q_ref[1 * 2 + 0, 0:H7, 1:Wo + 1, :] = o[:, 0]
    q_ref[0 * 2 + 0, 1:H7 + 1, 1:Wo + 1, :] = o[:, 1]

    # ---- conv2: 3x3 / stride-2 / pad-1 on relu(p6) --------------------------
    acc7[...] = jnp.zeros_like(acc7)
    for kh in range(3):
        rp, dh = kh % 2, kh // 2
        for kw in range(3):
            cp, dw = kw % 2, kw // 2
            w_tap = w7_ref[kh * 3 + kw]                            # (Cout, Cout)
            tap = q_ref[rp * 2 + cp, dh:dh + H7, dw:dw + W7, :].reshape(n7, Cout)
            acc7[...] += jnp.dot(tap, w_tap, preferred_element_type=jnp.float32)
    p7_ref[0] = (acc7[...] + b7_ref[...]).reshape(H7, W7, Cout).astype(p7_ref.dtype)


@functools.partial(jax.jit, static_argnames=("out_dtype",))
def last_level_p6p7_fused(x_nhwc, w6_mat, b6, w7_mat, b7, out_dtype=jnp.float32):
    """Fused p6 = conv3x3s2p1(x), p7 = conv3x3s2p1(relu(p6)).

    x_nhwc : (N, H5, W5, Cin);  w6_mat : (9, Cin, Cout);  w7_mat : (9, Cout, Cout)
    Returns p6 (N, H6, W6, Cout), p7 (N, H7, W7, Cout) in NHWC, out_dtype.

    The whole p6/p7 image of one batch element is computed per grid step, so
    this targets FPN-sized p5 maps (tens of pixels a side).  Cin that is a
    multiple of 128 keeps the MXU lane-dense; small Cin is correct but
    underfills the MXU.
    """
    N, H5, W5, Cin = x_nhwc.shape
    Cout = w6_mat.shape[-1]
    assert w6_mat.shape == (9, Cin, Cout) and w7_mat.shape == (9, Cout, Cout)

    H6, W6 = (H5 - 1) // 2 + 1, (W5 - 1) // 2 + 1
    H7, W7 = (H6 - 1) // 2 + 1, (W6 - 1) // 2 + 1
    Wo = W6 // 2                        # number of odd output columns of p6
    assert W6 >= 2, "degenerate feature-map width"

    Hp, Wp = H6 + 1, W7 + 1             # phase-plane extents
    # Zero-pad (1 on top/left, rest on bottom/right) and split into 8 phase
    # planes (row%2, col%4). XLA fuses transpose+pad+cast+slice+stack, ~1x input
    # bytes of HBM traffic.
    xc = x_nhwc.astype(COMPUTE_DTYPE)
    xp = jnp.pad(xc, ((0, 0), (1, 2 * Hp - 1 - H5), (1, 4 * Wp - 1 - W5), (0, 0)))
    planes = jnp.stack(
        [xp[:, rp::2, cp::4, :] for rp in (0, 1) for cp in range(4)], axis=1)
    planes = planes.reshape(N * 8, Hp, Wp, Cin)

    b6_2 = b6.reshape(1, Cout).astype(jnp.float32)
    b7_2 = b7.reshape(1, Cout).astype(jnp.float32)

    kernel = functools.partial(_fused_p6p7_kernel, H6=H6, H7=H7, W7=W7, Wo=Wo,
                               Cin=Cin, Cout=Cout)

    # Explicit VMEM budget (review: do not rely on the per-chip scoped default).
    est = (8 * Hp * Wp * Cin * 2 * 2                        # planes (2 buffers)
           + (9 * Cin * Cout + 9 * Cout * Cout) * 2 * 2     # weights (2 buffers)
           + (H6 * W7 + H6 * Wo + H7 * W7) * Cout * 4 * 2   # outputs (2 buffers)
           + (2 * H7 * W7 + 2 * H7 * Wo + H7 * W7) * Cout * 4   # f32 accumulators
           + 4 * (H7 + 1) * (W7 + 1) * Cout * 2)            # relu(p6) phase scratch
    vmem_limit = int(min(100 * 2**20, max(16 * 2**20, 2 * est)))

    # TODO(synk): for the use_P5=False path (Cin=2048) single-buffer the weight
    # (pl.Buffered(1) / whole-array VMEM spec) and row-tile conv1 so the planes
    # fit v7x's 64 MiB VMEM; unnecessary at FPN p5 sizes.
    const_spec = lambda shape: pl.BlockSpec(shape, lambda n, _s=shape: (0,) * len(_s))

    p6e, p6o, p7 = pl.pallas_call(
        kernel,
        out_shape=(jax.ShapeDtypeStruct((N, H6, W7, Cout), out_dtype),
                   jax.ShapeDtypeStruct((N, H6, Wo, Cout), out_dtype),
                   jax.ShapeDtypeStruct((N, H7, W7, Cout), out_dtype)),
        grid=(N,),
        in_specs=[pl.BlockSpec((8, Hp, Wp, Cin), lambda n: (n, 0, 0, 0)),
                  const_spec((9, Cin, Cout)),
                  const_spec((1, Cout)),
                  const_spec((9, Cout, Cout)),
                  const_spec((1, Cout))],
        out_specs=(pl.BlockSpec((1, H6, W7, Cout), lambda n: (n, 0, 0, 0)),
                   pl.BlockSpec((1, H6, Wo, Cout), lambda n: (n, 0, 0, 0)),
                   pl.BlockSpec((1, H7, W7, Cout), lambda n: (n, 0, 0, 0))),
        scratch_shapes=[pltpu.VMEM((2 * H7 * W7, Cout), jnp.float32),
                        pltpu.VMEM((2 * H7 * Wo, Cout), jnp.float32),
                        pltpu.VMEM((4, H7 + 1, W7 + 1, Cout), COMPUTE_DTYPE),
                        pltpu.VMEM((H7 * W7, Cout), jnp.float32)],
        compiler_params=pltpu.CompilerParams(
            dimension_semantics=("parallel",),
            vmem_limit_bytes=vmem_limit),
    )(planes, w6_mat, b6_2, w7_mat, b7_2)

    # Interleave the two column halves of p6 back to (N, H6, W6, Cout): a single
    # small fused XLA op (pad/stack/reshape/crop).
    if Wo < W7:
        p6o = jnp.pad(p6o, ((0, 0), (0, 0), (0, W7 - Wo), (0, 0)))
    p6 = jnp.stack([p6e, p6o], axis=3).reshape(N, H6, 2 * W7, Cout)[:, :, :W6, :]
    return p6, p7


class LastLevelP6P7Pallas:
    """JAX/Pallas port of torchvision's LastLevelP6P7 (nerf_loc COTR FPN)."""

    def __init__(self, in_channels, out_channels, key):
        k6, k7 = jax.random.split(key)

        def kaiming_uniform(k, shape, fan_in):
            # nn.init.kaiming_uniform_(w, a=1): bound = sqrt(6 / ((1 + a^2) * fan_in))
            bound = (3.0 / fan_in) ** 0.5
            return jax.random.uniform(k, shape, minval=-bound, maxval=bound,
                                      dtype=jnp.float32)

        # PyTorch conv weight layout: (Cout, Cin, kh, kw).
        self.w6_oihw = kaiming_uniform(k6, (out_channels, in_channels, 3, 3),
                                       in_channels * 9)
        self.b6 = jnp.zeros((out_channels,), jnp.float32)
        self.w7_oihw = kaiming_uniform(k7, (out_channels, out_channels, 3, 3),
                                       out_channels * 9)
        self.b7 = jnp.zeros((out_channels,), jnp.float32)

        # Kernel layout: (9, Cin, Cout), tap index kh*3+kw; bf16 MXU inputs.
        self.w6_mat = jnp.transpose(self.w6_oihw, (2, 3, 1, 0)).reshape(
            9, in_channels, out_channels).astype(COMPUTE_DTYPE)
        self.w7_mat = jnp.transpose(self.w7_oihw, (2, 3, 1, 0)).reshape(
            9, out_channels, out_channels).astype(COMPUTE_DTYPE)
        self.use_P5 = in_channels == out_channels

    def __call__(self, p, c, names):
        p5, c5 = p[-1], c[-1]                    # NCHW, like the PyTorch module
        x = p5 if self.use_P5 else c5
        # TODO(synk): if the surrounding model can stay NHWC end-to-end, drop
        # these transposes (the only remaining full-array HBM copies).
        x_nhwc = jnp.transpose(x, (0, 2, 3, 1))
        p6_nhwc, p7_nhwc = last_level_p6p7_fused(
            x_nhwc, self.w6_mat, self.b6, self.w7_mat, self.b7)
        p6 = jnp.transpose(p6_nhwc, (0, 3, 1, 2))
        p7 = jnp.transpose(p7_nhwc, (0, 3, 1, 2))
        return list(p) + [p6, p7], list(names) + ["p6", "p7"]


def _conv_ref_nchw(x, w_oihw, b, stride=2, pad=1):
    y = lax.conv_general_dilated(
        x, w_oihw, window_strides=(stride, stride),
        padding=((pad, pad), (pad, pad)),
        dimension_numbers=("NCHW", "OIHW", "NCHW"))
    return y + b.reshape(1, -1, 1, 1)


if __name__ == "__main__":
    key = jax.random.PRNGKey(0)

    # config 1: use_P5 path (in_ch == out_ch), even spatial size
    # config 2: use_P5=False path (in_ch != out_ch), odd size (odd-row/col paths)
    for (N, Cin, Cout, H, W) in [(2, 8, 8, 16, 16), (1, 16, 8, 13, 13)]:
        key, k_p5, k_c5, k_mod = jax.random.split(key, 4)
        p5 = jax.random.normal(k_p5, (N, Cin, H, W), dtype=jnp.float32)
        c5 = jax.random.normal(k_c5, (N, Cin, H, W), dtype=jnp.float32)

        block = LastLevelP6P7Pallas(Cin, Cout, k_mod)
        p_list, names = block([p5], [c5], ["p5"])
        p_list = [jax.block_until_ready(t) for t in p_list]

        assert names == ["p5", "p6", "p7"]
        p6, p7 = p_list[-2], p_list[-1]
        H6, W6 = (H + 1) // 2, (W + 1) // 2
        H7, W7 = (H6 + 1) // 2, (W6 + 1) // 2
        assert p6.shape == (N, Cout, H6, W6), p6.shape
        assert p7.shape == (N, Cout, H7, W7), p7.shape

        # Reference check vs. plain-JAX f32 conv (same semantics as PyTorch).
        # Tolerance relaxed because the kernel feeds the MXU bf16 inputs
        # (intentional precision trade; accumulation stays f32).
        x = p5 if block.use_P5 else c5
        p6_ref = _conv_ref_nchw(x, block.w6_oihw, block.b6)
        p7_ref = _conv_ref_nchw(jnp.maximum(p6_ref, 0.0), block.w7_oihw, block.b7)
        err6 = float(jnp.max(jnp.abs(p6 - p6_ref)))
        err7 = float(jnp.max(jnp.abs(p7 - p7_ref)))
        assert err6 < 1e-1 and err7 < 1e-1, (N, Cin, Cout, H, W, err6, err7)

    print("KERNEL_OK")
</pallas_src>

<mosaic_0001>
module attributes {stable_mosaic.version = 11 : i64} {
  func.func @_fused_p6p7_kernel(%arg0: i32, %arg1: memref<8x9x5x8xbf16, #tpu.memory_space<vmem>>, %arg2: memref<9x8x8xbf16, #tpu.memory_space<vmem>>, %arg3: memref<1x8xf32, #tpu.memory_space<vmem>>, %arg4: memref<9x8x8xbf16, #tpu.memory_space<vmem>>, %arg5: memref<1x8xf32, #tpu.memory_space<vmem>>, %arg6: memref<1x8x4x8xf32, #tpu.memory_space<vmem>>, %arg7: memref<1x8x4x8xf32, #tpu.memory_space<vmem>>, %arg8: memref<1x4x4x8xf32, #tpu.memory_space<vmem>>, %arg9: memref<32x8xf32, #tpu.memory_space<vmem>>, %arg10: memref<32x8xf32, #tpu.memory_space<vmem>>, %arg11: memref<4x5x5x8xbf16, #tpu.memory_space<vmem>>, %arg12: memref<16x8xf32, #tpu.memory_space<vmem>>) attributes {dimension_semantics = [#tpu.dimension_semantics<parallel>], iteration_bounds = array<i64: 2>, scalar_prefetch = 0 : i64, scratch_operands = 4 : i64, tpu.core_type = #tpu.core_type<tc>, window_params = [{transform_indices = @transform_0, window_bounds = array<i64: 8, 9, 5, 8>}, {pipeline_mode = #tpu.pipeline_mode<synchronous>, transform_indices = @transform_1, window_bounds = array<i64: 9, 8, 8>}, {pipeline_mode = #tpu.pipeline_mode<synchronous>, transform_indices = @transform_2, window_bounds = array<i64: 1, 8>}, {pipeline_mode = #tpu.pipeline_mode<synchronous>, transform_indices = @transform_3, window_bounds = array<i64: 9, 8, 8>}, {pipeline_mode = #tpu.pipeline_mode<synchronous>, transform_indices = @transform_4, window_bounds = array<i64: 1, 8>}, {transform_indices = @transform_5, window_bounds = array<i64: 1, 8, 4, 8>}, {transform_indices = @transform_6, window_bounds = array<i64: 1, 8, 4, 8>}, {transform_indices = @transform_7, window_bounds = array<i64: 1, 4, 4, 8>}]} {
    %cst = arith.constant 0.000000e+00 : f32
    %0 = vector.broadcast %cst : f32 to vector<32x8xf32>
    %c0 = arith.constant 0 : index
    %c0_0 = arith.constant 0 : index
    %1 = vector.load %arg9[%c0, %c0_0] : memref<32x8xf32, #tpu.memory_space<vmem>>, vector<32x8xf32>
    tpu.vector_store %arg9[%c0, %c0_0], %0 {strides = array<i32>} : memref<32x8xf32, #tpu.memory_space<vmem>>, vector<32x8xf32>,
    %cst_1 = arith.constant 0.000000e+00 : f32
    %2 = vector.broadcast %cst_1 : f32 to vector<32x8xf32>
    %c0_2 = arith.constant 0 : index
    %c0_3 = arith.constant 0 : index
    %3 = vector.load %arg10[%c0_2, %c0_3] : memref<32x8xf32, #tpu.memory_space<vmem>>, vector<32x8xf32>
    tpu.vector_store %arg10[%c0_2, %c0_3], %2 {strides = array<i32>} : memref<32x8xf32, #tpu.memory_space<vmem>>, vector<32x8xf32>,
    %c0_4 = arith.constant 0 : index
    %c0_5 = arith.constant 0 : index
    %c0_6 = arith.constant 0 : index
    %4 = vector.load %arg2[%c0_4, %c0_5, %c0_6] : memref<9x8x8xbf16, #tpu.memory_space<vmem>>, vector<1x8x8xbf16>
    %5 = vector.shape_cast %4 : vector<1x8x8xbf16> to vector<8x8xbf16>
    %c0_7 = arith.constant 0 : index
    %c0_8 = arith.constant 0 : index
    %c0_9 = arith.constant 0 : index
    %c0_10 = arith.constant 0 : index
    %6 = vector.load %arg1[%c0_7, %c0_8, %c0_9, %c0_10] : memref<8x9x5x8xbf16, #tpu.memory_space<vmem>>, vector<1x8x4x8xbf16>
    %7 = vector.shape_cast %6 : vector<1x8x4x8xbf16> to vector<8x4x8xbf16>
    %8 = vector.shape_cast %7 : vector<8x4x8xbf16> to vector<32x8xbf16>
    %c0_11 = arith.constant 0 : index
    %c0_12 = arith.constant 0 : index
    %9 = vector.load %arg9[%c0_11, %c0_12] : memref<32x8xf32, #tpu.memory_space<vmem>>, vector<32x8xf32>
    %cst_13 = arith.constant dense<0.000000e+00> : vector<32x8xf32>
    %10 = tpu.matmul %8, %5, %cst_13 {dimension_numbers = #tpu.dot_dimension_numbers<[1], [0], [0], [1], [0, 0, 1, 1], [], []>} : vector<32x8xbf16>, vector<8x8xbf16>, vector<32x8xf32> -> vector<32x8xf32>
    %11 = arith.addf %9, %10 : vector<32x8xf32>
    %c0_14 = arith.constant 0 : index
    %c0_15 = arith.constant 0 : index
    %12 = vector.load %arg9[%c0_14, %c0_15] : memref<32x8xf32, #tpu.memory_space<vmem>>, vector<32x8xf32>
    tpu.vector_store %arg9[%c0_14, %c0_15], %11 {strides = array<i32>} : memref<32x8xf32, #tpu.memory_space<vmem>>, vector<32x8xf32>,
    %c2 = arith.constant 2 : index
    %c0_16 = arith.constant 0 : index
    %c0_17 = arith.constant 0 : index
    %c0_18 = arith.constant 0 : index
    %13 = vector.load %arg1[%c2, %c0_16, %c0_17, %c0_18] : memref<8x9x5x8xbf16, #tpu.memory_space<vmem>>, vector<1x8x4x8xbf16>
    %14 = vector.shape_cast %13 : vector<1x8x4x8xbf16> to vector<8x4x8xbf16>
    %15 = vector.shape_cast %14 : vector<8x4x8xbf16> to vector<32x8xbf16>
    %c0_19 = arith.constant 0 : index
    %c0_20 = arith.constant 0 : index
    %16 = vector.load %arg10[%c0_19, %c0_20] : memref<32x8xf32, #tpu.memory_space<vmem>>, vector<32x8xf32>
    %cst_21 = arith.constant dense<0.000000e+00> : vector<32x8xf32>
    %17 = tpu.matmul %15, %5, %cst_21 {dimension_numbers = #tpu.dot_dimension_numbers<[1], [0], [0], [1], [0, 0, 1, 1], [], []>} : vector<32x8xbf16>, vector<8x8xbf16>, vector<32x8xf32> -> vector<32x8xf32>
    %18 = arith.addf %16, %17 : vector<32x8xf32>
    %c0_22 = arith.constant 0 : index
    %c0_23 = arith.constant 0 : index
    %19 = vector.load %arg10[%c0_22, %c0_23] : memref<32x8xf32, #tpu.memory_space<vmem>>, vector<32x8xf32>
    tpu.vector_store %arg10[%c0_22, %c0_23], %18 {strides = array<i32>} : memref<32x8xf32, #tpu.memory_space<vmem>>, vector<32x8xf32>,
    %c1 = arith.constant 1 : index
    %c0_24 = arith.constant 0 : index
    %c0_25 = arith.constant 0 : index
    %20 = vector.load %arg2[%c1, %c0_24, %c0_25] : memref<9x8x8xbf16, #tpu.memory_space<vmem>>, vector<1x8x8xbf16>
    %21 = vector.shape_cast %20 : vector<1x8x8xbf16> to vector<8x8xbf16>
    %c1_26 = arith.constant 1 : index
    %c0_27 = arith.constant 0 : index
    %c0_28 = arith.constant 0 : index
    %c0_29 = arith.constant 0 : index
    %22 = vector.load %arg1[%c1_26, %c0_27, %c0_28, %c0_29] : memref<8x9x5x8xbf16, #tpu.memory_space<vmem>>, vector<1x8x4x8xbf16>
    %23 = vector.shape_cast %22 : vector<1x8x4x8xbf16> to vector<8x4x8xbf16>
    %24 = vector.shape_cast %23 : vector<8x4x8xbf16> to vector<32x8xbf16>
    %c0_30 = arith.constant 0 : index
    %c0_31 = arith.constant 0 : index
    %25 = vector.load %arg9[%c0_30, %c0_31] : memref<32x8xf32, #tpu.memory_space<vmem>>, vector<32x8xf32>
    %cst_32 = arith.constant dense<0.000000e+00> : vector<32x8xf32>
    %26 = tpu.matmul %24, %21, %cst_32 {dimension_numbers = #tpu.dot_dimension_numbers<[1], [0], [0], [1], [0, 0, 1, 1], [], []>} : vector<32x8xbf16>, vector<8x8xbf16>, vector<32x8xf32> -> vector<32x8xf32>
    %27 = arith.addf %25, %26 : vector<32x8xf32>
    %c0_33 = arith.constant 0 : index
    %c0_34 = arith.constant 0 : index
    %28 = vector.load %arg9[%c0_33, %c0_34] : memref<32x8xf32, #tpu.memory_space<vmem>>, vector<32x8xf32>
    tpu.vector_store %arg9[%c0_33, %c0_34], %27 {strides = array<i32>} : memref<32x8xf32, #tpu.memory_space<vmem>>, vector<32x8xf32>,
    %c3 = arith.constant 3 : index
    %c0_35 = arith.constant 0 : index
    %c0_36 = arith.constant 0 : index
    %c0_37 = arith.constant 0 : index
    %29 = vector.load %arg1[%c3, %c0_35, %c0_36, %c0_37] : memref<8x9x5x8xbf16, #tpu.memory_space<vmem>>, vector<1x8x4x8xbf16>
    %30 = vector.shape_cast %29 : vector<1x8x4x8xbf16> to vector<8x4x8xbf16>
    %31 = vector.shape_cast %30 : vector<8x4x8xbf16> to vector<32x8xbf16>
    %c0_38 = arith.constant 0 : index
    %c0_39 = arith.constant 0 : index
    %32 = vector.load %arg10[%c0_38, %c0_39] : memref<32x8xf32, #tpu.memory_space<vmem>>, vector<32x8xf32>
    %cst_40 = arith.constant dense<0.000000e+00> : vector<32x8xf32>
    %33 = tpu.matmul %31, %21, %cst_40 {dimension_numbers = #tpu.dot_dimension_numbers<[1], [0], [0], [1], [0, 0, 1, 1], [], []>} : vector<32x8xbf16>, vector<8x8xbf16>, vector<32x8xf32> -> vector<32x8xf32>
    %34 = arith.addf %32, %33 : vector<32x8xf32>
    %c0_41 = arith.constant 0 : index
    %c0_42 = arith.constant 0 : index
    %35 = vector.load %arg10[%c0_41, %c0_42] : memref<32x8xf32, #tpu.memory_space<vmem>>, vector<32x8xf32>
    tpu.vector_store %arg10[%c0_41, %c0_42], %34 {strides = array<i32>} : memref<32x8xf32, #tpu.memory_space<vmem>>, vector<32x8xf32>,
    %c2_43 = arith.constant 2 : index
    %c0_44 = arith.constant 0 : index
    %c0_45 = arith.constant 0 : index
    %36 = vector.load %arg2[%c2_43, %c0_44, %c0_45] : memref<9x8x8xbf16, #tpu.memory_space<vmem>>, vector<1x8x8xbf16>
    %37 = vector.shape_cast %36 : vector<1x8x8xbf16> to vector<8x8xbf16>
    %c2_46 = arith.constant 2 : index
    %c0_47 = arith.constant 0 : index
    %c0_48 = arith.constant 0 : index
    %c0_49 = arith.constant 0 : index
    %38 = vector.load %arg1[%c2_46, %c0_47, %c0_48, %c0_49] : memref<8x9x5x8xbf16, #tpu.memory_space<vmem>>, vector<1x8x4x8xbf16>
    %39 = vector.shape_cast %38 : vector<1x8x4x8xbf16> to vector<8x4x8xbf16>
    %40 = vector.shape_cast %39 : vector<8x4x8xbf16> to vector<32x8xbf16>
    %c0_50 = arith.constant 0 : index
    %c0_51 = arith.constant 0 : index
    %41 = vector.load %arg9[%c0_50, %c0_51] : memref<32x8xf32, #tpu.memory_space<vmem>>, vector<32x8xf32>
    %cst_52 = arith.constant dense<0.000000e+00> : vector<32x8xf32>
    %42 = tpu.matmul %40, %37, %cst_52 {dimension_numbers = #tpu.dot_dimension_numbers<[1], [0], [0], [1], [0, 0, 1, 1], [], []>} : vector<32x8xbf16>, vector<8x8xbf16>, vector<32x8xf32> -> vector<32x8xf32>
    %43 = arith.addf %41, %42 : vector<32x8xf32>
    %c0_53 = arith.constant 0 : index
    %c0_54 = arith.constant 0 : index
    %44 = vector.load %arg9[%c0_53, %c0_54] : memref<32x8xf32, #tpu.memory_space<vmem>>, vector<32x8xf32>
    tpu.vector_store %arg9[%c0_53, %c0_54], %43 {strides = array<i32>} : memref<32x8xf32, #tpu.memory_space<vmem>>, vector<32x8xf32>,
    %c0_55 = arith.constant 0 : index
    %c0_56 = arith.constant 0 : index
    %c1_57 = arith.constant 1 : index
    %c0_58 = arith.constant 0 : index
    %45 = vector.load %arg1[%c0_55, %c0_56, %c1_57, %c0_58] : memref<8x9x5x8xbf16, #tpu.memory_space<vmem>>, vector<1x8x4x8xbf16>
    %46 = vector.shape_cast %45 : vector<1x8x4x8xbf16> to vector<8x4x8xbf16>
    %47 = vector.shape_cast %46 : vector<8x4x8xbf16> to vector<32x8xbf16>
    %c0_59 = arith.constant 0 : index
    %c0_60 = arith.constant 0 : index
    %48 = vector.load %arg10[%c0_59, %c0_60] : memref<32x8xf32, #tpu.memory_space<vmem>>, vector<32x8xf32>
    %cst_61 = arith.constant dense<0.000000e+00> : vector<32x8xf32>
    %49 = tpu.matmul %47, %37, %cst_61 {dimension_numbers = #tpu.dot_dimension_numbers<[1], [0], [0], [1], [0, 0, 1, 1], [], []>} : vector<32x8xbf16>, vector<8x8xbf16>, vector<32x8xf32> -> vector<32x8xf32>
    %50 = arith.addf %48, %49 : vector<32x8xf32>
    %c0_62 = arith.constant 0 : index
    %c0_63 = arith.constant 0 : index
    %51 = vector.load %arg10[%c0_62, %c0_63] : memref<32x8xf32, #tpu.memory_space<vmem>>, vector<32x8xf32>
    tpu.vector_store %arg10[%c0_62, %c0_63], %50 {strides = array<i32>} : memref<32x8xf32, #tpu.memory_space<vmem>>, vector<32x8xf32>,
    %c3_64 = arith.constant 3 : index
    %c0_65 = arith.constant 0 : index
    %c0_66 = arith.constant 0 : index
    %52 = vector.load %arg2[%c3_64, %c0_65, %c0_66] : memref<9x8x8xbf16, #tpu.memory_space<vmem>>, vector<1x8x8xbf16>
    %53 = vector.shape_cast %52 : vector<1x8x8xbf16> to vector<8x8xbf16>
    %c4 = arith.constant 4 : index
    %c0_67 = arith.constant 0 : index
    %c0_68 = arith.constant 0 : index
    %c0_69 = arith.constant 0 : index
    %54 = vector.load %arg1[%c4, %c0_67, %c0_68, %c0_69] : memref<8x9x5x8xbf16, #tpu.memory_space<vmem>>, vector<1x8x4x8xbf16>
    %55 = vector.shape_cast %54 : vector<1x8x4x8xbf16> to vector<8x4x8xbf16>
    %56 = vector.shape_cast %55 : vector<8x4x8xbf16> to vector<32x8xbf16>
    %c0_70 = arith.constant 0 : index
    %c0_71 = arith.constant 0 : index
    %57 = vector.load %arg9[%c0_70, %c0_71] : memref<32x8xf32, #tpu.memory_space<vmem>>, vector<32x8xf32>
    %cst_72 = arith.constant dense<0.000000e+00> : vector<32x8xf32>
    %58 = tpu.matmul %56, %53, %cst_72 {dimension_numbers = #tpu.dot_dimension_numbers<[1], [0], [0], [1], [0, 0, 1, 1], [], []>} : vector<32x8xbf16>, vector<8x8xbf16>, vector<32x8xf32> -> vector<32x8xf32>
    %59 = arith.addf %57, %58 : vector<32x8xf32>
    %c0_73 = arith.constant 0 : index
    %c0_74 = arith.constant 0 : index
    %60 = vector.load %arg9[%c0_73, %c0_74] : memref<32x8xf32, #tpu.memory_space<vmem>>, vector<32x8xf32>
    tpu.vector_store %arg9[%c0_73, %c0_74], %59 {strides = array<i32>} : memref<32x8xf32, #tpu.memory_space<vmem>>, vector<32x8xf32>,
    %c6 = arith.constant 6 : index
    %c0_75 = arith.constant 0 : index
    %c0_76 = arith.constant 0 : index
    %c0_77 = arith.constant 0 : index
    %61 = vector.load %arg1[%c6, %c0_75, %c0_76, %c0_77] : memref<8x9x5x8xbf16, #tpu.memory_space<vmem>>, vector<1x8x4x8xbf16>
    %62 = vector.shape_cast %61 : vector<1x8x4x8xbf16> to vector<8x4x8xbf16>
    %63 = vector.shape_cast %62 : vector<8x4x8xbf16> to vector<32x8xbf16>
    %c0_78 = arith.constant 0 : index
    %c0_79 = arith.constant 0 : index
    %64 = vector.load %arg10[%c0_78, %c0_79] : memref<32x8xf32, #tpu.memory_space<vmem>>, vector<32x8xf32>
    %cst_80 = arith.constant dense<0.000000e+00> : vector<32x8xf32>
    %65 = tpu.matmul %63, %53, %cst_80 {dimension_numbers = #tpu.dot_dimension_numbers<[1], [0], [0], [1], [0, 0, 1, 1], [], []>} : vector<32x8xbf16>, vector<8x8xbf16>, vector<32x8xf32> -> vector<32x8xf32>
    %66 = arith.addf %64, %65 : vector<32x8xf32>
    %c0_81 = arith.constant 0 : index
    %c0_82 = arith.constant 0 : index
    %67 = vector.load %arg10[%c0_81, %c0_82] : memref<32x8xf32, #tpu.memory_space<vmem>>, vector<32x8xf32>
    tpu.vector_store %arg10[%c0_81, %c0_82], %66 {strides = array<i32>} : memref<32x8xf32, #tpu.memory_space<vmem>>, vector<32x8xf32>,
    %c4_83 = arith.constant 4 : index
    %c0_84 = arith.constant 0 : index
    %c0_85 = arith.constant 0 : index
    %68 = vector.load %arg2[%c4_83, %c0_84, %c0_85] : memref<9x8x8xbf16, #tpu.memory_space<vmem>>, vector<1x8x8xbf16>
    %69 = vector.shape_cast %68 : vector<1x8x8xbf16> to vector<8x8xbf16>
    %c5 = arith.constant 5 : index
    %c0_86 = arith.constant 0 : index
    %c0_87 = arith.constant 0 : index
    %c0_88 = arith.constant 0 : index
    %70 = vector.load %arg1[%c5, %c0_86, %c0_87, %c0_88] : memref<8x9x5x8xbf16, #tpu.memory_space<vmem>>, vector<1x8x4x8xbf16>
    %71 = vector.shape_cast %70 : vector<1x8x4x8xbf16> to vector<8x4x8xbf16>
    %72 = vector.shape_cast %71 : vector<8x4x8xbf16> to vector<32x8xbf16>
    %c0_89 = arith.constant 0 : index
    %c0_90 = arith.constant 0 : index
    %73 = vector.load %arg9[%c0_89, %c0_90] : memref<32x8xf32, #tpu.memory_space<vmem>>, vector<32x8xf32>
    %cst_91 = arith.constant dense<0.000000e+00> : vector<32x8xf32>
    %74 = tpu.matmul %72, %69, %cst_91 {dimension_numbers = #tpu.dot_dimension_numbers<[1], [0], [0], [1], [0, 0, 1, 1], [], []>} : vector<32x8xbf16>, vector<8x8xbf16>, vector<32x8xf32> -> vector<32x8xf32>
    %75 = arith.addf %73, %74 : vector<32x8xf32>
    %c0_92 = arith.constant 0 : index
    %c0_93 = arith.constant 0 : index
    %76 = vector.load %arg9[%c0_92, %c0_93] : memref<32x8xf32, #tpu.memory_space<vmem>>, vector<32x8xf32>
    tpu.vector_store %arg9[%c0_92, %c0_93], %75 {strides = array<i32>} : memref<32x8xf32, #tpu.memory_space<vmem>>, vector<32x8xf32>,
    %c7 = arith.constant 7 : index
    %c0_94 = arith.constant 0 : index
    %c0_95 = arith.constant 0 : index
    %c0_96 = arith.constant 0 : index
    %77 = vector.load %arg1[%c7, %c0_94, %c0_95, %c0_96] : memref<8x9x5x8xbf16, #tpu.memory_space<vmem>>, vector<1x8x4x8xbf16>
    %78 = vector.shape_cast %77 : vector<1x8x4x8xbf16> to vector<8x4x8xbf16>
    %79 = vector.shape_cast %78 : vector<8x4x8xbf16> to vector<32x8xbf16>
    %c0_97 = arith.constant 0 : index
    %c0_98 = arith.constant 0 : index
    %80 = vector.load %arg10[%c0_97, %c0_98] : memref<32x8xf32, #tpu.memory_space<vmem>>, vector<32x8xf32>
    %cst_99 = arith.constant dense<0.000000e+00> : vector<32x8xf32>
    %81 = tpu.matmul %79, %69, %cst_99 {dimension_numbers = #tpu.dot_dimension_numbers<[1], [0], [0], [1], [0, 0, 1, 1], [], []>} : vector<32x8xbf16>, vector<8x8xbf16>, vector<32x8xf32> -> vector<32x8xf32>
    %82 = arith.addf %80, %81 : vector<32x8xf32>
    %c0_100 = arith.constant 0 : index
    %c0_101 = arith.constant 0 : index
    %83 = vector.load %arg10[%c0_100, %c0_101] : memref<32x8xf32, #tpu.memory_space<vmem>>, vector<32x8xf32>
    tpu.vector_store %arg10[%c0_100, %c0_101], %82 {strides = array<i32>} : memref<32x8xf32, #tpu.memory_space<vmem>>, vector<32x8xf32>,
    %c5_102 = arith.constant 5 : index
    %c0_103 = arith.constant 0 : index
    %c0_104 = arith.constant 0 : index
    %84 = vector.load %arg2[%c5_102, %c0_103, %c0_104] : memref<9x8x8xbf16, #tpu.memory_space<vmem>>, vector<1x8x8xbf16>
    %85 = vector.shape_cast %84 : vector<1x8x8xbf16> to vector<8x8xbf16>
    %c6_105 = arith.constant 6 : index
    %c0_106 = arith.constant 0 : index
    %c0_107 = arith.constant 0 : index
    %c0_108 = arith.constant 0 : index
    %86 = vector.load %arg1[%c6_105, %c0_106, %c0_107, %c0_108] : memref<8x9x5x8xbf16, #tpu.memory_space<vmem>>, vector<1x8x4x8xbf16>
    %87 = vector.shape_cast %86 : vector<1x8x4x8xbf16> to vector<8x4x8xbf16>
    %88 = vector.shape_cast %87 : vector<8x4x8xbf16> to vector<32x8xbf16>
    %c0_109 = arith.constant 0 : index
    %c0_110 = arith.constant 0 : index
    %89 = vector.load %arg9[%c0_109, %c0_110] : memref<32x8xf32, #tpu.memory_space<vmem>>, vector<32x8xf32>
    %cst_111 = arith.constant dense<0.000000e+00> : vector<32x8xf32>
    %90 = tpu.matmul %88, %85, %cst_111 {dimension_numbers = #tpu.dot_dimension_numbers<[1], [0], [0], [1], [0, 0, 1, 1], [], []>} : vector<32x8xbf16>, vector<8x8xbf16>, vector<32x8xf32> -> vector<32x8xf32>
    %91 = arith.addf %89, %90 : vector<32x8xf32>
    %c0_112 = arith.constant 0 : index
    %c0_113 = arith.constant 0 : index
    %92 = vector.load %arg9[%c0_112, %c0_113] : memref<32x8xf32, #tpu.memory_space<vmem>>, vector<32x8xf32>
    tpu.vector_store %arg9[%c0_112, %c0_113], %91 {strides = array<i32>} : memref<32x8xf32, #tpu.memory_space<vmem>>, vector<32x8xf32>,
    %c4_114 = arith.constant 4 : index
    %c0_115 = arith.constant 0 : index
    %c1_116 = arith.constant 1 : index
    %c0_117 = arith.constant 0 : index
    %93 = vector.load %arg1[%c4_114, %c0_115, %c1_116, %c0_117] : memref<8x9x5x8xbf16, #tpu.memory_space<vmem>>, vector<1x8x4x8xbf16>
    %94 = vector.shape_cast %93 : vector<1x8x4x8xbf16> to vector<8x4x8xbf16>
    %95 = vector.shape_cast %94 : vector<8x4x8xbf16> to vector<32x8xbf16>
    %c0_118 = arith.constant 0 : index
    %c0_119 = arith.constant 0 : index
    %96 = vector.load %arg10[%c0_118, %c0_119] : memref<32x8xf32, #tpu.memory_space<vmem>>, vector<32x8xf32>
    %cst_120 = arith.constant dense<0.000000e+00> : vector<32x8xf32>
    %97 = tpu.matmul %95, %85, %cst_120 {dimension_numbers = #tpu.dot_dimension_numbers<[1], [0], [0], [1], [0, 0, 1, 1], [], []>} : vector<32x8xbf16>, vector<8x8xbf16>, vector<32x8xf32> -> vector<32x8xf32>
    %98 = arith.addf %96, %97 : vector<32x8xf32>
    %c0_121 = arith.constant 0 : index
    %c0_122 = arith.constant 0 : index
    %99 = vector.load %arg10[%c0_121, %c0_122] : memref<32x8xf32, #tpu.memory_space<vmem>>, vector<32x8xf32>
    tpu.vector_store %arg10[%c0_121, %c0_122], %98 {strides = array<i32>} : memref<32x8xf32, #tpu.memory_space<vmem>>, vector<32x8xf32>,
    %c6_123 = arith.constant 6 : index
    %c0_124 = arith.constant 0 : index
    %c0_125 = arith.constant 0 : index
    %100 = vector.load %arg2[%c6_123, %c0_124, %c0_125] : memref<9x8x8xbf16, #tpu.memory_space<vmem>>, vector<1x8x8xbf16>
    %101 = vector.shape_cast %100 : vector<1x8x8xbf16> to vector<8x8xbf16>
    %c0_126 = arith.constant 0 : index
    %c1_127 = arith.constant 1 : index
    %c0_128 = arith.constant 0 : index
    %c0_129 = arith.constant 0 : index
    %102 = vector.load %arg1[%c0_126, %c1_127, %c0_128, %c0_129] : memref<8x9x5x8xbf16, #tpu.memory_space<vmem>>, vector<1x8x4x8xbf16>
    %103 = vector.shape_cast %102 : vector<1x8x4x8xbf16> to vector<8x4x8xbf16>
    %104 = vector.shape_cast %103 : vector<8x4x8xbf16> to vector<32x8xbf16>
    %c0_130 = arith.constant 0 : index
    %c0_131 = arith.constant 0 : index
    %105 = vector.load %arg9[%c0_130, %c0_131] : memref<32x8xf32, #tpu.memory_space<vmem>>, vector<32x8xf32>
    %cst_132 = arith.constant dense<0.000000e+00> : vector<32x8xf32>
    %106 = tpu.matmul %104, %101, %cst_132 {dimension_numbers = #tpu.dot_dimension_numbers<[1], [0], [0], [1], [0, 0, 1, 1], [], []>} : vector<32x8xbf16>, vector<8x8xbf16>, vector<32x8xf32> -> vector<32x8xf32>
    %107 = arith.addf %105, %106 : vector<32x8xf32>
    %c0_133 = arith.constant 0 : index
    %c0_134 = arith.constant 0 : index
    %108 = vector.load %arg9[%c0_133, %c0_134] : memref<32x8xf32, #tpu.memory_space<vmem>>, vector<32x8xf32>
    tpu.vector_store %arg9[%c0_133, %c0_134], %107 {strides = array<i32>} : memref<32x8xf32, #tpu.memory_space<vmem>>, vector<32x8xf32>,
    %c2_135 = arith.constant 2 : index
    %c1_136 = arith.constant 1 : index
    %c0_137 = arith.constant 0 : index
    %c0_138 = arith.constant 0 : index
    %109 = vector.load %arg1[%c2_135, %c1_136, %c0_137, %c0_138] : memref<8x9x5x8xbf16, #tpu.memory_space<vmem>>, vector<1x8x4x8xbf16>
    %110 = vector.shape_cast %109 : vector<1x8x4x8xbf16> to vector<8x4x8xbf16>
    %111 = vector.shape_cast %110 : vector<8x4x8xbf16> to vector<32x8xbf16>
    %c0_139 = arith.constant 0 : index
    %c0_140 = arith.constant 0 : index
    %112 = vector.load %arg10[%c0_139, %c0_140] : memref<32x8xf32, #tpu.memory_space<vmem>>, vector<32x8xf32>
    %cst_141 = arith.constant dense<0.000000e+00> : vector<32x8xf32>
    %113 = tpu.matmul %111, %101, %cst_141 {dimension_numbers = #tpu.dot_dimension_numbers<[1], [0], [0], [1], [0, 0, 1, 1], [], []>} : vector<32x8xbf16>, vector<8x8xbf16>, vector<32x8xf32> -> vector<32x8xf32>
    %114 = arith.addf %112, %113 : vector<32x8xf32>
    %c0_142 = arith.constant 0 : index
    %c0_143 = arith.constant 0 : index
    %115 = vector.load %arg10[%c0_142, %c0_143] : memref<32x8xf32, #tpu.memory_space<vmem>>, vector<32x8xf32>
    tpu.vector_store %arg10[%c0_142, %c0_143], %114 {strides = array<i32>} : memref<32x8xf32, #tpu.memory_space<vmem>>, vector<32x8xf32>,
    %c7_144 = arith.constant 7 : index
    %c0_145 = arith.constant 0 : index
    %c0_146 = arith.constant 0 : index
    %116 = vector.load %arg2[%c7_144, %c0_145, %c0_146] : memref<9x8x8xbf16, #tpu.memory_space<vmem>>, vector<1x8x8xbf16>
    %117 = vector.shape_cast %116 : vector<1x8x8xbf16> to vector<8x8xbf16>
    %c1_147 = arith.constant 1 : index
    %c1_148 = arith.constant 1 : index
    %c0_149 = arith.constant 0 : index
    %c0_150 = arith.constant 0 : index
    %118 = vector.load %arg1[%c1_147, %c1_148, %c0_149, %c0_150] : memref<8x9x5x8xbf16, #tpu.memory_space<vmem>>, vector<1x8x4x8xbf16>
    %119 = vector.shape_cast %118 : vector<1x8x4x8xbf16> to vector<8x4x8xbf16>
    %120 = vector.shape_cast %119 : vector<8x4x8xbf16> to vector<32x8xbf16>
    %c0_151 = arith.constant 0 : index
    %c0_152 = arith.constant 0 : index
    %121 = vector.load %arg9[%c0_151, %c0_152] : memref<32x8xf32, #tpu.memory_space<vmem>>, vector<32x8xf32>
    %cst_153 = arith.constant dense<0.000000e+00> : vector<32x8xf32>
    %122 = tpu.matmul %120, %117, %cst_153 {dimension_numbers = #tpu.dot_dimension_numbers<[1], [0], [0], [1], [0, 0, 1, 1], [], []>} : vector<32x8xbf16>, vector<8x8xbf16>, vector<32x8xf32> -> vector<32x8xf32>
    %123 = arith.addf %121, %122 : vector<32x8xf32>
    %c0_154 = arith.constant 0 : index
    %c0_155 = arith.constant 0 : index
    %124 = vector.load %arg9[%c0_154, %c0_155] : memref<32x8xf32, #tpu.memory_space<vmem>>, vector<32x8xf32>
    tpu.vector_store %arg9[%c0_154, %c0_155], %123 {strides = array<i32>} : memref<32x8xf32, #tpu.memory_space<vmem>>, vector<32x8xf32>,
    %c3_156 = arith.constant 3 : index
    %c1_157 = arith.constant 1 : index
    %c0_158 = arith.constant 0 : index
    %c0_159 = arith.constant 0 : index
    %125 = vector.load %arg1[%c3_156, %c1_157, %c0_158, %c0_159] : memref<8x9x5x8xbf16, #tpu.memory_space<vmem>>, vector<1x8x4x8xbf16>
    %126 = vector.shape_cast %125 : vector<1x8x4x8xbf16> to vector<8x4x8xbf16>
    %127 = vector.shape_cast %126 : vector<8x4x8xbf16> to vector<32x8xbf16>
    %c0_160 = arith.constant 0 : index
    %c0_161 = arith.constant 0 : index
    %128 = vector.load %arg10[%c0_160, %c0_161] : memref<32x8xf32, #tpu.memory_space<vmem>>, vector<32x8xf32>
    %cst_162 = arith.constant dense<0.000000e+00> : vector<32x8xf32>
    %129 = tpu.matmul %127, %117, %cst_162 {dimension_numbers = #tpu.dot_dimension_numbers<[1], [0], [0], [1], [0, 0, 1, 1], [], []>} : vector<32x8xbf16>, vector<8x8xbf16>, vector<32x8xf32> -> vector<32x8xf32>
    %130 = arith.addf %128, %129 : vector<32x8xf32>
    %c0_163 = arith.constant 0 : index
    %c0_164 = arith.constant 0 : index
    %131 = vector.load %arg10[%c0_163, %c0_164] : memref<32x8xf32, #tpu.memory_space<vmem>>, vector<32x8xf32>
    tpu.vector_store %arg10[%c0_163, %c0_164], %130 {strides = array<i32>} : memref<32x8xf32, #tpu.memory_space<vmem>>, vector<32x8xf32>,
    %c8 = arith.constant 8 : index
    %c0_165 = arith.constant 0 : index
    %c0_166 = arith.constant 0 : index
    %132 = vector.load %arg2[%c8, %c0_165, %c0_166] : memref<9x8x8xbf16, #tpu.memory_space<vmem>>, vector<1x8x8xbf16>
    %133 = vector.shape_cast %132 : vector<1x8x8xbf16> to vector<8x8xbf16>
    %c2_167 = arith.constant 2 : index
    %c1_168 = arith.constant 1 : index
    %c0_169 = arith.constant 0 : index
    %c0_170 = arith.constant 0 : index
    %134 = vector.load %arg1[%c2_167, %c1_168, %c0_169, %c0_170] : memref<8x9x5x8xbf16, #tpu.memory_space<vmem>>, vector<1x8x4x8xbf16>
    %135 = vector.shape_cast %134 : vector<1x8x4x8xbf16> to vector<8x4x8xbf16>
    %136 = vector.shape_cast %135 : vector<8x4x8xbf16> to vector<32x8xbf16>
    %c0_171 = arith.constant 0 : index
    %c0_172 = arith.constant 0 : index
    %137 = vector.load %arg9[%c0_171, %c0_172] : memref<32x8xf32, #tpu.memory_space<vmem>>, vector<32x8xf32>
    %cst_173 = arith.constant dense<0.000000e+00> : vector<32x8xf32>
    %138 = tpu.matmul %136, %133, %cst_173 {dimension_numbers = #tpu.dot_dimension_numbers<[1], [0], [0], [1], [0, 0, 1, 1], [], []>} : vector<32x8xbf16>, vector<8x8xbf16>, vector<32x8xf32> -> vector<32x8xf32>
    %139 = arith.addf %137, %138 : vector<32x8xf32>
    %c0_174 = arith.constant 0 : index
    %c0_175 = arith.constant 0 : index
    %140 = vector.load %arg9[%c0_174, %c0_175] : memref<32x8xf32, #tpu.memory_space<vmem>>, vector<32x8xf32>
    tpu.vector_store %arg9[%c0_174, %c0_175], %139 {strides = array<i32>} : memref<32x8xf32, #tpu.memory_space<vmem>>, vector<32x8xf32>,
    %c0_176 = arith.constant 0 : index
    %c1_177 = arith.constant 1 : index
    %c1_178 = arith.constant 1 : index
    %c0_179 = arith.constant 0 : index
    %141 = vector.load %arg1[%c0_176, %c1_177, %c1_178, %c0_179] : memref<8x9x5x8xbf16, #tpu.memory_space<vmem>>, vector<1x8x4x8xbf16>
    %142 = vector.shape_cast %141 : vector<1x8x4x8xbf16> to vector<8x4x8xbf16>
    %143 = vector.shape_cast %142 : vector<8x4x8xbf16> to vector<32x8xbf16>
    %c0_180 = arith.constant 0 : index
    %c0_181 = arith.constant 0 : index
    %144 = vector.load %arg10[%c0_180, %c0_181] : memref<32x8xf32, #tpu.memory_space<vmem>>, vector<32x8xf32>
    %cst_182 = arith.constant dense<0.000000e+00> : vector<32x8xf32>
    %145 = tpu.matmul %143, %133, %cst_182 {dimension_numbers = #tpu.dot_dimension_numbers<[1], [0], [0], [1], [0, 0, 1, 1], [], []>} : vector<32x8xbf16>, vector<8x8xbf16>, vector<32x8xf32> -> vector<32x8xf32>
    %146 = arith.addf %144, %145 : vector<32x8xf32>
    %c0_183 = arith.constant 0 : index
    %c0_184 = arith.constant 0 : index
    %147 = vector.load %arg10[%c0_183, %c0_184] : memref<32x8xf32, #tpu.memory_space<vmem>>, vector<32x8xf32>
    tpu.vector_store %arg10[%c0_183, %c0_184], %146 {strides = array<i32>} : memref<32x8xf32, #tpu.memory_space<vmem>>, vector<32x8xf32>,
    %c0_185 = arith.constant 0 : index
    %c0_186 = arith.constant 0 : index
    %148 = vector.load %arg3[%c0_185, %c0_186] : memref<1x8xf32, #tpu.memory_space<vmem>>, vector<1x8xf32>
    %c0_187 = arith.constant 0 : index
    %c0_188 = arith.constant 0 : index
    %149 = vector.load %arg9[%c0_187, %c0_188] : memref<32x8xf32, #tpu.memory_space<vmem>>, vector<32x8xf32>
    %150 = vector.broadcast %148 : vector<1x8xf32> to vector<32x8xf32>
    %151 = arith.addf %149, %150 : vector<32x8xf32>
    %c0_189 = arith.constant 0 : index
    %c0_190 = arith.constant 0 : index
    %152 = vector.load %arg9[%c0_189, %c0_190] : memref<32x8xf32, #tpu.memory_space<vmem>>, vector<32x8xf32>
    tpu.vector_store %arg9[%c0_189, %c0_190], %151 {strides = array<i32>} : memref<32x8xf32, #tpu.memory_space<vmem>>, vector<32x8xf32>,
    %c0_191 = arith.constant 0 : index
    %c0_192 = arith.constant 0 : index
    %153 = vector.load %arg10[%c0_191, %c0_192] : memref<32x8xf32, #tpu.memory_space<vmem>>, vector<32x8xf32>
    %154 = vector.broadcast %148 : vector<1x8xf32> to vector<32x8xf32>
    %155 = arith.addf %153, %154 : vector<32x8xf32>
    %c0_193 = arith.constant 0 : index
    %c0_194 = arith.constant 0 : index
    %156 = vector.load %arg10[%c0_193, %c0_194] : memref<32x8xf32, #tpu.memory_space<vmem>>, vector<32x8xf32>
    tpu.vector_store %arg10[%c0_193, %c0_194], %155 {strides = array<i32>} : memref<32x8xf32, #tpu.memory_space<vmem>>, vector<32x8xf32>,
    %c0_195 = arith.constant 0 : index
    %c0_196 = arith.constant 0 : index
    %157 = vector.load %arg9[%c0_195, %c0_196] : memref<32x8xf32, #tpu.memory_space<vmem>>, vector<32x8xf32>
    %158 = vector.shape_cast %157 : vector<32x8xf32> to vector<8x4x8xf32>
    %c0_197 = arith.constant 0 : index
    %c0_198 = arith.constant 0 : index
    %c0_199 = arith.constant 0 : index
    %c0_200 = arith.constant 0 : index
    %159 = vector.load %arg6[%c0_197, %c0_198, %c0_199, %c0_200] : memref<1x8x4x8xf32, #tpu.memory_space<vmem>>, vector<1x8x4x8xf32>
    %160 = vector.shape_cast %159 : vector<1x8x4x8xf32> to vector<8x4x8xf32>
    %161 = vector.shape_cast %158 : vector<8x4x8xf32> to vector<1x8x4x8xf32>
    tpu.vector_store %arg6[%c0_197, %c0_198, %c0_199, %c0_200], %161 {strides = array<i32>} : memref<1x8x4x8xf32, #tpu.memory_space<vmem>>, vector<1x8x4x8xf32>,
    %c0_201 = arith.constant 0 : index
    %c0_202 = arith.constant 0 : index
    %162 = vector.load %arg10[%c0_201, %c0_202] : memref<32x8xf32, #tpu.memory_space<vmem>>, vector<32x8xf32>
    %163 = vector.shape_cast %162 : vector<32x8xf32> to vector<8x4x8xf32>
    %c0_203 = arith.constant 0 : index
    %c0_204 = arith.constant 0 : index
    %c0_205 = arith.constant 0 : index
    %c0_206 = arith.constant 0 : index
    %164 = vector.load %arg7[%c0_203, %c0_204, %c0_205, %c0_206] : memref<1x8x4x8xf32, #tpu.memory_space<vmem>>, vector<1x8x4x8xf32>
    %165 = vector.shape_cast %164 : vector<1x8x4x8xf32> to vector<8x4x8xf32>
    %166 = vector.shape_cast %163 : vector<8x4x8xf32> to vector<1x8x4x8xf32>
    tpu.vector_store %arg7[%c0_203, %c0_204, %c0_205, %c0_206], %166 {strides = array<i32>} : memref<1x8x4x8xf32, #tpu.memory_space<vmem>>, vector<1x8x4x8xf32>,
    %cst_207 = arith.constant 0.000000e+00 : bf16
    %167 = vector.broadcast %cst_207 : bf16 to vector<4x5x5x8xbf16>
    %c0_208 = arith.constant 0 : index
    %c0_209 = arith.constant 0 : index
    %c0_210 = arith.constant 0 : index
    %c0_211 = arith.constant 0 : index
    %168 = vector.load %arg11[%c0_208, %c0_209, %c0_210, %c0_211] : memref<4x5x5x8xbf16, #tpu.memory_space<vmem>>, vector<4x5x5x8xbf16>
    tpu.vector_store %arg11[%c0_208, %c0_209, %c0_210, %c0_211], %167 {strides = array<i32>} : memref<4x5x5x8xbf16, #tpu.memory_space<vmem>>, vector<4x5x5x8xbf16>,
    %c0_212 = arith.constant 0 : index
    %c0_213 = arith.constant 0 : index
    %169 = vector.load %arg9[%c0_212, %c0_213] : memref<32x8xf32, #tpu.memory_space<vmem>>, vector<32x8xf32>
    %cst_214 = arith.constant 0.000000e+00 : f32
    %170 = vector.broadcast %cst_214 : f32 to vector<32x8xf32>
    %171 = arith.maximumf %169, %170 : vector<32x8xf32>
    %172 = vector.shape_cast %171 : vector<32x8xf32> to vector<8x4x8xf32>
    %173 = vector.shape_cast %172 : vector<8x4x8xf32> to vector<4x2x4x8xf32>
    %174 = arith.truncf %173 : vector<4x2x4x8xf32> to vector<4x2x4x8xbf16>
    %c0_215 = arith.constant 0 : index
    %c0_216 = arith.constant 0 : index
    %175 = vector.load %arg10[%c0_215, %c0_216] : memref<32x8xf32, #tpu.memory_space<vmem>>, vector<32x8xf32>
    %cst_217 = arith.constant 0.000000e+00 : f32
    %176 = vector.broadcast %cst_217 : f32 to vector<32x8xf32>
    %177 = arith.maximumf %175, %176 : vector<32x8xf32>
    %178 = vector.shape_cast %177 : vector<32x8xf32> to vector<8x4x8xf32>
    %179 = vector.shape_cast %178 : vector<8x4x8xf32> to vector<4x2x4x8xf32>
    %180 = arith.truncf %179 : vector<4x2x4x8xf32> to vector<4x2x4x8xbf16>
    %181 = vector.extract_strided_slice %174 {offsets = [0, 0, 0, 0], sizes = [4, 1, 4, 8], strides = [1, 1, 1, 1]} : vector<4x2x4x8xbf16> to vector<4x1x4x8xbf16>
    %182 = vector.shape_cast %181 : vector<4x1x4x8xbf16> to vector<4x4x8xbf16>
    %c3_218 = arith.constant 3 : index
    %c0_219 = arith.constant 0 : index
    %c0_220 = arith.constant 0 : index
    %c0_221 = arith.constant 0 : index
    %183 = vector.load %arg11[%c3_218, %c0_219, %c0_220, %c0_221] : memref<4x5x5x8xbf16, #tpu.memory_space<vmem>>, vector<1x4x4x8xbf16>
    %184 = vector.shape_cast %183 : vector<1x4x4x8xbf16> to vector<4x4x8xbf16>
    %185 = vector.shape_cast %182 : vector<4x4x8xbf16> to vector<1x4x4x8xbf16>
    tpu.vector_store %arg11[%c3_218, %c0_219, %c0_220, %c0_221], %185 {strides = array<i32>} : memref<4x5x5x8xbf16, #tpu.memory_space<vmem>>, vector<1x4x4x8xbf16>,
    %186 = vector.extract_strided_slice %174 {offsets = [0, 1, 0, 0], sizes = [4, 1, 4, 8], strides = [1, 1, 1, 1]} : vector<4x2x4x8xbf16> to vector<4x1x4x8xbf16>
    %187 = vector.shape_cast %186 : vector<4x1x4x8xbf16> to vector<4x4x8xbf16>
    %c1_222 = arith.constant 1 : index
    %c1_223 = arith.constant 1 : index
    %c0_224 = arith.constant 0 : index
    %c0_225 = arith.constant 0 : index
    %188 = vector.load %arg11[%c1_222, %c1_223, %c0_224, %c0_225] : memref<4x5x5x8xbf16, #tpu.memory_space<vmem>>, vector<1x4x4x8xbf16>
    %189 = vector.shape_cast %188 : vector<1x4x4x8xbf16> to vector<4x4x8xbf16>
    %190 = vector.shape_cast %187 : vector<4x4x8xbf16> to vector<1x4x4x8xbf16>
    tpu.vector_store %arg11[%c1_222, %c1_223, %c0_224, %c0_225], %190 {strides = array<i32>} : memref<4x5x5x8xbf16, #tpu.memory_space<vmem>>, vector<1x4x4x8xbf16>,
    %191 = vector.extract_strided_slice %180 {offsets = [0, 0, 0, 0], sizes = [4, 1, 4, 8], strides = [1, 1, 1, 1]} : vector<4x2x4x8xbf16> to vector<4x1x4x8xbf16>
    %192 = vector.shape_cast %191 : vector<4x1x4x8xbf16> to vector<4x4x8xbf16>
    %c2_226 = arith.constant 2 : index
    %c0_227 = arith.constant 0 : index
    %c1_228 = arith.constant 1 : index
    %c0_229 = arith.constant 0 : index
    %193 = vector.load %arg11[%c2_226, %c0_227, %c1_228, %c0_229] : memref<4x5x5x8xbf16, #tpu.memory_space<vmem>>, vector<1x4x4x8xbf16>
    %194 = vector.shape_cast %193 : vector<1x4x4x8xbf16> to vector<4x4x8xbf16>
    %195 = vector.shape_cast %192 : vector<4x4x8xbf16> to vector<1x4x4x8xbf16>
    tpu.vector_store %arg11[%c2_226, %c0_227, %c1_228, %c0_229], %195 {strides = array<i32>} : memref<4x5x5x8xbf16, #tpu.memory_space<vmem>>, vector<1x4x4x8xbf16>,
    %196 = vector.extract_strided_slice %180 {offsets = [0, 1, 0, 0], sizes = [4, 1, 4, 8], strides = [1, 1, 1, 1]} : vector<4x2x4x8xbf16> to vector<4x1x4x8xbf16>
    %197 = vector.shape_cast %196 : vector<4x1x4x8xbf16> to vector<4x4x8xbf16>
    %c0_230 = arith.constant 0 : index
    %c1_231 = arith.constant 1 : index
    %c1_232 = arith.constant 1 : index
    %c0_233 = arith.constant 0 : index
    %198 = vector.load %arg11[%c0_230, %c1_231, %c1_232, %c0_233] : memref<4x5x5x8xbf16, #tpu.memory_space<vmem>>, vector<1x4x4x8xbf16>
    %199 = vector.shape_cast %198 : vector<1x4x4x8xbf16> to vector<4x4x8xbf16>
    %200 = vector.shape_cast %197 : vector<4x4x8xbf16> to vector<1x4x4x8xbf16>
    tpu.vector_store %arg11[%c0_230, %c1_231, %c1_232, %c0_233], %200 {strides = array<i32>} : memref<4x5x5x8xbf16, #tpu.memory_space<vmem>>, vector<1x4x4x8xbf16>,
    %cst_234 = arith.constant 0.000000e+00 : f32
    %201 = vector.broadcast %cst_234 : f32 to vector<16x8xf32>
    %c0_235 = arith.constant 0 : index
    %c0_236 = arith.constant 0 : index
    %202 = vector.load %arg12[%c0_235, %c0_236] : memref<16x8xf32, #tpu.memory_space<vmem>>, vector<16x8xf32>
    tpu.vector_store %arg12[%c0_235, %c0_236], %201 {strides = array<i32>} : memref<16x8xf32, #tpu.memory_space<vmem>>, vector<16x8xf32>,
    %c0_237 = arith.constant 0 : index
    %c0_238 = arith.constant 0 : index
    %c0_239 = arith.constant 0 : index
    %203 = vector.load %arg4[%c0_237, %c0_238, %c0_239] : memref<9x8x8xbf16, #tpu.memory_space<vmem>>, vector<1x8x8xbf16>
    %204 = vector.shape_cast %203 : vector<1x8x8xbf16> to vector<8x8xbf16>
    %c0_240 = arith.constant 0 : index
    %c0_241 = arith.constant 0 : index
    %c0_242 = arith.constant 0 : index
    %c0_243 = arith.constant 0 : index
    %205 = vector.load %arg11[%c0_240, %c0_241, %c0_242, %c0_243] : memref<4x5x5x8xbf16, #tpu.memory_space<vmem>>, vector<1x4x4x8xbf16>
    %206 = vector.shape_cast %205 : vector<1x4x4x8xbf16> to vector<4x4x8xbf16>
    %207 = vector.shape_cast %206 : vector<4x4x8xbf16> to vector<16x8xbf16>
    %c0_244 = arith.constant 0 : index
    %c0_245 = arith.constant 0 : index
    %208 = vector.load %arg12[%c0_244, %c0_245] : memref<16x8xf32, #tpu.memory_space<vmem>>, vector<16x8xf32>
    %cst_246 = arith.constant dense<0.000000e+00> : vector<16x8xf32>
    %209 = tpu.matmul %207, %204, %cst_246 {dimension_numbers = #tpu.dot_dimension_numbers<[1], [0], [0], [1], [0, 0, 1, 1], [], []>} : vector<16x8xbf16>, vector<8x8xbf16>, vector<16x8xf32> -> vector<16x8xf32>
    %210 = arith.addf %208, %209 : vector<16x8xf32>
    %c0_247 = arith.constant 0 : index
    %c0_248 = arith.constant 0 : index
    %211 = vector.load %arg12[%c0_247, %c0_248] : memref<16x8xf32, #tpu.memory_space<vmem>>, vector<16x8xf32>
    tpu.vector_store %arg12[%c0_247, %c0_248], %210 {strides = array<i32>} : memref<16x8xf32, #tpu.memory_space<vmem>>, vector<16x8xf32>,
    %c1_249 = arith.constant 1 : index
    %c0_250 = arith.constant 0 : index
    %c0_251 = arith.constant 0 : index
    %212 = vector.load %arg4[%c1_249, %c0_250, %c0_251] : memref<9x8x8xbf16, #tpu.memory_space<vmem>>, vector<1x8x8xbf16>
    %213 = vector.shape_cast %212 : vector<1x8x8xbf16> to vector<8x8xbf16>
    %c1_252 = arith.constant 1 : index
    %c0_253 = arith.constant 0 : index
    %c0_254 = arith.constant 0 : index
    %c0_255 = arith.constant 0 : index
    %214 = vector.load %arg11[%c1_252, %c0_253, %c0_254, %c0_255] : memref<4x5x5x8xbf16, #tpu.memory_space<vmem>>, vector<1x4x4x8xbf16>
    %215 = vector.shape_cast %214 : vector<1x4x4x8xbf16> to vector<4x4x8xbf16>
    %216 = vector.shape_cast %215 : vector<4x4x8xbf16> to vector<16x8xbf16>
    %c0_256 = arith.constant 0 : index
    %c0_257 = arith.constant 0 : index
    %217 = vector.load %arg12[%c0_256, %c0_257] : memref<16x8xf32, #tpu.memory_space<vmem>>, vector<16x8xf32>
    %cst_258 = arith.constant dense<0.000000e+00> : vector<16x8xf32>
    %218 = tpu.matmul %216, %213, %cst_258 {dimension_numbers = #tpu.dot_dimension_numbers<[1], [0], [0], [1], [0, 0, 1, 1], [], []>} : vector<16x8xbf16>, vector<8x8xbf16>, vector<16x8xf32> -> vector<16x8xf32>
    %219 = arith.addf %217, %218 : vector<16x8xf32>
    %c0_259 = arith.constant 0 : index
    %c0_260 = arith.constant 0 : index
    %220 = vector.load %arg12[%c0_259, %c0_260] : memref<16x8xf32, #tpu.memory_space<vmem>>, vector<16x8xf32>
    tpu.vector_store %arg12[%c0_259, %c0_260], %219 {strides = array<i32>} : memref<16x8xf32, #tpu.memory_space<vmem>>, vector<16x8xf32>,
    %c2_261 = arith.constant 2 : index
    %c0_262 = arith.constant 0 : index
    %c0_263 = arith.constant 0 : index
    %221 = vector.load %arg4[%c2_261, %c0_262, %c0_263] : memref<9x8x8xbf16, #tpu.memory_space<vmem>>, vector<1x8x8xbf16>
    %222 = vector.shape_cast %221 : vector<1x8x8xbf16> to vector<8x8xbf16>
    %c0_264 = arith.constant 0 : index
    %c0_265 = arith.constant 0 : index
    %c1_266 = arith.constant 1 : index
    %c0_267 = arith.constant 0 : index
    %223 = vector.load %arg11[%c0_264, %c0_265, %c1_266, %c0_267] : memref<4x5x5x8xbf16, #tpu.memory_space<vmem>>, vector<1x4x4x8xbf16>
    %224 = vector.shape_cast %223 : vector<1x4x4x8xbf16> to vector<4x4x8xbf16>
    %225 = vector.shape_cast %224 : vector<4x4x8xbf16> to vector<16x8xbf16>
    %c0_268 = arith.constant 0 : index
    %c0_269 = arith.constant 0 : index
    %226 = vector.load %arg12[%c0_268, %c0_269] : memref<16x8xf32, #tpu.memory_space<vmem>>, vector<16x8xf32>
    %cst_270 = arith.constant dense<0.000000e+00> : vector<16x8xf32>
    %227 = tpu.matmul %225, %222, %cst_270 {dimension_numbers = #tpu.dot_dimension_numbers<[1], [0], [0], [1], [0, 0, 1, 1], [], []>} : vector<16x8xbf16>, vector<8x8xbf16>, vector<16x8xf32> -> vector<16x8xf32>
    %228 = arith.addf %226, %227 : vector<16x8xf32>
    %c0_271 = arith.constant 0 : index
    %c0_272 = arith.constant 0 : index
    %229 = vector.load %arg12[%c0_271, %c0_272] : memref<16x8xf32, #tpu.memory_space<vmem>>, vector<16x8xf32>
    tpu.vector_store %arg12[%c0_271, %c0_272], %228 {strides = array<i32>} : memref<16x8xf32, #tpu.memory_space<vmem>>, vector<16x8xf32>,
    %c3_273 = arith.constant 3 : index
    %c0_274 = arith.constant 0 : index
    %c0_275 = arith.constant 0 : index
    %230 = vector.load %arg4[%c3_273, %c0_274, %c0_275] : memref<9x8x8xbf16, #tpu.memory_space<vmem>>, vector<1x8x8xbf16>
    %231 = vector.shape_cast %230 : vector<1x8x8xbf16> to vector<8x8xbf16>
    %c2_276 = arith.constant 2 : index
    %c0_277 = arith.constant 0 : index
    %c0_278 = arith.constant 0 : index
    %c0_279 = arith.constant 0 : index
    %232 = vector.load %arg11[%c2_276, %c0_277, %c0_278, %c0_279] : memref<4x5x5x8xbf16, #tpu.memory_space<vmem>>, vector<1x4x4x8xbf16>
    %233 = vector.shape_cast %232 : vector<1x4x4x8xbf16> to vector<4x4x8xbf16>
    %234 = vector.shape_cast %233 : vector<4x4x8xbf16> to vector<16x8xbf16>
    %c0_280 = arith.constant 0 : index
    %c0_281 = arith.constant 0 : index
    %235 = vector.load %arg12[%c0_280, %c0_281] : memref<16x8xf32, #tpu.memory_space<vmem>>, vector<16x8xf32>
    %cst_282 = arith.constant dense<0.000000e+00> : vector<16x8xf32>
    %236 = tpu.matmul %234, %231, %cst_282 {dimension_numbers = #tpu.dot_dimension_numbers<[1], [0], [0], [1], [0, 0, 1, 1], [], []>} : vector<16x8xbf16>, vector<8x8xbf16>, vector<16x8xf32> -> vector<16x8xf32>
    %237 = arith.addf %235, %236 : vector<16x8xf32>
    %c0_283 = arith.constant 0 : index
    %c0_284 = arith.constant 0 : index
    %238 = vector.load %arg12[%c0_283, %c0_284] : memref<16x8xf32, #tpu.memory_space<vmem>>, vector<16x8xf32>
    tpu.vector_store %arg12[%c0_283, %c0_284], %237 {strides = array<i32>} : memref<16x8xf32, #tpu.memory_space<vmem>>, vector<16x8xf32>,
    %c4_285 = arith.constant 4 : index
    %c0_286 = arith.constant 0 : index
    %c0_287 = arith.constant 0 : index
    %239 = vector.load %arg4[%c4_285, %c0_286, %c0_287] : memref<9x8x8xbf16, #tpu.memory_space<vmem>>, vector<1x8x8xbf16>
    %240 = vector.shape_cast %239 : vector<1x8x8xbf16> to vector<8x8xbf16>
    %c3_288 = arith.constant 3 : index
    %c0_289 = arith.constant 0 : index
    %c0_290 = arith.constant 0 : index
    %c0_291 = arith.constant 0 : index
    %241 = vector.load %arg11[%c3_288, %c0_289, %c0_290, %c0_291] : memref<4x5x5x8xbf16, #tpu.memory_space<vmem>>, vector<1x4x4x8xbf16>
    %242 = vector.shape_cast %241 : vector<1x4x4x8xbf16> to vector<4x4x8xbf16>
    %243 = vector.shape_cast %242 : vector<4x4x8xbf16> to vector<16x8xbf16>
    %c0_292 = arith.constant 0 : index
    %c0_293 = arith.constant 0 : index
    %244 = vector.load %arg12[%c0_292, %c0_293] : memref<16x8xf32, #tpu.memory_space<vmem>>, vector<16x8xf32>
    %cst_294 = arith.constant dense<0.000000e+00> : vector<16x8xf32>
    %245 = tpu.matmul %243, %240, %cst_294 {dimension_numbers = #tpu.dot_dimension_numbers<[1], [0], [0], [1], [0, 0, 1, 1], [], []>} : vector<16x8xbf16>, vector<8x8xbf16>, vector<16x8xf32> -> vector<16x8xf32>
    %246 = arith.addf %244, %245 : vector<16x8xf32>
    %c0_295 = arith.constant 0 : index
    %c0_296 = arith.constant 0 : index
    %247 = vector.load %arg12[%c0_295, %c0_296] : memref<16x8xf32, #tpu.memory_space<vmem>>, vector<16x8xf32>
    tpu.vector_store %arg12[%c0_295, %c0_296], %246 {strides = array<i32>} : memref<16x8xf32, #tpu.memory_space<vmem>>, vector<16x8xf32>,
    %c5_297 = arith.constant 5 : index
    %c0_298 = arith.constant 0 : index
    %c0_299 = arith.constant 0 : index
    %248 = vector.load %arg4[%c5_297, %c0_298, %c0_299] : memref<9x8x8xbf16, #tpu.memory_space<vmem>>, vector<1x8x8xbf16>
    %249 = vector.shape_cast %248 : vector<1x8x8xbf16> to vector<8x8xbf16>
    %c2_300 = arith.constant 2 : index
    %c0_301 = arith.constant 0 : index
    %c1_302 = arith.constant 1 : index
    %c0_303 = arith.constant 0 : index
    %250 = vector.load %arg11[%c2_300, %c0_301, %c1_302, %c0_303] : memref<4x5x5x8xbf16, #tpu.memory_space<vmem>>, vector<1x4x4x8xbf16>
    %251 = vector.shape_cast %250 : vector<1x4x4x8xbf16> to vector<4x4x8xbf16>
    %252 = vector.shape_cast %251 : vector<4x4x8xbf16> to vector<16x8xbf16>
    %c0_304 = arith.constant 0 : index
    %c0_305 = arith.constant 0 : index
    %253 = vector.load %arg12[%c0_304, %c0_305] : memref<16x8xf32, #tpu.memory_space<vmem>>, vector<16x8xf32>
    %cst_306 = arith.constant dense<0.000000e+00> : vector<16x8xf32>
    %254 = tpu.matmul %252, %249, %cst_306 {dimension_numbers = #tpu.dot_dimension_numbers<[1], [0], [0], [1], [0, 0, 1, 1], [], []>} : vector<16x8xbf16>, vector<8x8xbf16>, vector<16x8xf32> -> vector<16x8xf32>
    %255 = arith.addf %253, %254 : vector<16x8xf32>
    %c0_307 = arith.constant 0 : index
    %c0_308 = arith.constant 0 : index
    %256 = vector.load %arg12[%c0_307, %c0_308] : memref<16x8xf32, #tpu.memory_space<vmem>>, vector<16x8xf32>
    tpu.vector_store %arg12[%c0_307, %c0_308], %255 {strides = array<i32>} : memref<16x8xf32, #tpu.memory_space<vmem>>, vector<16x8xf32>,
    %c6_309 = arith.constant 6 : index
    %c0_310 = arith.constant 0 : index
    %c0_311 = arith.constant 0 : index
    %257 = vector.load %arg4[%c6_309, %c0_310, %c0_311] : memref<9x8x8xbf16, #tpu.memory_space<vmem>>, vector<1x8x8xbf16>
    %258 = vector.shape_cast %257 : vector<1x8x8xbf16> to vector<8x8xbf16>
    %c0_312 = arith.constant 0 : index
    %c1_313 = arith.constant 1 : index
    %c0_314 = arith.constant 0 : index
    %c0_315 = arith.constant 0 : index
    %259 = vector.load %arg11[%c0_312, %c1_313, %c0_314, %c0_315] : memref<4x5x5x8xbf16, #tpu.memory_space<vmem>>, vector<1x4x4x8xbf16>
    %260 = vector.shape_cast %259 : vector<1x4x4x8xbf16> to vector<4x4x8xbf16>
    %261 = vector.shape_cast %260 : vector<4x4x8xbf16> to vector<16x8xbf16>
    %c0_316 = arith.constant 0 : index
    %c0_317 = arith.constant 0 : index
    %262 = vector.load %arg12[%c0_316, %c0_317] : memref<16x8xf32, #tpu.memory_space<vmem>>, vector<16x8xf32>
    %cst_318 = arith.constant dense<0.000000e+00> : vector<16x8xf32>
    %263 = tpu.matmul %261, %258, %cst_318 {dimension_numbers = #tpu.dot_dimension_numbers<[1], [0], [0], [1], [0, 0, 1, 1], [], []>} : vector<16x8xbf16>, vector<8x8xbf16>, vector<16x8xf32> -> vector<16x8xf32>
    %264 = arith.addf %262, %263 : vector<16x8xf32>
    %c0_319 = arith.constant 0 : index
    %c0_320 = arith.constant 0 : index
    %265 = vector.load %arg12[%c0_319, %c0_320] : memref<16x8xf32, #tpu.memory_space<vmem>>, vector<16x8xf32>
    tpu.vector_store %arg12[%c0_319, %c0_320], %264 {strides = array<i32>} : memref<16x8xf32, #tpu.memory_space<vmem>>, vector<16x8xf32>,
    %c7_321 = arith.constant 7 : index
    %c0_322 = arith.constant 0 : index
    %c0_323 = arith.constant 0 : index
    %266 = vector.load %arg4[%c7_321, %c0_322, %c0_323] : memref<9x8x8xbf16, #tpu.memory_space<vmem>>, vector<1x8x8xbf16>
    %267 = vector.shape_cast %266 : vector<1x8x8xbf16> to vector<8x8xbf16>
    %c1_324 = arith.constant 1 : index
    %c1_325 = arith.constant 1 : index
    %c0_326 = arith.constant 0 : index
    %c0_327 = arith.constant 0 : index
    %268 = vector.load %arg11[%c1_324, %c1_325, %c0_326, %c0_327] : memref<4x5x5x8xbf16, #tpu.memory_space<vmem>>, vector<1x4x4x8xbf16>
    %269 = vector.shape_cast %268 : vector<1x4x4x8xbf16> to vector<4x4x8xbf16>
    %270 = vector.shape_cast %269 : vector<4x4x8xbf16> to vector<16x8xbf16>
    %c0_328 = arith.constant 0 : index
    %c0_329 = arith.constant 0 : index
    %271 = vector.load %arg12[%c0_328, %c0_329] : memref<16x8xf32, #tpu.memory_space<vmem>>, vector<16x8xf32>
    %cst_330 = arith.constant dense<0.000000e+00> : vector<16x8xf32>
    %272 = tpu.matmul %270, %267, %cst_330 {dimension_numbers = #tpu.dot_dimension_numbers<[1], [0], [0], [1], [0, 0, 1, 1], [], []>} : vector<16x8xbf16>, vector<8x8xbf16>, vector<16x8xf32> -> vector<16x8xf32>
    %273 = arith.addf %271, %272 : vector<16x8xf32>
    %c0_331 = arith.constant 0 : index
    %c0_332 = arith.constant 0 : index
    %274 = vector.load %arg12[%c0_331, %c0_332] : memref<16x8xf32, #tpu.memory_space<vmem>>, vector<16x8xf32>
    tpu.vector_store %arg12[%c0_331, %c0_332], %273 {strides = array<i32>} : memref<16x8xf32, #tpu.memory_space<vmem>>, vector<16x8xf32>,
    %c8_333 = arith.constant 8 : index
    %c0_334 = arith.constant 0 : index
    %c0_335 = arith.constant 0 : index
    %275 = vector.load %arg4[%c8_333, %c0_334, %c0_335] : memref<9x8x8xbf16, #tpu.memory_space<vmem>>, vector<1x8x8xbf16>
    %276 = vector.shape_cast %275 : vector<1x8x8xbf16> to vector<8x8xbf16>
    %c0_336 = arith.constant 0 : index
    %c1_337 = arith.constant 1 : index
    %c1_338 = arith.constant 1 : index
    %c0_339 = arith.constant 0 : index
    %277 = vector.load %arg11[%c0_336, %c1_337, %c1_338, %c0_339] : memref<4x5x5x8xbf16, #tpu.memory_space<vmem>>, vector<1x4x4x8xbf16>
    %278 = vector.shape_cast %277 : vector<1x4x4x8xbf16> to vector<4x4x8xbf16>
    %279 = vector.shape_cast %278 : vector<4x4x8xbf16> to vector<16x8xbf16>
    %c0_340 = arith.constant 0 : index
    %c0_341 = arith.constant 0 : index
    %280 = vector.load %arg12[%c0_340, %c0_341] : memref<16x8xf32, #tpu.memory_space<vmem>>, vector<16x8xf32>
    %cst_342 = arith.constant dense<0.000000e+00> : vector<16x8xf32>
    %281 = tpu.matmul %279, %276, %cst_342 {dimension_numbers = #tpu.dot_dimension_numbers<[1], [0], [0], [1], [0, 0, 1, 1], [], []>} : vector<16x8xbf16>, vector<8x8xbf16>, vector<16x8xf32> -> vector<16x8xf32>
    %282 = arith.addf %280, %281 : vector<16x8xf32>
    %c0_343 = arith.constant 0 : index
    %c0_344 = arith.constant 0 : index
    %283 = vector.load %arg12[%c0_343, %c0_344] : memref<16x8xf32, #tpu.memory_space<vmem>>, vector<16x8xf32>
    tpu.vector_store %arg12[%c0_343, %c0_344], %282 {strides = array<i32>} : memref<16x8xf32, #tpu.memory_space<vmem>>, vector<16x8xf32>,
    %c0_345 = arith.constant 0 : index
    %c0_346 = arith.constant 0 : index
    %284 = vector.load %arg12[%c0_345, %c0_346] : memref<16x8xf32, #tpu.memory_space<vmem>>, vector<16x8xf32>
    %c0_347 = arith.constant 0 : index
    %c0_348 = arith.constant 0 : index
    %285 = vector.load %arg5[%c0_347, %c0_348] : memref<1x8xf32, #tpu.memory_space<vmem>>, vector<1x8xf32>
    %286 = vector.broadcast %285 : vector<1x8xf32> to vector<16x8xf32>
    %287 = arith.addf %284, %286 : vector<16x8xf32>
    %288 = vector.shape_cast %287 : vector<16x8xf32> to vector<4x4x8xf32>
    %c0_349 = arith.constant 0 : index
    %c0_350 = arith.constant 0 : index
    %c0_351 = arith.constant 0 : index
    %c0_352 = arith.constant 0 : index
    %289 = vector.load %arg8[%c0_349, %c0_350, %c0_351, %c0_352] : memref<1x4x4x8xf32, #tpu.memory_space<vmem>>, vector<1x4x4x8xf32>
    %290 = vector.shape_cast %289 : vector<1x4x4x8xf32> to vector<4x4x8xf32>
    %291 = vector.shape_cast %288 : vector<4x4x8xf32> to vector<1x4x4x8xf32>
    tpu.vector_store %arg8[%c0_349, %c0_350, %c0_351, %c0_352], %291 {strides = array<i32>} : memref<1x4x4x8xf32, #tpu.memory_space<vmem>>, vector<1x4x4x8xf32>,
    return
  }
  func.func @transform_0(%arg0: i32) -> (i32, i32, i32, i32) {
    %c0_i32 = arith.constant 0 : i32
    %c0_i32_0 = arith.constant 0 : i32
    %c0_i32_1 = arith.constant 0 : i32
    %c0_i32_2 = arith.constant 0 : i32
    return %arg0, %c0_i32, %c0_i32_0, %c0_i32_1 : i32, i32, i32, i32
  }
  func.func @transform_1(%arg0: i32) -> (i32, i32, i32) {
    %c0_i32 = arith.constant 0 : i32
    %c0_i32_0 = arith.constant 0 : i32
    %c0_i32_1 = arith.constant 0 : i32
    %c0_i32_2 = arith.constant 0 : i32
    return %c0_i32, %c0_i32_0, %c0_i32_1 : i32, i32, i32
  }
  func.func @transform_2(%arg0: i32) -> (i32, i32) {
    %c0_i32 = arith.constant 0 : i32
    %c0_i32_0 = arith.constant 0 : i32
    %c0_i32_1 = arith.constant 0 : i32
    return %c0_i32, %c0_i32_0 : i32, i32
  }
  func.func @transform_3(%arg0: i32) -> (i32, i32, i32) {
    %c0_i32 = arith.constant 0 : i32
    %c0_i32_0 = arith.constant 0 : i32
    %c0_i32_1 = arith.constant 0 : i32
    %c0_i32_2 = arith.constant 0 : i32
    return %c0_i32, %c0_i32_0, %c0_i32_1 : i32, i32, i32
  }
  func.func @transform_4(%arg0: i32) -> (i32, i32) {
    %c0_i32 = arith.constant 0 : i32
    %c0_i32_0 = arith.constant 0 : i32
    %c0_i32_1 = arith.constant 0 : i32
    return %c0_i32, %c0_i32_0 : i32, i32
  }
  func.func @transform_5(%arg0: i32) -> (i32, i32, i32, i32) {
    %c0_i32 = arith.constant 0 : i32
    %c0_i32_0 = arith.constant 0 : i32
    %c0_i32_1 = arith.constant 0 : i32
    %c0_i32_2 = arith.constant 0 : i32
    return %arg0, %c0_i32, %c0_i32_0, %c0_i32_1 : i32, i32, i32, i32
  }
  func.func @transform_6(%arg0: i32) -> (i32, i32, i32, i32) {
    %c0_i32 = arith.constant 0 : i32
    %c0_i32_0 = arith.constant 0 : i32
    %c0_i32_1 = arith.constant 0 : i32
    %c0_i32_2 = arith.constant 0 : i32
    return %arg0, %c0_i32, %c0_i32_0, %c0_i32_1 : i32, i32, i32, i32
  }
  func.func @transform_7(%arg0: i32) -> (i32, i32, i32, i32) {
    %c0_i32 = arith.constant 0 : i32
    %c0_i32_0 = arith.constant 0 : i32
    %c0_i32_1 = arith.constant 0 : i32
    %c0_i32_2 = arith.constant 0 : i32
    return %arg0, %c0_i32, %c0_i32_0, %c0_i32_1 : i32, i32, i32, i32
  }
}

</mosaic_0001>

<llo_original>
// kernel: last_level_p6p7_fused.1
$region0: #{last_level_p6p7_fused.1}
  #allocation0 [shape = 'u32[]', space=smem, size = 0x4, offset = 0x4, fixed_abs, tag = 'smem constant byte address 0x4 - core index']
  #allocation1 [shape = 'u32[144,128]{1,0:T(1,128)}', space=vmem, size = 0x12000, scoped, tag = 'internal scratch']
  #allocation2 [shape = 'f32[32,8]{1,0:T(8,128)}', space=vmem, size = 0x4000, scoped, tag = 'scratch operand']
  #allocation3 [shape = 'f32[32,8]{1,0:T(8,128)}', space=vmem, size = 0x4000, scoped, tag = 'scratch operand']
  #allocation4 [shape = 'bf16[4,5,5,8]{3,2,1,0:T(8,128)(2,1)}', space=vmem, size = 0xa000, scoped, tag = 'scratch operand']
  #allocation5 [shape = 'f32[16,8]{1,0:T(8,128)}', space=vmem, size = 0x2000, scoped, tag = 'scratch operand']
  %s0 = inlined_call_operand.vmem [shape: bf16[16,9,5,8], index: 0, kind: input, shape index: {}]
  %s1 = inlined_call_operand.vmem [shape: bf16[9,8,8], index: 1, kind: input, shape index: {}]
  %s2 = inlined_call_operand.vmem [shape: f32[1,8], index: 2, kind: input, shape index: {}]
  %s3 = inlined_call_operand.vmem [shape: bf16[9,8,8], index: 3, kind: input, shape index: {}]
  %s4 = inlined_call_operand.vmem [shape: f32[1,8], index: 4, kind: input, shape index: {}]
  %s5 = inlined_call_operand.vmem [shape: f32[2,8,4,8], index: 5, kind: output, shape index: {0}]
  %s6 = inlined_call_operand.vmem [shape: f32[2,8,4,8], index: 6, kind: output, shape index: {1}]
  %s7 = inlined_call_operand.hbm [shape: f32[2,4,4,8], index: 7, kind: output, shape index: {2}]
  %8 = xla_tuple %s5, %s6, %s7
  %s9 = sld [smem:[#allocation0]]
  $region69: #{last_level_p6p7_fused.1} parent=0
    _
  %s11 = ssub.s32 1, %s9
  %s12 = scalar_select 0, %s11, %s9
  $region1: #{last_level_p6p7_fused.1} parent=0
    #allocation6 [shape = 'u8[16384]{0}', space=vmem, size = 0x4000, scoped, tag = 'output window, operand 2']
    #allocation7 [shape = 's32[2]{0}', space=sflag, size = 0x8, scoped, tag = 'scoped memory for last_level_p6p7_fused.1']
    %13 = vsyncpa [#allocation7], 0
    %s14 = scalar_lea.sflag [#allocation7], 1
    %15 = vsyncpa %s14, 0
    loop: start=0, step=1, limit=4
    $region2: #{last_level_p6p7_fused.1} parent=1 // loop_pre_header
      _
    $region3: #{last_level_p6p7_fused.1} parent=1 // loop_header
      %s17 = sphi 0, %s21
      %p18 = scmp.ge.s32.totalorder %s17, 4
      %s27 = sphi 0, %s29
      %s30 = sphi 0, %s27
      %s31 = sphi 0, %s30
      %s47 = sphi 0, %s31
      %s51 = sphi 0, %s51
      %s53 = sphi 0, %s51
      %s54 = sphi 0, %s53
      %s68 = sphi 0, %s54
      %s72 = sphi 0, %s72
      %s74 = sphi 0, %s72
      %s75 = sphi 0, %s74
      %s89 = sphi 0, %s75
      %s93 = sphi 0, %s93
      %s95 = sphi 0, %s93
      %s96 = sphi 0, %s95
      %s110 = sphi 0, %s96
      %s114 = sphi 0, %s114
      %s116 = sphi 0, %s114
      %s117 = sphi 0, %s116
      %s131 = sphi 0, %s117
      %s137 = sphi 0, %s139
      %s140 = sphi 0, %s137
      %s141 = sphi 0, %s140
      %s157 = sphi 0, %s141
      %s163 = sphi 0, %s165
      %s166 = sphi 0, %s163
      %s167 = sphi 0, %s166
      %s183 = sphi 0, %s167
      %s189 = sphi 0, %s191
      %s192 = sphi 0, %s189
      %s193 = sphi 0, %s192
      %s209 = sphi 0, %s193
    $region4: #{last_level_p6p7_fused.1} parent=1 // loop_header_branch
      %20 = sbr.rel (%p18) target = $region8
    $region5: #{last_level_p6p7_fused.1} parent=1 // loop_body
      %s22 = ssub.s32 %s17, 1
      %s23 = ssub.s32 %s17, 2
      %s24 = sadd.s32 %s17, 1
      %s25 = ssub.s32 %s17, %s24
      %p26 = scmp.eq.s32.totalorder %s25, 0
      %s28 = sadd.s32 %s27, 1
      %s29 = scalar_select %p26, %s27, %s28
      %p32 = pneg %p26
      %p33 = scmp.eq.s32.totalorder %s17, 1
      %p34 = por %p32, %p33
      %p35 = scmp.ne.s32.totalorder %s27, %s30
      %p36 = scmp.eq.s32.totalorder %s17, 0
      %p37 = por %p35, %p36
      %p38 = scmp.ne.s32.totalorder %s27, %s30
      %p39 = scmp.eq.s32.totalorder %s22, 1
      %p40 = por %p38, %p39
      %p41 = scmp.ne.s32.totalorder %s30, %s31
      %p42 = scmp.eq.s32.totalorder %s22, 0
      %p43 = por %p41, %p42
      %p44 = scmp.ne.s32.totalorder %s30, %s31
      %p45 = scmp.eq.s32.totalorder %s23, 1
      %p46 = por %p44, %p45
      %p48 = scmp.ne.s32.totalorder %s31, %s47
      %p49 = scmp.eq.s32.totalorder %s23, 0
      %p50 = por %p48, %p49
      %s52 = sadd.s32 %s51, 1
      %p55 = scmp.eq.s32.totalorder %s17, 1
      %p56 = scmp.ne.s32.totalorder %s51, %s53
      %p57 = scmp.eq.s32.totalorder %s17, 0
      %p58 = por %p56, %p57
      %p59 = scmp.ne.s32.totalorder %s51, %s53
      %p60 = scmp.eq.s32.totalorder %s22, 1
      %p61 = por %p59, %p60
      %p62 = scmp.ne.s32.totalorder %s53, %s54
      %p63 = scmp.eq.s32.totalorder %s22, 0
      %p64 = por %p62, %p63
      %p65 = scmp.ne.s32.totalorder %s53, %s54
      %p66 = scmp.eq.s32.totalorder %s23, 1
      %p67 = por %p65, %p66
      %p69 = scmp.ne.s32.totalorder %s54, %s68
      %p70 = scmp.eq.s32.totalorder %s23, 0
      %p71 = por %p69, %p70
      %s73 = sadd.s32 %s72, 1
      %p76 = scmp.eq.s32.totalorder %s17, 1
      %p77 = scmp.ne.s32.totalorder %s72, %s74
      %p78 = scmp.eq.s32.totalorder %s17, 0
      %p79 = por %p77, %p78
      %p80 = scmp.ne.s32.totalorder %s72, %s74
      %p81 = scmp.eq.s32.totalorder %s22, 1
      %p82 = por %p80, %p81
      %p83 = scmp.ne.s32.totalorder %s74, %s75
      %p84 = scmp.eq.s32.totalorder %s22, 0
      %p85 = por %p83, %p84
      %p86 = scmp.ne.s32.totalorder %s74, %s75
      %p87 = scmp.eq.s32.totalorder %s23, 1
      %p88 = por %p86, %p87
      %p90 = scmp.ne.s32.totalorder %s75, %s89
      %p91 = scmp.eq.s32.totalorder %s23, 0
      %p92 = por %p90, %p91
      %s94 = sadd.s32 %s93, 1
      %p97 = scmp.eq.s32.totalorder %s17, 1
      %p98 = scmp.ne.s32.totalorder %s93, %s95
      %p99 = scmp.eq.s32.totalorder %s17, 0
      %p100 = por %p98, %p99
      %p101 = scmp.ne.s32.totalorder %s93, %s95
      %p102 = scmp.eq.s32.totalorder %s22, 1
      %p103 = por %p101, %p102
      %p104 = scmp.ne.s32.totalorder %s95, %s96
      %p105 = scmp.eq.s32.totalorder %s22, 0
      %p106 = por %p104, %p105
      %p107 = scmp.ne.s32.totalorder %s95, %s96
      %p108 = scmp.eq.s32.totalorder %s23, 1
      %p109 = por %p107, %p108
      %p111 = scmp.ne.s32.totalorder %s96, %s110
      %p112 = scmp.eq.s32.totalorder %s23, 0
      %p113 = por %p111, %p112
      %s115 = sadd.s32 %s114, 1
      %p118 = scmp.eq.s32.totalorder %s17, 1
      %p119 = scmp.ne.s32.totalorder %s114, %s116
      %p120 = scmp.eq.s32.totalorder %s17, 0
      %p121 = por %p119, %p120
      %p122 = scmp.ne.s32.totalorder %s114, %s116
      %p123 = scmp.eq.s32.totalorder %s22, 1
      %p124 = por %p122, %p123
      %p125 = scmp.ne.s32.totalorder %s116, %s117
      %p126 = scmp.eq.s32.totalorder %s22, 0
      %p127 = por %p125, %p126
      %p128 = scmp.ne.s32.totalorder %s116, %s117
      %p129 = scmp.eq.s32.totalorder %s23, 1
      %p130 = por %p128, %p129
      %p132 = scmp.ne.s32.totalorder %s117, %s131
      %p133 = scmp.eq.s32.totalorder %s23, 0
      %p134 = por %p132, %p133
      %s135 = ssub.s32 %s17, %s24
      %p136 = scmp.eq.s32.totalorder %s135, 0
      %s138 = sadd.s32 %s137, 1
      %s139 = scalar_select %p136, %s137, %s138
      %p142 = pneg %p136
      %p143 = scmp.eq.s32.totalorder %s17, 1
      %p144 = por %p142, %p143
      %p145 = scmp.ne.s32.totalorder %s137, %s140
      %p146 = scmp.eq.s32.totalorder %s17, 0
      %p147 = por %p145, %p146
      %p148 = scmp.ne.s32.totalorder %s137, %s140
      %p149 = scmp.eq.s32.totalorder %s22, 1
      %p150 = por %p148, %p149
      %p151 = scmp.ne.s32.totalorder %s140, %s141
      %p152 = scmp.eq.s32.totalorder %s22, 0
      %p153 = por %p151, %p152
      %p154 = scmp.ne.s32.totalorder %s140, %s141
      %p155 = scmp.eq.s32.totalorder %s23, 1
      %p156 = por %p154, %p155
      %p158 = scmp.ne.s32.totalorder %s141, %s157
      %p159 = scmp.eq.s32.totalorder %s23, 0
      %p160 = por %p158, %p159
      %s161 = ssub.s32 %s17, %s24
      %p162 = scmp.eq.s32.totalorder %s161, 0
      %s164 = sadd.s32 %s163, 1
      %s165 = scalar_select %p162, %s163, %s164
      %p168 = pneg %p162
      %p169 = scmp.eq.s32.totalorder %s17, 1
      %p170 = por %p168, %p169
      %p171 = scmp.ne.s32.totalorder %s163, %s166
      %p172 = scmp.eq.s32.totalorder %s17, 0
      %p173 = por %p171, %p172
      %p174 = scmp.ne.s32.totalorder %s163, %s166
      %p175 = scmp.eq.s32.totalorder %s22, 1
      %p176 = por %p174, %p175
      %p177 = scmp.ne.s32.totalorder %s166, %s167
      %p178 = scmp.eq.s32.totalorder %s22, 0
      %p179 = por %p177, %p178
      %p180 = scmp.ne.s32.totalorder %s166, %s167
      %p181 = scmp.eq.s32.totalorder %s23, 1
      %p182 = por %p180, %p181
      %p184 = scmp.ne.s32.totalorder %s167, %s183
      %p185 = scmp.eq.s32.totalorder %s23, 0
      %p186 = por %p184, %p185
      %s187 = ssub.s32 %s17, %s24
      %p188 = scmp.eq.s32.totalorder %s187, 0
      %s190 = sadd.s32 %s189, 1
      %s191 = scalar_select %p188, %s189, %s190
      %p194 = pneg %p188
      %p195 = scmp.eq.s32.totalorder %s17, 1
      %p196 = por %p194, %p195
      %p197 = scmp.ne.s32.totalorder %s189, %s192
      %p198 = scmp.eq.s32.totalorder %s17, 0
      %p199 = por %p197, %p198
      %p200 = scmp.ne.s32.totalorder %s189, %s192
      %p201 = scmp.eq.s32.totalorder %s22, 1
      %p202 = por %p200, %p201
      %p203 = scmp.ne.s32.totalorder %s192, %s193
      %p204 = scmp.eq.s32.totalorder %s22, 0
      %p205 = por %p203, %p204
      %p206 = scmp.ne.s32.totalorder %s192, %s193
      %p207 = scmp.eq.s32.totalorder %s23, 1
      %p208 = por %p206, %p207
      %p210 = scmp.ne.s32.totalorder %s193, %s209
      %p211 = scmp.eq.s32.totalorder %s23, 0
      %p212 = por %p210, %p211
      %p213 = scmp.le.s32.totalorder 1, %s17
      %p214 = scmp.lt.s32.totalorder %s17, 3
      %p215 = pnand %p213, %p214
      %p216 = pneg %p215
      // Predicated region
      $region9: #{last_level_p6p7_fused.1} parent=5 // pred_check
        _
      $region10: #{last_level_p6p7_fused.1} parent=5 // pred_check_branch
        %218 = sbr.rel (%p215) target = $region12
      $region11: #{last_level_p6p7_fused.1} parent=5 // pred_region
        %s219 = ssub.s32 %s17, 1
        // Predicated region
        $region13: #{last_level_p6p7_fused.1} parent=11 // pred_check
          %p220 = pneg %p64
        $region14: #{last_level_p6p7_fused.1} parent=11 // pred_check_branch
          %222 = sbr.rel (%p220) target = $region16
        $region15: #{last_level_p6p7_fused.1} parent=11 // pred_region
          _
        $region16: #{last_level_p6p7_fused.1} parent=11 // pred_fallthru
          _
        // Predicated region
        $region17: #{last_level_p6p7_fused.1} parent=11 // pred_check
          %p223 = pneg %p85
        $region18: #{last_level_p6p7_fused.1} parent=11 // pred_check_branch
          %225 = sbr.rel (%p223) target = $region20
        $region19: #{last_level_p6p7_fused.1} parent=11 // pred_region
          _
        $region20: #{last_level_p6p7_fused.1} parent=11 // pred_fallthru
          _
        // Predicated region
        $region21: #{last_level_p6p7_fused.1} parent=11 // pred_check
          %p226 = pneg %p106
        $region22: #{last_level_p6p7_fused.1} parent=11 // pred_check_branch
          %228 = sbr.rel (%p226) target = $region24
        $region23: #{last_level_p6p7_fused.1} parent=11 // pred_region
          _
        $region24: #{last_level_p6p7_fused.1} parent=11 // pred_fallthru
          _
        // Predicated region
        $region25: #{last_level_p6p7_fused.1} parent=11 // pred_check
          %p229 = pneg %p127
        $region26: #{last_level_p6p7_fused.1} parent=11 // pred_check_branch
          %231 = sbr.rel (%p229) target = $region28
        $region27: #{last_level_p6p7_fused.1} parent=11 // pred_region
          _
        $region28: #{last_level_p6p7_fused.1} parent=11 // pred_fallthru
          _
      $region12: #{last_level_p6p7_fused.1} parent=5 // pred_fallthru
        _
      %p232 = scmp.lt.s32.totalorder %s17, 2
      // Predicated region
      $region29: #{last_level_p6p7_fused.1} parent=5 // pred_check
        %p233 = pneg %p232
      $region30: #{last_level_p6p7_fused.1} parent=5 // pred_check_branch
        %235 = sbr.rel (%p233) target = $region32
      $region31: #{last_level_p6p7_fused.1} parent=5 // pred_region
        // Predicated region
        $region33: #{last_level_p6p7_fused.1} parent=31 // pred_check
          %p236 = pneg %p37
        $region34: #{last_level_p6p7_fused.1} parent=31 // pred_check_branch
          %238 = sbr.rel (%p236) target = $region36
        $region35: #{last_level_p6p7_fused.1} parent=31 // pred_region
          %s239 = smul.u32 8, %s17
          %p240 = scmp.lt.s32.totalorder %s239, 15
          %s241 = scalar_select %p240, %s239, 15
          %s242 = smul.addr %s241, 9
          %s243 = smul.addr %s242, 4
          %s244 = scalar_lea.vmem %s0, %s243
          %s245 = smul.u32 8, %s17
        $region36: #{last_level_p6p7_fused.1} parent=31 // pred_fallthru
          _
      $region32: #{last_level_p6p7_fused.1} parent=5 // pred_fallthru
        _
      %p246 = scmp.le.s32.totalorder 1, %s17
      %p247 = scmp.lt.s32.totalorder %s17, 3
      %p248 = pnand %p246, %p247
      %p249 = pneg %p248
      // Predicated region
      $region37: #{last_level_p6p7_fused.1} parent=5 // pred_check
        _
      $region38: #{last_level_p6p7_fused.1} parent=5 // pred_check_branch
        %251 = sbr.rel (%p248) target = $region40
      $region39: #{last_level_p6p7_fused.1} parent=5 // pred_region
        %s252 = ssub.s32 %s17, 1
        %s253 = smul.u32 8, %s22
        %p254 = scmp.lt.s32.totalorder %s253, 15
        %s255 = scalar_select %p254, %s253, 15
        %s256 = smul.addr %s255, 9
        %s257 = smul.addr %s256, 4
        %s258 = scalar_lea.vmem %s0, %s257
        %p259 = pneg %p43
        %p260 = pneg %p40
        %p261 = pneg %p64
        %p262 = pneg %p61
        %p263 = pneg %p85
        %p264 = pneg %p82
        %p265 = pneg %p106
        %p266 = pneg %p103
        %p267 = pneg %p127
        %p268 = pneg %p124
        %p269 = pneg %p153
        %p270 = pneg %p150
        %p271 = scmp.lt.s32.totalorder %s22, 1
        %s272 = scalar_select %p271, %s22, 1
        %s273 = smul.addr %s272, 8
        %s274 = smul.addr %s273, 4
        %s275 = scalar_lea.vmem %s5, %s274
        %p276 = pneg %p179
        %p277 = pneg %p176
        %p278 = scmp.lt.s32.totalorder %s22, 1
        %s279 = scalar_select %p278, %s22, 1
        %s280 = smul.addr %s279, 8
        %s281 = smul.addr %s280, 4
        %s282 = scalar_lea.vmem %s6, %s281
        %p283 = pneg %p205
        %p284 = pneg %p202
        %s285 = sand.u32 %s192, 1
        %s286 = scalar_lea.sflag [#allocation7], %s285
        %s287 = sand.u32 %s192, 1
        %s288 = smul.addr %s287, 16
        %s289 = scalar_lea.vmem [#allocation6], %s288
        %s290 = smul.u32 8, %s22
        %p291 = scmp.lt.s32.totalorder %s290, 15
        %s292 = scalar_select %p291, %s290, 15
        %s293 = smul.addr %s292, 9
        %s294 = smul.addr %s293, 4
        %s295 = scalar_lea.vmem %s0, %s294
        %s296 = smul.u32 8, %s22
        %p297 = scmp.lt.s32.totalorder %s22, 1
        %s298 = scalar_select %p297, %s22, 1
        %s299 = smul.addr %s298, 8
        %s300 = smul.addr %s299, 4
        %s301 = scalar_lea.vmem %s5, %s300
        %p302 = scmp.lt.s32.totalorder %s22, 1
        %s303 = scalar_select %p302, %s22, 1
        %s304 = smul.addr %s303, 8
        %s305 = smul.addr %s304, 4
        %s306 = scalar_lea.vmem %s6, %s305
        %vm308 = vcmask 64512
        %309 = vst.msk [vmem:[#allocation2] sm:$0xff] %vm308, 0.0
        %310 = vst.msk [vmem:[#allocation2 + $0x8] sm:$0xff] %vm308, 0.0
        %311 = vst.msk [vmem:[#allocation2 + $0x10] sm:$0xff] %vm308, 0.0
        %312 = vst.msk [vmem:[#allocation2 + $0x18] sm:$0xff] %vm308, 0.0
        %313 = vst.msk [vmem:[#allocation3] sm:$0xff] %vm308, 0.0
        %314 = vst.msk [vmem:[#allocation3 + $0x8] sm:$0xff] %vm308, 0.0
        %315 = vst.msk [vmem:[#allocation3 + $0x10] sm:$0xff] %vm308, 0.0
        %316 = vst.msk [vmem:[#allocation3 + $0x18] sm:$0xff] %vm308, 0.0
        %v317 = vld [vmem:[%s1] sm:$0xf]
        %v318 = vld [vmem:[%s295] sm:$0x3]
        %v319 = vld [vmem:[%s295 + $0x4] sm:$0x3]
        %v320 = vld [vmem:[%s295 + $0x8] sm:$0x3]
        %v321 = vld [vmem:[%s295 + $0xc] sm:$0x3]
        %v322 = vld [vmem:[%s295 + $0x10] sm:$0x3]
        %v323 = vld [vmem:[%s295 + $0x14] sm:$0x3]
        %v324 = vld [vmem:[%s295 + $0x18] sm:$0x3]
        %v325 = vld [vmem:[%s295 + $0x1c] sm:$0x3]
        %v326 = vld [vmem:[#allocation2] sm:$0xff]
        %v327 = vld [vmem:[#allocation2 + $0x8] sm:$0xff]
        %v328 = vld [vmem:[#allocation2 + $0x10] sm:$0xff]
        %v329 = vld [vmem:[#allocation2 + $0x18] sm:$0xff]
        %v338 = vcombine.low %v318, %v319
        %v339 = vcombine.low %v320, %v321
        %v341 = vunpack.c.l.s4 1983009808
        %v342 = vunpack.c.0.s8 %v341
        %v343 = vlaneseq
        %v344 = vshrl.u32 %v343, 7
        %v345 = vsub.s32 %v342, %v344
        %v346 = vrot.slane %v338, %v345
        %v348 = vunpack.c.l.s4 1983009808
        %v349 = vunpack.c.0.s8 %v348
        %v350 = vlaneseq
        %v351 = vshrl.u32 %v350, 7
        %v352 = vsub.s32 %v349, %v351
        %v353 = vrot.slane %v339, %v352
        %v354 = vcombine.low %v346, %v353
        %v355 = vcombine.low %v322, %v323
        %v356 = vcombine.low %v324, %v325
        %v358 = vunpack.c.l.s4 1983009808
        %v359 = vunpack.c.0.s8 %v358
        %v360 = vlaneseq
        %v361 = vshrl.u32 %v360, 7
        %v362 = vsub.s32 %v359, %v361
        %v363 = vrot.slane %v355, %v362
        %v365 = vunpack.c.l.s4 1983009808
        %v366 = vunpack.c.0.s8 %v365
        %v367 = vlaneseq
        %v368 = vshrl.u32 %v367, 7
        %v369 = vsub.s32 %v366, %v368
        %v370 = vrot.slane %v356, %v369
        %v371 = vcombine.low %v363, %v370
        %v373 = vsel %vm308, %v354, 0
        %v376 = vsel %vm308, %v371, 0
        %vm378 = vcmask 1043456
        %v380 = vsel %vm378, %v317, 0
        %382 = vmatprep.subr.bf16.mxu0 0
        %383 = vmatpush1.bf16.msra.mxu0 %v380
        %384 = vmatprep.subr.bf16.mxu0 0
        %385 = vmatpush1.bf16.msra.mxu0 0
        %386 = vmatprep.subr.bf16.mxu0 0
        %387 = vmatpush1.bf16.msra.mxu0 0
        %388 = vmatprep.subr.bf16.mxu0 0
        %389 = vmatpush1.bf16.msra.mxu0 0
        %390 = vmatprep.subr.bf16.mxu0 0
        %391 = vmatpush1.bf16.msra.mxu0 0
        %392 = vmatprep.subr.bf16.mxu0 0
        %393 = vmatpush1.bf16.msra.mxu0 0
        %394 = vmatprep.subr.bf16.mxu0 0
        %395 = vmatpush1.bf16.msra.mxu0 0
        %396 = vmatprep.subr.bf16.mxu0 0
        %397 = vmatpush1.bf16.msra.mxu0 0
        %398 = vmatprep.subr.bf16.mxu0 0
        %399 = vmatpush1.bf16.msra.mxu0 0
        %400 = vmatprep.subr.bf16.mxu0 0
        %401 = vmatpush1.bf16.msra.mxu0 0
        %402 = vmatprep.subr.bf16.mxu0 0
        %403 = vmatpush1.bf16.msra.mxu0 0
        %404 = vmatprep.subr.bf16.mxu0 0
        %405 = vmatpush1.bf16.msra.mxu0 0
        %406 = vmatprep.subr.bf16.mxu0 0
        %407 = vmatpush1.bf16.msra.mxu0 0
        %408 = vmatprep.subr.bf16.mxu0 0
        %409 = vmatpush1.bf16.msra.mxu0 0
        %410 = vmatprep.subr.bf16.mxu0 0
        %411 = vmatpush1.bf16.msra.mxu0 0
        %412 = vmatprep.subr.bf16.mxu0 0
        %413 = vmatpush1.bf16.msra.mxu0 0
        %414 = vmatprep.mubr.bf16.mxu0 0
        %415 = vmatmul.mubr.bf16.gmra.mrb[0].mxu0 %v373
        %v416 = vpop.f32.mrb[0].mxu0
        %v417 = vadd.f32 0.0, %v416
        %v418 = vpop.f32.mrb[0].mxu0
        %v419 = vpop.f32.mrb[0].mxu0
        %v420 = vadd.f32 0.0, %v419
        %v421 = vpop.f32.mrb[0].mxu0
        %422 = vmatprep.mubr.bf16.mxu0 0
        %423 = vmatmul.mubr.bf16.gmra.mrb[0].mxu0 %v376
        %v424 = vpop.f32.mrb[0].mxu0
        %v425 = vadd.f32 0.0, %v424
        %v426 = vpop.f32.mrb[0].mxu0
        %v427 = vpop.f32.mrb[0].mxu0
        %v428 = vadd.f32 0.0, %v427
        %v429 = vpop.f32.mrb[0].mxu0
        %430 = vdwg.mxu0
        %v431 = vadd.f32 %v326, %v417
        %v432 = vadd.f32 %v327, %v420
        %v433 = vadd.f32 %v328, %v425
        %v434 = vadd.f32 %v329, %v428
        %435 = vst.msk [vmem:[#allocation2] sm:$0xff] %vm308, %v431
        %436 = vst.msk [vmem:[#allocation2 + $0x8] sm:$0xff] %vm308, %v432
        %437 = vst.msk [vmem:[#allocation2 + $0x10] sm:$0xff] %vm308, %v433
        %438 = vst.msk [vmem:[#allocation2 + $0x18] sm:$0xff] %vm308, %v434
        %s439 = scalar_lea.vmem %s295, 72
        %v440 = vld [vmem:[%s439] sm:$0x3]
        %v441 = vld [vmem:[%s439 + $0x4] sm:$0x3]
        %v442 = vld [vmem:[%s439 + $0x8] sm:$0x3]
        %v443 = vld [vmem:[%s439 + $0xc] sm:$0x3]
        %v444 = vld [vmem:[%s439 + $0x10] sm:$0x3]
        %v445 = vld [vmem:[%s439 + $0x14] sm:$0x3]
        %v446 = vld [vmem:[%s439 + $0x18] sm:$0x3]
        %v447 = vld [vmem:[%s439 + $0x1c] sm:$0x3]
        %v448 = vld [vmem:[#allocation3] sm:$0xff]
        %v449 = vld [vmem:[#allocation3 + $0x8] sm:$0xff]
        %v450 = vld [vmem:[#allocation3 + $0x10] sm:$0xff]
        %v451 = vld [vmem:[#allocation3 + $0x18] sm:$0xff]
        %v460 = vcombine.low %v440, %v441
        %v461 = vcombine.low %v442, %v443
        %v463 = vunpack.c.l.s4 1983009808
        %v464 = vunpack.c.0.s8 %v463
        %v465 = vlaneseq
        %v466 = vshrl.u32 %v465, 7
        %v467 = vsub.s32 %v464, %v466
        %v468 = vrot.slane %v460, %v467
        %v470 = vunpack.c.l.s4 1983009808
        %v471 = vunpack.c.0.s8 %v470
        %v472 = vlaneseq
        %v473 = vshrl.u32 %v472, 7
        %v474 = vsub.s32 %v471, %v473
        %v475 = vrot.slane %v461, %v474
        %v476 = vcombine.low %v468, %v475
        %v477 = vcombine.low %v444, %v445
        %v478 = vcombine.low %v446, %v447
        %v480 = vunpack.c.l.s4 1983009808
        %v481 = vunpack.c.0.s8 %v480
        %v482 = vlaneseq
        %v483 = vshrl.u32 %v482, 7
        %v484 = vsub.s32 %v481, %v483
        %v485 = vrot.slane %v477, %v484
        %v487 = vunpack.c.l.s4 1983009808
        %v488 = vunpack.c.0.s8 %v487
        %v489 = vlaneseq
        %v490 = vshrl.u32 %v489, 7
        %v491 = vsub.s32 %v488, %v490
        %v492 = vrot.slane %v478, %v491
        %v493 = vcombine.low %v485, %v492
        %v495 = vsel %vm308, %v476, 0
        %v498 = vsel %vm308, %v493, 0
        %500 = vmatprep.subr.bf16.mxu0 0
        %501 = vmatpush1.bf16.msra.mxu0 %v380
        %502 = vmatprep.subr.bf16.mxu0 0
        %503 = vmatpush1.bf16.msra.mxu0 0
        %504 = vmatprep.subr.bf16.mxu0 0
        %505 = vmatpush1.bf16.msra.mxu0 0
        %506 = vmatprep.subr.bf16.mxu0 0
        %507 = vmatpush1.bf16.msra.mxu0 0
        %508 = vmatprep.subr.bf16.mxu0 0
        %509 = vmatpush1.bf16.msra.mxu0 0
        %510 = vmatprep.subr.bf16.mxu0 0
        %511 = vmatpush1.bf16.msra.mxu0 0
        %512 = vmatprep.subr.bf16.mxu0 0
        %513 = vmatpush1.bf16.msra.mxu0 0
        %514 = vmatprep.subr.bf16.mxu0 0
        %515 = vmatpush1.bf16.msra.mxu0 0
        %516 = vmatprep.subr.bf16.mxu0 0
        %517 = vmatpush1.bf16.msra.mxu0 0
        %518 = vmatprep.subr.bf16.mxu0 0
        %519 = vmatpush1.bf16.msra.mxu0 0
        %520 = vmatprep.subr.bf16.mxu0 0
        %521 = vmatpush1.bf16.msra.mxu0 0
        %522 = vmatprep.subr.bf16.mxu0 0
        %523 = vmatpush1.bf16.msra.mxu0 0
        %524 = vmatprep.subr.bf16.mxu0 0
        %525 = vmatpush1.bf16.msra.mxu0 0
        %526 = vmatprep.subr.bf16.mxu0 0
        %527 = vmatpush1.bf16.msra.mxu0 0
        %528 = vmatprep.subr.bf16.mxu0 0
        %529 = vmatpush1.bf16.msra.mxu0 0
        %530 = vmatprep.subr.bf16.mxu0 0
        %531 = vmatpush1.bf16.msra.mxu0 0
        %532 = vmatprep.mubr.bf16.mxu0 0
        %533 = vmatmul.mubr.bf16.gmra.mrb[0].mxu0 %v495
        %v534 = vpop.f32.mrb[0].mxu0
        %v535 = vadd.f32 0.0, %v534
        %v536 = vpop.f32.mrb[0].mxu0
        %v537 = vpop.f32.mrb[0].mxu0
        %v538 = vadd.f32 0.0, %v537
        %v539 = vpop.f32.mrb[0].mxu0
        %540 = vmatprep.mubr.bf16.mxu0 0
        %541 = vmatmul.mubr.bf16.gmra.mrb[0].mxu0 %v498
        %v542 = vpop.f32.mrb[0].mxu0
        %v543 = vadd.f32 0.0, %v542
        %v544 = vpop.f32.mrb[0].mxu0
        %v545 = vpop.f32.mrb[0].mxu0
        %v546 = vadd.f32 0.0, %v545
        %v547 = vpop.f32.mrb[0].mxu0
        %548 = vdwg.mxu0
        %v549 = vadd.f32 %v448, %v535
        %v550 = vadd.f32 %v449, %v538
        %v551 = vadd.f32 %v450, %v543
        %v552 = vadd.f32 %v451, %v546
        %553 = vst.msk [vmem:[#allocation3] sm:$0xff] %vm308, %v549
        %554 = vst.msk [vmem:[#allocation3 + $0x8] sm:$0xff] %vm308, %v550
        %555 = vst.msk [vmem:[#allocation3 + $0x10] sm:$0xff] %vm308, %v551
        %556 = vst.msk [vmem:[#allocation3 + $0x18] sm:$0xff] %vm308, %v552
        %s557 = scalar_lea.vmem %s1, 4
        %v558 = vld [vmem:[%s557] sm:$0xf]
        %s559 = scalar_lea.vmem %s295, 36
        %v560 = vld [vmem:[%s559] sm:$0x3]
        %v561 = vld [vmem:[%s559 + $0x4] sm:$0x3]
        %v562 = vld [vmem:[%s559 + $0x8] sm:$0x3]
        %v563 = vld [vmem:[%s559 + $0xc] sm:$0x3]
        %v564 = vld [vmem:[%s559 + $0x10] sm:$0x3]
        %v565 = vld [vmem:[%s559 + $0x14] sm:$0x3]
        %v566 = vld [vmem:[%s559 + $0x18] sm:$0x3]
        %v567 = vld [vmem:[%s559 + $0x1c] sm:$0x3]
        %v568 = vld [vmem:[#allocation2] sm:$0xff]
        %v569 = vld [vmem:[#allocation2 + $0x8] sm:$0xff]
        %v570 = vld [vmem:[#allocation2 + $0x10] sm:$0xff]
        %v571 = vld [vmem:[#allocation2 + $0x18] sm:$0xff]
        %v580 = vcombine.low %v560, %v561
        %v581 = vcombine.low %v562, %v563
        %v583 = vunpack.c.l.s4 1983009808
        %v584 = vunpack.c.0.s8 %v583
        %v585 = vlaneseq
        %v586 = vshrl.u32 %v585, 7
        %v587 = vsub.s32 %v584, %v586
        %v588 = vrot.slane %v580, %v587
        %v590 = vunpack.c.l.s4 1983009808
        %v591 = vunpack.c.0.s8 %v590
        %v592 = vlaneseq
        %v593 = vshrl.u32 %v592, 7
        %v594 = vsub.s32 %v591, %v593
        %v595 = vrot.slane %v581, %v594
        %v596 = vcombine.low %v588, %v595
        %v597 = vcombine.low %v564, %v565
        %v598 = vcombine.low %v566, %v567
        %v600 = vunpack.c.l.s4 1983009808
        %v601 = vunpack.c.0.s8 %v600
        %v602 = vlaneseq
        %v603 = vshrl.u32 %v602, 7
        %v604 = vsub.s32 %v601, %v603
        %v605 = vrot.slane %v597, %v604
        %v607 = vunpack.c.l.s4 1983009808
        %v608 = vunpack.c.0.s8 %v607
        %v609 = vlaneseq
        %v610 = vshrl.u32 %v609, 7
        %v611 = vsub.s32 %v608, %v610
        %v612 = vrot.slane %v598, %v611
        %v613 = vcombine.low %v605, %v612
        %v615 = vsel %vm308, %v596, 0
        %v618 = vsel %vm308, %v613, 0
        %v621 = vsel %vm378, %v558, 0
        %623 = vmatprep.subr.bf16.mxu0 0
        %624 = vmatpush1.bf16.msra.mxu0 %v621
        %625 = vmatprep.subr.bf16.mxu0 0
        %626 = vmatpush1.bf16.msra.mxu0 0
        %627 = vmatprep.subr.bf16.mxu0 0
        %628 = vmatpush1.bf16.msra.mxu0 0
        %629 = vmatprep.subr.bf16.mxu0 0
        %630 = vmatpush1.bf16.msra.mxu0 0
        %631 = vmatprep.subr.bf16.mxu0 0
        %632 = vmatpush1.bf16.msra.mxu0 0
        %633 = vmatprep.subr.bf16.mxu0 0
        %634 = vmatpush1.bf16.msra.mxu0 0
        %635 = vmatprep.subr.bf16.mxu0 0
        %636 = vmatpush1.bf16.msra.mxu0 0
        %637 = vmatprep.subr.bf16.mxu0 0
        %638 = vmatpush1.bf16.msra.mxu0 0
        %639 = vmatprep.subr.bf16.mxu0 0
        %640 = vmatpush1.bf16.msra.mxu0 0
        %641 = vmatprep.subr.bf16.mxu0 0
        %642 = vmatpush1.bf16.msra.mxu0 0
        %643 = vmatprep.subr.bf16.mxu0 0
        %644 = vmatpush1.bf16.msra.mxu0 0
        %645 = vmatprep.subr.bf16.mxu0 0
        %646 = vmatpush1.bf16.msra.mxu0 0
        %647 = vmatprep.subr.bf16.mxu0 0
        %648 = vmatpush1.bf16.msra.mxu0 0
        %649 = vmatprep.subr.bf16.mxu0 0
        %650 = vmatpush1.bf16.msra.mxu0 0
        %651 = vmatprep.subr.bf16.mxu0 0
        %652 = vmatpush1.bf16.msra.mxu0 0
        %653 = vmatprep.subr.bf16.mxu0 0
        %654 = vmatpush1.bf16.msra.mxu0 0
        %655 = vmatprep.mubr.bf16.mxu0 0
        %656 = vmatmul.mubr.bf16.gmra.mrb[0].mxu0 %v615
        %v657 = vpop.f32.mrb[0].mxu0
        %v658 = vadd.f32 0.0, %v657
        %v659 = vpop.f32.mrb[0].mxu0
        %v660 = vpop.f32.mrb[0].mxu0
        %v661 = vadd.f32 0.0, %v660
        %v662 = vpop.f32.mrb[0].mxu0
        %663 = vmatprep.mubr.bf16.mxu0 0
        %664 = vmatmul.mubr.bf16.gmra.mrb[0].mxu0 %v618
        %v665 = vpop.f32.mrb[0].mxu0
        %v666 = vadd.f32 0.0, %v665
        %v667 = vpop.f32.mrb[0].mxu0
        %v668 = vpop.f32.mrb[0].mxu0
        %v669 = vadd.f32 0.0, %v668
        %v670 = vpop.f32.mrb[0].mxu0
        %671 = vdwg.mxu0
        %v672 = vadd.f32 %v568, %v658
        %v673 = vadd.f32 %v569, %v661
        %v674 = vadd.f32 %v570, %v666
        %v675 = vadd.f32 %v571, %v669
        %676 = vst.msk [vmem:[#allocation2] sm:$0xff] %vm308, %v672
        %677 = vst.msk [vmem:[#allocation2 + $0x8] sm:$0xff] %vm308, %v673
        %678 = vst.msk [vmem:[#allocation2 + $0x10] sm:$0xff] %vm308, %v674
        %679 = vst.msk [vmem:[#allocation2 + $0x18] sm:$0xff] %vm308, %v675
        %s680 = scalar_lea.vmem %s295, 108
        %v681 = vld [vmem:[%s680] sm:$0x3]
        %v682 = vld [vmem:[%s680 + $0x4] sm:$0x3]
        %v683 = vld [vmem:[%s680 + $0x8] sm:$0x3]
        %v684 = vld [vmem:[%s680 + $0xc] sm:$0x3]
        %v685 = vld [vmem:[%s680 + $0x10] sm:$0x3]
        %v686 = vld [vmem:[%s680 + $0x14] sm:$0x3]
        %v687 = vld [vmem:[%s680 + $0x18] sm:$0x3]
        %v688 = vld [vmem:[%s680 + $0x1c] sm:$0x3]
        %v689 = vld [vmem:[#allocation3] sm:$0xff]
        %v690 = vld [vmem:[#allocation3 + $0x8] sm:$0xff]
        %v691 = vld [vmem:[#allocation3 + $0x10] sm:$0xff]
        %v692 = vld [vmem:[#allocation3 + $0x18] sm:$0xff]
        %v701 = vcombine.low %v681, %v682
        %v702 = vcombine.low %v683, %v684
        %v704 = vunpack.c.l.s4 1983009808
        %v705 = vunpack.c.0.s8 %v704
        %v706 = vlaneseq
        %v707 = vshrl.u32 %v706, 7
        %v708 = vsub.s32 %v705, %v707
        %v709 = vrot.slane %v701, %v708
        %v711 = vunpack.c.l.s4 1983009808
        %v712 = vunpack.c.0.s8 %v711
        %v713 = vlaneseq
        %v714 = vshrl.u32 %v713, 7
        %v715 = vsub.s32 %v712, %v714
        %v716 = vrot.slane %v702, %v715
        %v717 = vcombine.low %v709, %v716
        %v718 = vcombine.low %v685, %v686
        %v719 = vcombine.low %v687, %v688
        %v721 = vunpack.c.l.s4 1983009808
        %v722 = vunpack.c.0.s8 %v721
        %v723 = vlaneseq
        %v724 = vshrl.u32 %v723, 7
        %v725 = vsub.s32 %v722, %v724
        %v726 = vrot.slane %v718, %v725
        %v728 = vunpack.c.l.s4 1983009808
        %v729 = vunpack.c.0.s8 %v728
        %v730 = vlaneseq
        %v731 = vshrl.u32 %v730, 7
        %v732 = vsub.s32 %v729, %v731
        %v733 = vrot.slane %v719, %v732
        %v734 = vcombine.low %v726, %v733
        %v736 = vsel %vm308, %v717, 0
        %v739 = vsel %vm308, %v734, 0
        %741 = vmatprep.subr.bf16.mxu0 0
        %742 = vmatpush1.bf16.msra.mxu0 %v621
        %743 = vmatprep.subr.bf16.mxu0 0
        %744 = vmatpush1.bf16.msra.mxu0 0
        %745 = vmatprep.subr.bf16.mxu0 0
        %746 = vmatpush1.bf16.msra.mxu0 0
        %747 = vmatprep.subr.bf16.mxu0 0
        %748 = vmatpush1.bf16.msra.mxu0 0
        %749 = vmatprep.subr.bf16.mxu0 0
        %750 = vmatpush1.bf16.msra.mxu0 0
        %751 = vmatprep.subr.bf16.mxu0 0
        %752 = vmatpush1.bf16.msra.mxu0 0
        %753 = vmatprep.subr.bf16.mxu0 0
        %754 = vmatpush1.bf16.msra.mxu0 0
        %755 = vmatprep.subr.bf16.mxu0 0
        %756 = vmatpush1.bf16.msra.mxu0 0
        %757 = vmatprep.subr.bf16.mxu0 0
        %758 = vmatpush1.bf16.msra.mxu0 0
        %759 = vmatprep.subr.bf16.mxu0 0
        %760 = vmatpush1.bf16.msra.mxu0 0
        %761 = vmatprep.subr.bf16.mxu0 0
        %762 = vmatpush1.bf16.msra.mxu0 0
        %763 = vmatprep.subr.bf16.mxu0 0
        %764 = vmatpush1.bf16.msra.mxu0 0
        %765 = vmatprep.subr.bf16.mxu0 0
        %766 = vmatpush1.bf16.msra.mxu0 0
        %767 = vmatprep.subr.bf16.mxu0 0
        %768 = vmatpush1.bf16.msra.mxu0 0
        %769 = vmatprep.subr.bf16.mxu0 0
        %770 = vmatpush1.bf16.msra.mxu0 0
        %771 = vmatprep.subr.bf16.mxu0 0
        %772 = vmatpush1.bf16.msra.mxu0 0
        %773 = vmatprep.mubr.bf16.mxu0 0
        %774 = vmatmul.mubr.bf16.gmra.mrb[0].mxu0 %v736
        %v775 = vpop.f32.mrb[0].mxu0
        %v776 = vadd.f32 0.0, %v775
        %v777 = vpop.f32.mrb[0].mxu0
        %v778 = vpop.f32.mrb[0].mxu0
        %v779 = vadd.f32 0.0, %v778
        %v780 = vpop.f32.mrb[0].mxu0
        %781 = vmatprep.mubr.bf16.mxu0 0
        %782 = vmatmul.mubr.bf16.gmra.mrb[0].mxu0 %v739
        %v783 = vpop.f32.mrb[0].mxu0
        %v784 = vadd.f32 0.0, %v783
        %v785 = vpop.f32.mrb[0].mxu0
        %v786 = vpop.f32.mrb[0].mxu0
        %v787 = vadd.f32 0.0, %v786
        %v788 = vpop.f32.mrb[0].mxu0
        %789 = vdwg.mxu0
        %v790 = vadd.f32 %v689, %v776
        %v791 = vadd.f32 %v690, %v779
        %v792 = vadd.f32 %v691, %v784
        %v793 = vadd.f32 %v692, %v787
        %794 = vst.msk [vmem:[#allocation3] sm:$0xff] %vm308, %v790
        %795 = vst.msk [vmem:[#allocation3 + $0x8] sm:$0xff] %vm308, %v791
        %796 = vst.msk [vmem:[#allocation3 + $0x10] sm:$0xff] %vm308, %v792
        %797 = vst.msk [vmem:[#allocation3 + $0x18] sm:$0xff] %vm308, %v793
        %s798 = scalar_lea.vmem %s1, 8
        %v799 = vld [vmem:[%s798] sm:$0xf]
        %v800 = vld [vmem:[%s439] sm:$0x3]
        %v801 = vld [vmem:[%s439 + $0x4] sm:$0x3]
        %v802 = vld [vmem:[%s439 + $0x8] sm:$0x3]
        %v803 = vld [vmem:[%s439 + $0xc] sm:$0x3]
        %v804 = vld [vmem:[%s439 + $0x10] sm:$0x3]
        %v805 = vld [vmem:[%s439 + $0x14] sm:$0x3]
        %v806 = vld [vmem:[%s439 + $0x18] sm:$0x3]
        %v807 = vld [vmem:[%s439 + $0x1c] sm:$0x3]
        %v808 = vld [vmem:[#allocation2] sm:$0xff]
        %v809 = vld [vmem:[#allocation2 + $0x8] sm:$0xff]
        %v810 = vld [vmem:[#allocation2 + $0x10] sm:$0xff]
        %v811 = vld [vmem:[#allocation2 + $0x18] sm:$0xff]
        %v820 = vcombine.low %v800, %v801
        %v821 = vcombine.low %v802, %v803
        %v823 = vunpack.c.l.s4 1983009808
        %v824 = vunpack.c.0.s8 %v823
        %v825 = vlaneseq
        %v826 = vshrl.u32 %v825, 7
        %v827 = vsub.s32 %v824, %v826
        %v828 = vrot.slane %v820, %v827
        %v830 = vunpack.c.l.s4 1983009808
        %v831 = vunpack.c.0.s8 %v830
        %v832 = vlaneseq
        %v833 = vshrl.u32 %v832, 7
        %v834 = vsub.s32 %v831, %v833
        %v835 = vrot.slane %v821, %v834
        %v836 = vcombine.low %v828, %v835
        %v837 = vcombine.low %v804, %v805
        %v838 = vcombine.low %v806, %v807
        %v840 = vunpack.c.l.s4 1983009808
        %v841 = vunpack.c.0.s8 %v840
        %v842 = vlaneseq
        %v843 = vshrl.u32 %v842, 7
        %v844 = vsub.s32 %v841, %v843
        %v845 = vrot.slane %v837, %v844
        %v847 = vunpack.c.l.s4 1983009808
        %v848 = vunpack.c.0.s8 %v847
        %v849 = vlaneseq
        %v850 = vshrl.u32 %v849, 7
        %v851 = vsub.s32 %v848, %v850
        %v852 = vrot.slane %v838, %v851
        %v853 = vcombine.low %v845, %v852
        %v855 = vsel %vm308, %v836, 0
        %v858 = vsel %vm308, %v853, 0
        %v861 = vsel %vm378, %v799, 0
        %863 = vmatprep.subr.bf16.mxu0 0
        %864 = vmatpush1.bf16.msra.mxu0 %v861
        %865 = vmatprep.subr.bf16.mxu0 0
        %866 = vmatpush1.bf16.msra.mxu0 0
        %867 = vmatprep.subr.bf16.mxu0 0
        %868 = vmatpush1.bf16.msra.mxu0 0
        %869 = vmatprep.subr.bf16.mxu0 0
        %870 = vmatpush1.bf16.msra.mxu0 0
        %871 = vmatprep.subr.bf16.mxu0 0
        %872 = vmatpush1.bf16.msra.mxu0 0
        %873 = vmatprep.subr.bf16.mxu0 0
        %874 = vmatpush1.bf16.msra.mxu0 0
        %875 = vmatprep.subr.bf16.mxu0 0
        %876 = vmatpush1.bf16.msra.mxu0 0
        %877 = vmatprep.subr.bf16.mxu0 0
        %878 = vmatpush1.bf16.msra.mxu0 0
        %879 = vmatprep.subr.bf16.mxu0 0
        %880 = vmatpush1.bf16.msra.mxu0 0
        %881 = vmatprep.subr.bf16.mxu0 0
        %882 = vmatpush1.bf16.msra.mxu0 0
        %883 = vmatprep.subr.bf16.mxu0 0
        %884 = vmatpush1.bf16.msra.mxu0 0
        %885 = vmatprep.subr.bf16.mxu0 0
        %886 = vmatpush1.bf16.msra.mxu0 0
        %887 = vmatprep.subr.bf16.mxu0 0
        %888 = vmatpush1.bf16.msra.mxu0 0
        %889 = vmatprep.subr.bf16.mxu0 0
        %890 = vmatpush1.bf16.msra.mxu0 0
        %891 = vmatprep.subr.bf16.mxu0 0
        %892 = vmatpush1.bf16.msra.mxu0 0
        %893 = vmatprep.subr.bf16.mxu0 0
        %894 = vmatpush1.bf16.msra.mxu0 0
        %895 = vmatprep.mubr.bf16.mxu0 0
        %896 = vmatmul.mubr.bf16.gmra.mrb[0].mxu0 %v855
        %v897 = vpop.f32.mrb[0].mxu0
        %v898 = vadd.f32 0.0, %v897
        %v899 = vpop.f32.mrb[0].mxu0
        %v900 = vpop.f32.mrb[0].mxu0
        %v901 = vadd.f32 0.0, %v900
        %v902 = vpop.f32.mrb[0].mxu0
        %903 = vmatprep.mubr.bf16.mxu0 0
        %904 = vmatmul.mubr.bf16.gmra.mrb[0].mxu0 %v858
        %v905 = vpop.f32.mrb[0].mxu0
        %v906 = vadd.f32 0.0, %v905
        %v907 = vpop.f32.mrb[0].mxu0
        %v908 = vpop.f32.mrb[0].mxu0
        %v909 = vadd.f32 0.0, %v908
        %v910 = vpop.f32.mrb[0].mxu0
        %911 = vdwg.mxu0
        %v912 = vadd.f32 %v808, %v898
        %v913 = vadd.f32 %v809, %v901
        %v914 = vadd.f32 %v810, %v906
        %v915 = vadd.f32 %v811, %v909
        %916 = vst.msk [vmem:[#allocation2] sm:$0xff] %vm308, %v912
        %917 = vst.msk [vmem:[#allocation2 + $0x8] sm:$0xff] %vm308, %v913
        %918 = vst.msk [vmem:[#allocation2 + $0x10] sm:$0xff] %vm308, %v914
        %919 = vst.msk [vmem:[#allocation2 + $0x18] sm:$0xff] %vm308, %v915
        %v920 = vld [vmem:[%s295] sm:$0x7]
        %v921 = vld [vmem:[%s295 + $0x4] sm:$0x7]
        %v922 = vld [vmem:[%s295 + $0x8] sm:$0x7]
        %v923 = vld [vmem:[%s295 + $0xc] sm:$0x7]
        %v924 = vld [vmem:[%s295 + $0x10] sm:$0x7]
        %v925 = vld [vmem:[%s295 + $0x14] sm:$0x7]
        %v926 = vld [vmem:[%s295 + $0x18] sm:$0x7]
        %v927 = vld [vmem:[%s295 + $0x1c] sm:$0x7]
        %v937 = vunpack.c.l.s4 1983009808
        %v938 = vunpack.c.0.s8 %v937
        %v939 = vlaneseq
        %v940 = vshrl.u32 %v939, 7
        %v941 = vsub.s32 %v938, %v940
        %v942 = vrot.slane %v920, %v941
        %v943 = vcombine.high %v942, %v942
        %v945 = vunpack.c.l.s4 1983009808
        %v946 = vunpack.c.0.s8 %v945
        %v947 = vlaneseq
        %v948 = vshrl.u32 %v947, 7
        %v949 = vsub.s32 %v946, %v948
        %v950 = vrot.slane %v921, %v949
        %v951 = vcombine.high %v950, %v950
        %v953 = vunpack.c.l.s4 1983009808
        %v954 = vunpack.c.0.s8 %v953
        %v955 = vlaneseq
        %v956 = vshrl.u32 %v955, 7
        %v957 = vsub.s32 %v954, %v956
        %v958 = vrot.slane %v922, %v957
        %v959 = vcombine.high %v958, %v958
        %v961 = vunpack.c.l.s4 1983009808
        %v962 = vunpack.c.0.s8 %v961
        %v963 = vlaneseq
        %v964 = vshrl.u32 %v963, 7
        %v965 = vsub.s32 %v962, %v964
        %v966 = vrot.slane %v923, %v965
        %v967 = vcombine.high %v966, %v966
        %v969 = vunpack.c.l.s4 1983009808
        %v970 = vunpack.c.0.s8 %v969
        %v971 = vlaneseq
        %v972 = vshrl.u32 %v971, 7
        %v973 = vsub.s32 %v970, %v972
        %v974 = vrot.slane %v924, %v973
        %v975 = vcombine.high %v974, %v974
        %v977 = vunpack.c.l.s4 1983009808
        %v978 = vunpack.c.0.s8 %v977
        %v979 = vlaneseq
        %v980 = vshrl.u32 %v979, 7
        %v981 = vsub.s32 %v978, %v980
        %v982 = vrot.slane %v925, %v981
        %v983 = vcombine.high %v982, %v982
        %v985 = vunpack.c.l.s4 1983009808
        %v986 = vunpack.c.0.s8 %v985
        %v987 = vlaneseq
        %v988 = vshrl.u32 %v987, 7
        %v989 = vsub.s32 %v986, %v988
        %v990 = vrot.slane %v926, %v989
        %v991 = vcombine.high %v990, %v990
        %v993 = vunpack.c.l.s4 1983009808
        %v994 = vunpack.c.0.s8 %v993
        %v995 = vlaneseq
        %v996 = vshrl.u32 %v995, 7
        %v997 = vsub.s32 %v994, %v996
        %v998 = vrot.slane %v927, %v997
        %v999 = vcombine.high %v998, %v998
        %vm1000 = vsmask.f32 1280
        %vm1001 = vsmask.f32 3336
        %vm1002 = vmor %vm1000, %vm1001
        %vm1003 = vsmask.f32 5392
        %vm1004 = vmor %vm1002, %vm1003
        %vm1005 = vsmask.f32 7448
        %vm1006 = vmor %vm1004, %vm1005
        %v1008 = vshrl.u32 %v942, 16
        %v1010 = vrot.slane %v1008, 6
        %v1011 = vshll.u32 %v942, 16
        %v1013 = vrot.slane %v1011, 7
        %v1014 = vor.u32 %v1010, %v1013
        %v1015 = vrot.slane %v1014, 2
        %v1017 = vshll.u32 %v943, 16
        %v1019 = vrot.slane %v1017, 7
        %v1020 = vsel %vm1006, %v1015, %v1019
        %v1022 = vshrl.u32 %v950, 16
        %v1024 = vrot.slane %v1022, 6
        %v1025 = vshll.u32 %v950, 16
        %v1027 = vrot.slane %v1025, 7
        %v1028 = vor.u32 %v1024, %v1027
        %v1029 = vrot.slane %v1028, 2
        %v1031 = vshll.u32 %v951, 16
        %v1033 = vrot.slane %v1031, 7
        %v1034 = vsel %vm1006, %v1029, %v1033
        %v1036 = vshrl.u32 %v958, 16
        %v1038 = vrot.slane %v1036, 6
        %v1039 = vshll.u32 %v958, 16
        %v1041 = vrot.slane %v1039, 7
        %v1042 = vor.u32 %v1038, %v1041
        %v1043 = vrot.slane %v1042, 2
        %v1045 = vshll.u32 %v959, 16
        %v1047 = vrot.slane %v1045, 7
        %v1048 = vsel %vm1006, %v1043, %v1047
        %v1050 = vshrl.u32 %v966, 16
        %v1052 = vrot.slane %v1050, 6
        %v1053 = vshll.u32 %v966, 16
        %v1055 = vrot.slane %v1053, 7
        %v1056 = vor.u32 %v1052, %v1055
        %v1057 = vrot.slane %v1056, 2
        %v1059 = vshll.u32 %v967, 16
        %v1061 = vrot.slane %v1059, 7
        %v1062 = vsel %vm1006, %v1057, %v1061
        %v1064 = vshrl.u32 %v974, 16
        %v1066 = vrot.slane %v1064, 6
        %v1067 = vshll.u32 %v974, 16
        %v1069 = vrot.slane %v1067, 7
        %v1070 = vor.u32 %v1066, %v1069
        %v1071 = vrot.slane %v1070, 2
        %v1073 = vshll.u32 %v975, 16
        %v1075 = vrot.slane %v1073, 7
        %v1076 = vsel %vm1006, %v1071, %v1075
        %v1078 = vshrl.u32 %v982, 16
        %v1080 = vrot.slane %v1078, 6
        %v1081 = vshll.u32 %v982, 16
        %v1083 = vrot.slane %v1081, 7
        %v1084 = vor.u32 %v1080, %v1083
        %v1085 = vrot.slane %v1084, 2
        %v1087 = vshll.u32 %v983, 16
        %v1089 = vrot.slane %v1087, 7
        %v1090 = vsel %vm1006, %v1085, %v1089
        %v1092 = vshrl.u32 %v990, 16
        %v1094 = vrot.slane %v1092, 6
        %v1095 = vshll.u32 %v990, 16
        %v1097 = vrot.slane %v1095, 7
        %v1098 = vor.u32 %v1094, %v1097
        %v1099 = vrot.slane %v1098, 2
        %v1101 = vshll.u32 %v991, 16
        %v1103 = vrot.slane %v1101, 7
        %v1104 = vsel %vm1006, %v1099, %v1103
        %v1106 = vshrl.u32 %v998, 16
        %v1108 = vrot.slane %v1106, 6
        %v1109 = vshll.u32 %v998, 16
        %v1111 = vrot.slane %v1109, 7
        %v1112 = vor.u32 %v1108, %v1111
        %v1113 = vrot.slane %v1112, 2
        %v1115 = vshll.u32 %v999, 16
        %v1117 = vrot.slane %v1115, 7
        %v1118 = vsel %vm1006, %v1113, %v1117
        %v1119 = vld [vmem:[#allocation3] sm:$0xff]
        %v1120 = vld [vmem:[#allocation3 + $0x8] sm:$0xff]
        %v1121 = vld [vmem:[#allocation3 + $0x10] sm:$0xff]
        %v1122 = vld [vmem:[#allocation3 + $0x18] sm:$0xff]
        %v1123 = vcombine.low %v1020, %v1034
        %v1124 = vcombine.low %v1048, %v1062
        %v1126 = vunpack.c.l.s4 1983009808
        %v1127 = vunpack.c.0.s8 %v1126
        %v1128 = vlaneseq
        %v1129 = vshrl.u32 %v1128, 7
        %v1130 = vsub.s32 %v1127, %v1129
        %v1131 = vrot.slane %v1123, %v1130
        %v1133 = vunpack.c.l.s4 1983009808
        %v1134 = vunpack.c.0.s8 %v1133
        %v1135 = vlaneseq
        %v1136 = vshrl.u32 %v1135, 7
        %v1137 = vsub.s32 %v1134, %v1136
        %v1138 = vrot.slane %v1124, %v1137
        %v1139 = vcombine.low %v1131, %v1138
        %v1140 = vcombine.low %v1076, %v1090
        %v1141 = vcombine.low %v1104, %v1118
        %v1143 = vunpack.c.l.s4 1983009808
        %v1144 = vunpack.c.0.s8 %v1143
        %v1145 = vlaneseq
        %v1146 = vshrl.u32 %v1145, 7
        %v1147 = vsub.s32 %v1144, %v1146
        %v1148 = vrot.slane %v1140, %v1147
        %v1150 = vunpack.c.l.s4 1983009808
        %v1151 = vunpack.c.0.s8 %v1150
        %v1152 = vlaneseq
        %v1153 = vshrl.u32 %v1152, 7
        %v1154 = vsub.s32 %v1151, %v1153
        %v1155 = vrot.slane %v1141, %v1154
        %v1156 = vcombine.low %v1148, %v1155
        %v1158 = vsel %vm308, %v1139, 0
        %v1161 = vsel %vm308, %v1156, 0
        %1163 = vmatprep.subr.bf16.mxu0 0
        %1164 = vmatpush1.bf16.msra.mxu0 %v861
        %1165 = vmatprep.subr.bf16.mxu0 0
        %1166 = vmatpush1.bf16.msra.mxu0 0
        %1167 = vmatprep.subr.bf16.mxu0 0
        %1168 = vmatpush1.bf16.msra.mxu0 0
        %1169 = vmatprep.subr.bf16.mxu0 0
        %1170 = vmatpush1.bf16.msra.mxu0 0
        %1171 = vmatprep.subr.bf16.mxu0 0
        %1172 = vmatpush1.bf16.msra.mxu0 0
        %1173 = vmatprep.subr.bf16.mxu0 0
        %1174 = vmatpush1.bf16.msra.mxu0 0
        %1175 = vmatprep.subr.bf16.mxu0 0
        %1176 = vmatpush1.bf16.msra.mxu0 0
        %1177 = vmatprep.subr.bf16.mxu0 0
        %1178 = vmatpush1.bf16.msra.mxu0 0
        %1179 = vmatprep.subr.bf16.mxu0 0
        %1180 = vmatpush1.bf16.msra.mxu0 0
        %1181 = vmatprep.subr.bf16.mxu0 0
        %1182 = vmatpush1.bf16.msra.mxu0 0
        %1183 = vmatprep.subr.bf16.mxu0 0
        %1184 = vmatpush1.bf16.msra.mxu0 0
        %1185 = vmatprep.subr.bf16.mxu0 0
        %1186 = vmatpush1.bf16.msra.mxu0 0
        %1187 = vmatprep.subr.bf16.mxu0 0
        %1188 = vmatpush1.bf16.msra.mxu0 0
        %1189 = vmatprep.subr.bf16.mxu0 0
        %1190 = vmatpush1.bf16.msra.mxu0 0
        %1191 = vmatprep.subr.bf16.mxu0 0
        %1192 = vmatpush1.bf16.msra.mxu0 0
        %1193 = vmatprep.subr.bf16.mxu0 0
        %1194 = vmatpush1.bf16.msra.mxu0 0
        %1195 = vmatprep.mubr.bf16.mxu0 0
        %1196 = vmatmul.mubr.bf16.gmra.mrb[0].mxu0 %v1158
        %v1197 = vpop.f32.mrb[0].mxu0
        %v1198 = vadd.f32 0.0, %v1197
        %v1199 = vpop.f32.mrb[0].mxu0
        %v1200 = vpop.f32.mrb[0].mxu0
        %v1201 = vadd.f32 0.0, %v1200
        %v1202 = vpop.f32.mrb[0].mxu0
        %1203 = vmatprep.mubr.bf16.mxu0 0
        %1204 = vmatmul.mubr.bf16.gmra.mrb[0].mxu0 %v1161
        %v1205 = vpop.f32.mrb[0].mxu0
        %v1206 = vadd.f32 0.0, %v1205
        %v1207 = vpop.f32.mrb[0].mxu0
        %v1208 = vpop.f32.mrb[0].mxu0
        %v1209 = vadd.f32 0.0, %v1208
        %v1210 = vpop.f32.mrb[0].mxu0
        %1211 = vdwg.mxu0
        %v1212 = vadd.f32 %v1119, %v1198
        %v1213 = vadd.f32 %v1120, %v1201
        %v1214 = vadd.f32 %v1121, %v1206
        %v1215 = vadd.f32 %v1122, %v1209
        %1216 = vst.msk [vmem:[#allocation3] sm:$0xff] %vm308, %v1212
        %1217 = vst.msk [vmem:[#allocation3 + $0x8] sm:$0xff] %vm308, %v1213
        %1218 = vst.msk [vmem:[#allocation3 + $0x10] sm:$0xff] %vm308, %v1214
        %1219 = vst.msk [vmem:[#allocation3 + $0x18] sm:$0xff] %vm308, %v1215
        %s1220 = scalar_lea.vmem %s1, 12
        %v1221 = vld [vmem:[%s1220] sm:$0xf]
        %s1222 = scalar_lea.vmem %s295, 144
        %v1223 = vld [vmem:[%s1222] sm:$0x3]
        %v1224 = vld [vmem:[%s1222 + $0x4] sm:$0x3]
        %v1225 = vld [vmem:[%s1222 + $0x8] sm:$0x3]
        %v1226 = vld [vmem:[%s1222 + $0xc] sm:$0x3]
        %v1227 = vld [vmem:[%s1222 + $0x10] sm:$0x3]
        %v1228 = vld [vmem:[%s1222 + $0x14] sm:$0x3]
        %v1229 = vld [vmem:[%s1222 + $0x18] sm:$0x3]
        %v1230 = vld [vmem:[%s1222 + $0x1c] sm:$0x3]
        %v1231 = vld [vmem:[#allocation2] sm:$0xff]
        %v1232 = vld [vmem:[#allocation2 + $0x8] sm:$0xff]
        %v1233 = vld [vmem:[#allocation2 + $0x10] sm:$0xff]
        %v1234 = vld [vmem:[#allocation2 + $0x18] sm:$0xff]
        %v1243 = vcombine.low %v1223, %v1224
        %v1244 = vcombine.low %v1225, %v1226
        %v1246 = vunpack.c.l.s4 1983009808
        %v1247 = vunpack.c.0.s8 %v1246
        %v1248 = vlaneseq
        %v1249 = vshrl.u32 %v1248, 7
        %v1250 = vsub.s32 %v1247, %v1249
        %v1251 = vrot.slane %v1243, %v1250
        %v1253 = vunpack.c.l.s4 1983009808
        %v1254 = vunpack.c.0.s8 %v1253
        %v1255 = vlaneseq
        %v1256 = vshrl.u32 %v1255, 7
        %v1257 = vsub.s32 %v1254, %v1256
        %v1258 = vrot.slane %v1244, %v1257
        %v1259 = vcombine.low %v1251, %v1258
        %v1260 = vcombine.low %v1227, %v1228
        %v1261 = vcombine.low %v1229, %v1230
        %v1263 = vunpack.c.l.s4 1983009808
        %v1264 = vunpack.c.0.s8 %v1263
        %v1265 = vlaneseq
        %v1266 = vshrl.u32 %v1265, 7
        %v1267 = vsub.s32 %v1264, %v1266
        %v1268 = vrot.slane %v1260, %v1267
        %v1270 = vunpack.c.l.s4 1983009808
        %v1271 = vunpack.c.0.s8 %v1270
        %v1272 = vlaneseq
        %v1273 = vshrl.u32 %v1272, 7
        %v1274 = vsub.s32 %v1271, %v1273
        %v1275 = vrot.slane %v1261, %v1274
        %v1276 = vcombine.low %v1268, %v1275
        %v1278 = vsel %vm308, %v1259, 0
        %v1281 = vsel %vm308, %v1276, 0
        %v1284 = vsel %vm378, %v1221, 0
        %1286 = vmatprep.subr.bf16.mxu0 0
        %1287 = vmatpush1.bf16.msra.mxu0 %v1284
        %1288 = vmatprep.subr.bf16.mxu0 0
        %1289 = vmatpush1.bf16.msra.mxu0 0
        %1290 = vmatprep.subr.bf16.mxu0 0
        %1291 = vmatpush1.bf16.msra.mxu0 0
        %1292 = vmatprep.subr.bf16.mxu0 0
        %1293 = vmatpush1.bf16.msra.mxu0 0
        %1294 = vmatprep.subr.bf16.mxu0 0
        %1295 = vmatpush1.bf16.msra.mxu0 0
        %1296 = vmatprep.subr.bf16.mxu0 0
        %1297 = vmatpush1.bf16.msra.mxu0 0
        %1298 = vmatprep.subr.bf16.mxu0 0
        %1299 = vmatpush1.bf16.msra.mxu0 0
        %1300 = vmatprep.subr.bf16.mxu0 0
        %1301 = vmatpush1.bf16.msra.mxu0 0
        %1302 = vmatprep.subr.bf16.mxu0 0
        %1303 = vmatpush1.bf16.msra.mxu0 0
        %1304 = vmatprep.subr.bf16.mxu0 0
        %1305 = vmatpush1.bf16.msra.mxu0 0
        %1306 = vmatprep.subr.bf16.mxu0 0
        %1307 = vmatpush1.bf16.msra.mxu0 0
        %1308 = vmatprep.subr.bf16.mxu0 0
        %1309 = vmatpush1.bf16.msra.mxu0 0
        %1310 = vmatprep.subr.bf16.mxu0 0
        %1311 = vmatpush1.bf16.msra.mxu0 0
        %1312 = vmatprep.subr.bf16.mxu0 0
        %1313 = vmatpush1.bf16.msra.mxu0 0
        %1314 = vmatprep.subr.bf16.mxu0 0
        %1315 = vmatpush1.bf16.msra.mxu0 0
        %1316 = vmatprep.subr.bf16.mxu0 0
        %1317 = vmatpush1.bf16.msra.mxu0 0
        %1318 = vmatprep.mubr.bf16.mxu0 0
        %1319 = vmatmul.mubr.bf16.gmra.mrb[0].mxu0 %v1278
        %v1320 = vpop.f32.mrb[0].mxu0
        %v1321 = vadd.f32 0.0, %v1320
        %v1322 = vpop.f32.mrb[0].mxu0
        %v1323 = vpop.f32.mrb[0].mxu0
        %v1324 = vadd.f32 0.0, %v1323
        %v1325 = vpop.f32.mrb[0].mxu0
        %1326 = vmatprep.mubr.bf16.mxu0 0
        %1327 = vmatmul.mubr.bf16.gmra.mrb[0].mxu0 %v1281
        %v1328 = vpop.f32.mrb[0].mxu0
        %v1329 = vadd.f32 0.0, %v1328
        %v1330 = vpop.f32.mrb[0].mxu0
        %v1331 = vpop.f32.mrb[0].mxu0
        %v1332 = vadd.f32 0.0, %v1331
        %v1333 = vpop.f32.mrb[0].mxu0
        %1334 = vdwg.mxu0
        %v1335 = vadd.f32 %v1231, %v1321
        %v1336 = vadd.f32 %v1232, %v1324
        %v1337 = vadd.f32 %v1233, %v1329
        %v1338 = vadd.f32 %v1234, %v1332
        %1339 = vst.msk [vmem:[#allocation2] sm:$0xff] %vm308, %v1335
        %1340 = vst.msk [vmem:[#allocation2 + $0x8] sm:$0xff] %vm308, %v1336
        %1341 = vst.msk [vmem:[#allocation2 + $0x10] sm:$0xff] %vm308, %v1337
        %1342 = vst.msk [vmem:[#allocation2 + $0x18] sm:$0xff] %vm308, %v1338
        %s1343 = scalar_lea.vmem %s295, 216
        %v1344 = vld [vmem:[%s1343] sm:$0x3]
        %v1345 = vld [vmem:[%s1343 + $0x4] sm:$0x3]
        %v1346 = vld [vmem:[%s1343 + $0x8] sm:$0x3]
        %v1347 = vld [vmem:[%s1343 + $0xc] sm:$0x3]
        %v1348 = vld [vmem:[%s1343 + $0x10] sm:$0x3]
        %v1349 = vld [vmem:[%s1343 + $0x14] sm:$0x3]
        %v1350 = vld [vmem:[%s1343 + $0x18] sm:$0x3]
        %v1351 = vld [vmem:[%s1343 + $0x1c] sm:$0x3]
        %v1352 = vld [vmem:[#allocation3] sm:$0xff]
        %v1353 = vld [vmem:[#allocation3 + $0x8] sm:$0xff]
        %v1354 = vld [vmem:[#allocation3 + $0x10] sm:$0xff]
        %v1355 = vld [vmem:[#allocation3 + $0x18] sm:$0xff]
        %v1364 = vcombine.low %v1344, %v1345
        %v1365 = vcombine.low %v1346, %v1347
        %v1367 = vunpack.c.l.s4 1983009808
        %v1368 = vunpack.c.0.s8 %v1367
        %v1369 = vlaneseq
        %v1370 = vshrl.u32 %v1369, 7
        %v1371 = vsub.s32 %v1368, %v1370
        %v1372 = vrot.slane %v1364, %v1371
        %v1374 = vunpack.c.l.s4 1983009808
        %v1375 = vunpack.c.0.s8 %v1374
        %v1376 = vlaneseq
        %v1377 = vshrl.u32 %v1376, 7
        %v1378 = vsub.s32 %v1375, %v1377
        %v1379 = vrot.slane %v1365, %v1378
        %v1380 = vcombine.low %v1372, %v1379
        %v1381 = vcombine.low %v1348, %v1349
        %v1382 = vcombine.low %v1350, %v1351
        %v1384 = vunpack.c.l.s4 1983009808
        %v1385 = vunpack.c.0.s8 %v1384
        %v1386 = vlaneseq
        %v1387 = vshrl.u32 %v1386, 7
        %v1388 = vsub.s32 %v1385, %v1387
        %v1389 = vrot.slane %v1381, %v1388
        %v1391 = vunpack.c.l.s4 1983009808
        %v1392 = vunpack.c.0.s8 %v1391
        %v1393 = vlaneseq
        %v1394 = vshrl.u32 %v1393, 7
        %v1395 = vsub.s32 %v1392, %v1394
        %v1396 = vrot.slane %v1382, %v1395
        %v1397 = vcombine.low %v1389, %v1396
        %v1399 = vsel %vm308, %v1380, 0
        %v1402 = vsel %vm308, %v1397, 0
        %1404 = vmatprep.subr.bf16.mxu0 0
        %1405 = vmatpush1.bf16.msra.mxu0 %v1284
        %1406 = vmatprep.subr.bf16.mxu0 0
        %1407 = vmatpush1.bf16.msra.mxu0 0
        %1408 = vmatprep.subr.bf16.mxu0 0
        %1409 = vmatpush1.bf16.msra.mxu0 0
        %1410 = vmatprep.subr.bf16.mxu0 0
        %1411 = vmatpush1.bf16.msra.mxu0 0
        %1412 = vmatprep.subr.bf16.mxu0 0
        %1413 = vmatpush1.bf16.msra.mxu0 0
        %1414 = vmatprep.subr.bf16.mxu0 0
        %1415 = vmatpush1.bf16.msra.mxu0 0
        %1416 = vmatprep.subr.bf16.mxu0 0
        %1417 = vmatpush1.bf16.msra.mxu0 0
        %1418 = vmatprep.subr.bf16.mxu0 0
        %1419 = vmatpush1.bf16.msra.mxu0 0
        %1420 = vmatprep.subr.bf16.mxu0 0
        %1421 = vmatpush1.bf16.msra.mxu0 0
        %1422 = vmatprep.subr.bf16.mxu0 0
        %1423 = vmatpush1.bf16.msra.mxu0 0
        %1424 = vmatprep.subr.bf16.mxu0 0
        %1425 = vmatpush1.bf16.msra.mxu0 0
        %1426 = vmatprep.subr.bf16.mxu0 0
        %1427 = vmatpush1.bf16.msra.mxu0 0
        %1428 = vmatprep.subr.bf16.mxu0 0
        %1429 = vmatpush1.bf16.msra.mxu0 0
        %1430 = vmatprep.subr.bf16.mxu0 0
        %1431 = vmatpush1.bf16.msra.mxu0 0
        %1432 = vmatprep.subr.bf16.mxu0 0
        %1433 = vmatpush1.bf16.msra.mxu0 0
        %1434 = vmatprep.subr.bf16.mxu0 0
        %1435 = vmatpush1.bf16.msra.mxu0 0
        %1436 = vmatprep.mubr.bf16.mxu0 0
        %1437 = vmatmul.mubr.bf16.gmra.mrb[0].mxu0 %v1399
        %v1438 = vpop.f32.mrb[0].mxu0
        %v1439 = vadd.f32 0.0, %v1438
        %v1440 = vpop.f32.mrb[0].mxu0
        %v1441 = vpop.f32.mrb[0].mxu0
        %v1442 = vadd.f32 0.0, %v1441
        %v1443 = vpop.f32.mrb[0].mxu0
        %1444 = vmatprep.mubr.bf16.mxu0 0
        %1445 = vmatmul.mubr.bf16.gmra.mrb[0].mxu0 %v1402
        %v1446 = vpop.f32.mrb[0].mxu0
        %v1447 = vadd.f32 0.0, %v1446
        %v1448 = vpop.f32.mrb[0].mxu0
        %v1449 = vpop.f32.mrb[0].mxu0
        %v1450 = vadd.f32 0.0, %v1449
        %v1451 = vpop.f32.mrb[0].mxu0
        %1452 = vdwg.mxu0
        %v1453 = vadd.f32 %v1352, %v1439
        %v1454 = vadd.f32 %v1353, %v1442
        %v1455 = vadd.f32 %v1354, %v1447
        %v1456 = vadd.f32 %v1355, %v1450
        %1457 = vst.msk [vmem:[#allocation3] sm:$0xff] %vm308, %v1453
        %1458 = vst.msk [vmem:[#allocation3 + $0x8] sm:$0xff] %vm308, %v1454
        %1459 = vst.msk [vmem:[#allocation3 + $0x10] sm:$0xff] %vm308, %v1455
        %1460 = vst.msk [vmem:[#allocation3 + $0x18] sm:$0xff] %vm308, %v1456
        %s1461 = scalar_lea.vmem %s1, 16
        %v1462 = vld [vmem:[%s1461] sm:$0xf]
        %s1463 = scalar_lea.vmem %s295, 180
        %v1464 = vld [vmem:[%s1463] sm:$0x3]
        %v1465 = vld [vmem:[%s1463 + $0x4] sm:$0x3]
        %v1466 = vld [vmem:[%s1463 + $0x8] sm:$0x3]
        %v1467 = vld [vmem:[%s1463 + $0xc] sm:$0x3]
        %v1468 = vld [vmem:[%s1463 + $0x10] sm:$0x3]
        %v1469 = vld [vmem:[%s1463 + $0x14] sm:$0x3]
        %v1470 = vld [vmem:[%s1463 + $0x18] sm:$0x3]
        %v1471 = vld [vmem:[%s1463 + $0x1c] sm:$0x3]
        %v1472 = vld [vmem:[#allocation2] sm:$0xff]
        %v1473 = vld [vmem:[#allocation2 + $0x8] sm:$0xff]
        %v1474 = vld [vmem:[#allocation2 + $0x10] sm:$0xff]
        %v1475 = vld [vmem:[#allocation2 + $0x18] sm:$0xff]
        %v1484 = vcombine.low %v1464, %v1465
        %v1485 = vcombine.low %v1466, %v1467
        %v1487 = vunpack.c.l.s4 1983009808
        %v1488 = vunpack.c.0.s8 %v1487
        %v1489 = vlaneseq
        %v1490 = vshrl.u32 %v1489, 7
        %v1491 = vsub.s32 %v1488, %v1490
        %v1492 = vrot.slane %v1484, %v1491
        %v1494 = vunpack.c.l.s4 1983009808
        %v1495 = vunpack.c.0.s8 %v1494
        %v1496 = vlaneseq
        %v1497 = vshrl.u32 %v1496, 7
        %v1498 = vsub.s32 %v1495, %v1497
        %v1499 = vrot.slane %v1485, %v1498
        %v1500 = vcombine.low %v1492, %v1499
        %v1501 = vcombine.low %v1468, %v1469
        %v1502 = vcombine.low %v1470, %v1471
        %v1504 = vunpack.c.l.s4 1983009808
        %v1505 = vunpack.c.0.s8 %v1504
        %v1506 = vlaneseq
        %v1507 = vshrl.u32 %v1506, 7
        %v1508 = vsub.s32 %v1505, %v1507
        %v1509 = vrot.slane %v1501, %v1508
        %v1511 = vunpack.c.l.s4 1983009808
        %v1512 = vunpack.c.0.s8 %v1511
        %v1513 = vlaneseq
        %v1514 = vshrl.u32 %v1513, 7
        %v1515 = vsub.s32 %v1512, %v1514
        %v1516 = vrot.slane %v1502, %v1515
        %v1517 = vcombine.low %v1509, %v1516
        %v1519 = vsel %vm308, %v1500, 0
        %v1522 = vsel %vm308, %v1517, 0
        %v1525 = vsel %vm378, %v1462, 0
        %1527 = vmatprep.subr.bf16.mxu0 0
        %1528 = vmatpush1.bf16.msra.mxu0 %v1525
        %1529 = vmatprep.subr.bf16.mxu0 0
        %1530 = vmatpush1.bf16.msra.mxu0 0
        %1531 = vmatprep.subr.bf16.mxu0 0
        %1532 = vmatpush1.bf16.msra.mxu0 0
        %1533 = vmatprep.subr.bf16.mxu0 0
        %1534 = vmatpush1.bf16.msra.mxu0 0
        %1535 = vmatprep.subr.bf16.mxu0 0
        %1536 = vmatpush1.bf16.msra.mxu0 0
        %1537 = vmatprep.subr.bf16.mxu0 0
        %1538 = vmatpush1.bf16.msra.mxu0 0
        %1539 = vmatprep.subr.bf16.mxu0 0
        %1540 = vmatpush1.bf16.msra.mxu0 0
        %1541 = vmatprep.subr.bf16.mxu0 0
        %1542 = vmatpush1.bf16.msra.mxu0 0
        %1543 = vmatprep.subr.bf16.mxu0 0
        %1544 = vmatpush1.bf16.msra.mxu0 0
        %1545 = vmatprep.subr.bf16.mxu0 0
        %1546 = vmatpush1.bf16.msra.mxu0 0
        %1547 = vmatprep.subr.bf16.mxu0 0
        %1548 = vmatpush1.bf16.msra.mxu0 0
        %1549 = vmatprep.subr.bf16.mxu0 0
        %1550 = vmatpush1.bf16.msra.mxu0 0
        %1551 = vmatprep.subr.bf16.mxu0 0
        %1552 = vmatpush1.bf16.msra.mxu0 0
        %1553 = vmatprep.subr.bf16.mxu0 0
        %1554 = vmatpush1.bf16.msra.mxu0 0
        %1555 = vmatprep.subr.bf16.mxu0 0
        %1556 = vmatpush1.bf16.msra.mxu0 0
        %1557 = vmatprep.subr.bf16.mxu0 0
        %1558 = vmatpush1.bf16.msra.mxu0 0
        %1559 = vmatprep.mubr.bf16.mxu0 0
        %1560 = vmatmul.mubr.bf16.gmra.mrb[0].mxu0 %v1519
        %v1561 = vpop.f32.mrb[0].mxu0
        %v1562 = vadd.f32 0.0, %v1561
        %v1563 = vpop.f32.mrb[0].mxu0
        %v1564 = vpop.f32.mrb[0].mxu0
        %v1565 = vadd.f32 0.0, %v1564
        %v1566 = vpop.f32.mrb[0].mxu0
        %1567 = vmatprep.mubr.bf16.mxu0 0
        %1568 = vmatmul.mubr.bf16.gmra.mrb[0].mxu0 %v1522
        %v1569 = vpop.f32.mrb[0].mxu0
        %v1570 = vadd.f32 0.0, %v1569
        %v1571 = vpop.f32.mrb[0].mxu0
        %v1572 = vpop.f32.mrb[0].mxu0
        %v1573 = vadd.f32 0.0, %v1572
        %v1574 = vpop.f32.mrb[0].mxu0
        %1575 = vdwg.mxu0
        %v1576 = vadd.f32 %v1472, %v1562
        %v1577 = vadd.f32 %v1473, %v1565
        %v1578 = vadd.f32 %v1474, %v1570
        %v1579 = vadd.f32 %v1475, %v1573
        %1580 = vst.msk [vmem:[#allocation2] sm:$0xff] %vm308, %v1576
        %1581 = vst.msk [vmem:[#allocation2 + $0x8] sm:$0xff] %vm308, %v1577
        %1582 = vst.msk [vmem:[#allocation2 + $0x10] sm:$0xff] %vm308, %v1578
        %1583 = vst.msk [vmem:[#allocation2 + $0x18] sm:$0xff] %vm308, %v1579
        %s1584 = scalar_lea.vmem %s295, 252
        %v1585 = vld [vmem:[%s1584] sm:$0x3]
        %v1586 = vld [vmem:[%s1584 + $0x4] sm:$0x3]
        %v1587 = vld [vmem:[%s1584 + $0x8] sm:$0x3]
        %v1588 = vld [vmem:[%s1584 + $0xc] sm:$0x3]
        %v1589 = vld [vmem:[%s1584 + $0x10] sm:$0x3]
        %v1590 = vld [vmem:[%s1584 + $0x14] sm:$0x3]
        %v1591 = vld [vmem:[%s1584 + $0x18] sm:$0x3]
        %v1592 = vld [vmem:[%s1584 + $0x1c] sm:$0x3]
        %v1593 = vld [vmem:[#allocation3] sm:$0xff]
        %v1594 = vld [vmem:[#allocation3 + $0x8] sm:$0xff]
        %v1595 = vld [vmem:[#allocation3 + $0x10] sm:$0xff]
        %v1596 = vld [vmem:[#allocation3 + $0x18] sm:$0xff]
        %v1605 = vcombine.low %v1585, %v1586
        %v1606 = vcombine.low %v1587, %v1588
        %v1608 = vunpack.c.l.s4 1983009808
        %v1609 = vunpack.c.0.s8 %v1608
        %v1610 = vlaneseq
        %v1611 = vshrl.u32 %v1610, 7
        %v1612 = vsub.s32 %v1609, %v1611
        %v1613 = vrot.slane %v1605, %v1612
        %v1615 = vunpack.c.l.s4 1983009808
        %v1616 = vunpack.c.0.s8 %v1615
        %v1617 = vlaneseq
        %v1618 = vshrl.u32 %v1617, 7
        %v1619 = vsub.s32 %v1616, %v1618
        %v1620 = vrot.slane %v1606, %v1619
        %v1621 = vcombine.low %v1613, %v1620
        %v1622 = vcombine.low %v1589, %v1590
        %v1623 = vcombine.low %v1591, %v1592
        %v1625 = vunpack.c.l.s4 1983009808
        %v1626 = vunpack.c.0.s8 %v1625
        %v1627 = vlaneseq
        %v1628 = vshrl.u32 %v1627, 7
        %v1629 = vsub.s32 %v1626, %v1628
        %v1630 = vrot.slane %v1622, %v1629
        %v1632 = vunpack.c.l.s4 1983009808
        %v1633 = vunpack.c.0.s8 %v1632
        %v1634 = vlaneseq
        %v1635 = vshrl.u32 %v1634, 7
        %v1636 = vsub.s32 %v1633, %v1635
        %v1637 = vrot.slane %v1623, %v1636
        %v1638 = vcombine.low %v1630, %v1637
        %v1640 = vsel %vm308, %v1621, 0
        %v1643 = vsel %vm308, %v1638, 0
        %1645 = vmatprep.subr.bf16.mxu0 0
        %1646 = vmatpush1.bf16.msra.mxu0 %v1525
        %1647 = vmatprep.subr.bf16.mxu0 0
        %1648 = vmatpush1.bf16.msra.mxu0 0
        %1649 = vmatprep.subr.bf16.mxu0 0
        %1650 = vmatpush1.bf16.msra.mxu0 0
        %1651 = vmatprep.subr.bf16.mxu0 0
        %1652 = vmatpush1.bf16.msra.mxu0 0
        %1653 = vmatprep.subr.bf16.mxu0 0
        %1654 = vmatpush1.bf16.msra.mxu0 0
        %1655 = vmatprep.subr.bf16.mxu0 0
        %1656 = vmatpush1.bf16.msra.mxu0 0
        %1657 = vmatprep.subr.bf16.mxu0 0
        %1658 = vmatpush1.bf16.msra.mxu0 0
        %1659 = vmatprep.subr.bf16.mxu0 0
        %1660 = vmatpush1.bf16.msra.mxu0 0
        %1661 = vmatprep.subr.bf16.mxu0 0
        %1662 = vmatpush1.bf16.msra.mxu0 0
        %1663 = vmatprep.subr.bf16.mxu0 0
        %1664 = vmatpush1.bf16.msra.mxu0 0
        %1665 = vmatprep.subr.bf16.mxu0 0
        %1666 = vmatpush1.bf16.msra.mxu0 0
        %1667 = vmatprep.subr.bf16.mxu0 0
        %1668 = vmatpush1.bf16.msra.mxu0 0
        %1669 = vmatprep.subr.bf16.mxu0 0
        %1670 = vmatpush1.bf16.msra.mxu0 0
        %1671 = vmatprep.subr.bf16.mxu0 0
        %1672 = vmatpush1.bf16.msra.mxu0 0
        %1673 = vmatprep.subr.bf16.mxu0 0
        %1674 = vmatpush1.bf16.msra.mxu0 0
        %1675 = vmatprep.subr.bf16.mxu0 0
        %1676 = vmatpush1.bf16.msra.mxu0 0
        %1677 = vmatprep.mubr.bf16.mxu0 0
        %1678 = vmatmul.mubr.bf16.gmra.mrb[0].mxu0 %v1640
        %v1679 = vpop.f32.mrb[0].mxu0
        %v1680 = vadd.f32 0.0, %v1679
        %v1681 = vpop.f32.mrb[0].mxu0
        %v1682 = vpop.f32.mrb[0].mxu0
        %v1683 = vadd.f32 0.0, %v1682
        %v1684 = vpop.f32.mrb[0].mxu0
        %1685 = vmatprep.mubr.bf16.mxu0 0
        %1686 = vmatmul.mubr.bf16.gmra.mrb[0].mxu0 %v1643
        %v1687 = vpop.f32.mrb[0].mxu0
        %v1688 = vadd.f32 0.0, %v1687
        %v1689 = vpop.f32.mrb[0].mxu0
        %v1690 = vpop.f32.mrb[0].mxu0
        %v1691 = vadd.f32 0.0, %v1690
        %v1692 = vpop.f32.mrb[0].mxu0
        %1693 = vdwg.mxu0
        %v1694 = vadd.f32 %v1593, %v1680
        %v1695 = vadd.f32 %v1594, %v1683
        %v1696 = vadd.f32 %v1595, %v1688
        %v1697 = vadd.f32 %v1596, %v1691
        %1698 = vst.msk [vmem:[#allocation3] sm:$0xff] %vm308, %v1694
        %1699 = vst.msk [vmem:[#allocation3 + $0x8] sm:$0xff] %vm308, %v1695
        %1700 = vst.msk [vmem:[#allocation3 + $0x10] sm:$0xff] %vm308, %v1696
        %1701 = vst.msk [vmem:[#allocation3 + $0x18] sm:$0xff] %vm308, %v1697
        %s1702 = scalar_lea.vmem %s1, 20
        %v1703 = vld [vmem:[%s1702] sm:$0xf]
        %v1704 = vld [vmem:[%s1343] sm:$0x3]
        %v1705 = vld [vmem:[%s1343 + $0x4] sm:$0x3]
        %v1706 = vld [vmem:[%s1343 + $0x8] sm:$0x3]
        %v1707 = vld [vmem:[%s1343 + $0xc] sm:$0x3]
        %v1708 = vld [vmem:[%s1343 + $0x10] sm:$0x3]
        %v1709 = vld [vmem:[%s1343 + $0x14] sm:$0x3]
        %v1710 = vld [vmem:[%s1343 + $0x18] sm:$0x3]
        %v1711 = vld [vmem:[%s1343 + $0x1c] sm:$0x3]
        %v1712 = vld [vmem:[#allocation2] sm:$0xff]
        %v1713 = vld [vmem:[#allocation2 + $0x8] sm:$0xff]
        %v1714 = vld [vmem:[#allocation2 + $0x10] sm:$0xff]
        %v1715 = vld [vmem:[#allocation2 + $0x18] sm:$0xff]
        %v1724 = vcombine.low %v1704, %v1705
        %v1725 = vcombine.low %v1706, %v1707
        %v1727 = vunpack.c.l.s4 1983009808
        %v1728 = vunpack.c.0.s8 %v1727
        %v1729 = vlaneseq
        %v1730 = vshrl.u32 %v1729, 7
        %v1731 = vsub.s32 %v1728, %v1730
        %v1732 = vrot.slane %v1724, %v1731
        %v1734 = vunpack.c.l.s4 1983009808
        %v1735 = vunpack.c.0.s8 %v1734
        %v1736 = vlaneseq
        %v1737 = vshrl.u32 %v1736, 7
        %v1738 = vsub.s32 %v1735, %v1737
        %v1739 = vrot.slane %v1725, %v1738
        %v1740 = vcombine.low %v1732, %v1739
        %v1741 = vcombine.low %v1708, %v1709
        %v1742 = vcombine.low %v1710, %v1711
        %v1744 = vunpack.c.l.s4 1983009808
        %v1745 = vunpack.c.0.s8 %v1744
        %v1746 = vlaneseq
        %v1747 = vshrl.u32 %v1746, 7
        %v1748 = vsub.s32 %v1745, %v1747
        %v1749 = vrot.slane %v1741, %v1748
        %v1751 = vunpack.c.l.s4 1983009808
        %v1752 = vunpack.c.0.s8 %v1751
        %v1753 = vlaneseq
        %v1754 = vshrl.u32 %v1753, 7
        %v1755 = vsub.s32 %v1752, %v1754
        %v1756 = vrot.slane %v1742, %v1755
        %v1757 = vcombine.low %v1749, %v1756
        %v1759 = vsel %vm308, %v1740, 0
        %v1762 = vsel %vm308, %v1757, 0
        %v1765 = vsel %vm378, %v1703, 0
        %1767 = vmatprep.subr.bf16.mxu0 0
        %1768 = vmatpush1.bf16.msra.mxu0 %v1765
        %1769 = vmatprep.subr.bf16.mxu0 0
        %1770 = vmatpush1.bf16.msra.mxu0 0
        %1771 = vmatprep.subr.bf16.mxu0 0
        %1772 = vmatpush1.bf16.msra.mxu0 0
        %1773 = vmatprep.subr.bf16.mxu0 0
        %1774 = vmatpush1.bf16.msra.mxu0 0
        %1775 = vmatprep.subr.bf16.mxu0 0
        %1776 = vmatpush1.bf16.msra.mxu0 0
        %1777 = vmatprep.subr.bf16.mxu0 0
        %1778 = vmatpush1.bf16.msra.mxu0 0
        %1779 = vmatprep.subr.bf16.mxu0 0
        %1780 = vmatpush1.bf16.msra.mxu0 0
        %1781 = vmatprep.subr.bf16.mxu0 0
        %1782 = vmatpush1.bf16.msra.mxu0 0
        %1783 = vmatprep.subr.bf16.mxu0 0
        %1784 = vmatpush1.bf16.msra.mxu0 0
        %1785 = vmatprep.subr.bf16.mxu0 0
        %1786 = vmatpush1.bf16.msra.mxu0 0
        %1787 = vmatprep.subr.bf16.mxu0 0
        %1788 = vmatpush1.bf16.msra.mxu0 0
        %1789 = vmatprep.subr.bf16.mxu0 0
        %1790 = vmatpush1.bf16.msra.mxu0 0
        %1791 = vmatprep.subr.bf16.mxu0 0
        %1792 = vmatpush1.bf16.msra.mxu0 0
        %1793 = vmatprep.subr.bf16.mxu0 0
        %1794 = vmatpush1.bf16.msra.mxu0 0
        %1795 = vmatprep.subr.bf16.mxu0 0
        %1796 = vmatpush1.bf16.msra.mxu0 0
        %1797 = vmatprep.subr.bf16.mxu0 0
        %1798 = vmatpush1.bf16.msra.mxu0 0
        %1799 = vmatprep.mubr.bf16.mxu0 0
        %1800 = vmatmul.mubr.bf16.gmra.mrb[0].mxu0 %v1759
        %v1801 = vpop.f32.mrb[0].mxu0
        %v1802 = vadd.f32 0.0, %v1801
        %v1803 = vpop.f32.mrb[0].mxu0
        %v1804 = vpop.f32.mrb[0].mxu0
        %v1805 = vadd.f32 0.0, %v1804
        %v1806 = vpop.f32.mrb[0].mxu0
        %1807 = vmatprep.mubr.bf16.mxu0 0
        %1808 = vmatmul.mubr.bf16.gmra.mrb[0].mxu0 %v1762
        %v1809 = vpop.f32.mrb[0].mxu0
        %v1810 = vadd.f32 0.0, %v1809
        %v1811 = vpop.f32.mrb[0].mxu0
        %v1812 = vpop.f32.mrb[0].mxu0
        %v1813 = vadd.f32 0.0, %v1812
        %v1814 = vpop.f32.mrb[0].mxu0
        %1815 = vdwg.mxu0
        %v1816 = vadd.f32 %v1712, %v1802
        %v1817 = vadd.f32 %v1713, %v1805
        %v1818 = vadd.f32 %v1714, %v1810
        %v1819 = vadd.f32 %v1715, %v1813
        %1820 = vst.msk [vmem:[#allocation2] sm:$0xff] %vm308, %v1816
        %1821 = vst.msk [vmem:[#allocation2 + $0x8] sm:$0xff] %vm308, %v1817
        %1822 = vst.msk [vmem:[#allocation2 + $0x10] sm:$0xff] %vm308, %v1818
        %1823 = vst.msk [vmem:[#allocation2 + $0x18] sm:$0xff] %vm308, %v1819
        %v1824 = vld [vmem:[%s1222] sm:$0x7]
        %v1825 = vld [vmem:[%s1222 + $0x4] sm:$0x7]
        %v1826 = vld [vmem:[%s1222 + $0x8] sm:$0x7]
        %v1827 = vld [vmem:[%s1222 + $0xc] sm:$0x7]
        %v1828 = vld [vmem:[%s1222 + $0x10] sm:$0x7]
        %v1829 = vld [vmem:[%s1222 + $0x14] sm:$0x7]
        %v1830 = vld [vmem:[%s1222 + $0x18] sm:$0x7]
        %v1831 = vld [vmem:[%s1222 + $0x1c] sm:$0x7]
        %v1841 = vunpack.c.l.s4 1983009808
        %v1842 = vunpack.c.0.s8 %v1841
        %v1843 = vlaneseq
        %v1844 = vshrl.u32 %v1843, 7
        %v1845 = vsub.s32 %v1842, %v1844
        %v1846 = vrot.slane %v1824, %v1845
        %v1847 = vcombine.high %v1846, %v1846
        %v1849 = vunpack.c.l.s4 1983009808
        %v1850 = vunpack.c.0.s8 %v1849
        %v1851 = vlaneseq
        %v1852 = vshrl.u32 %v1851, 7
        %v1853 = vsub.s32 %v1850, %v1852
        %v1854 = vrot.slane %v1825, %v1853
        %v1855 = vcombine.high %v1854, %v1854
        %v1857 = vunpack.c.l.s4 1983009808
        %v1858 = vunpack.c.0.s8 %v1857
        %v1859 = vlaneseq
        %v1860 = vshrl.u32 %v1859, 7
        %v1861 = vsub.s32 %v1858, %v1860
        %v1862 = vrot.slane %v1826, %v1861
        %v1863 = vcombine.high %v1862, %v1862
        %v1865 = vunpack.c.l.s4 1983009808
        %v1866 = vunpack.c.0.s8 %v1865
        %v1867 = vlaneseq
        %v1868 = vshrl.u32 %v1867, 7
        %v1869 = vsub.s32 %v1866, %v1868
        %v1870 = vrot.slane %v1827, %v1869
        %v1871 = vcombine.high %v1870, %v1870
        %v1873 = vunpack.c.l.s4 1983009808
        %v1874 = vunpack.c.0.s8 %v1873
        %v1875 = vlaneseq
        %v1876 = vshrl.u32 %v1875, 7
        %v1877 = vsub.s32 %v1874, %v1876
        %v1878 = vrot.slane %v1828, %v1877
        %v1879 = vcombine.high %v1878, %v1878
        %v1881 = vunpack.c.l.s4 1983009808
        %v1882 = vunpack.c.0.s8 %v1881
        %v1883 = vlaneseq
        %v1884 = vshrl.u32 %v1883, 7
        %v1885 = vsub.s32 %v1882, %v1884
        %v1886 = vrot.slane %v1829, %v1885
        %v1887 = vcombine.high %v1886, %v1886
        %v1889 = vunpack.c.l.s4 1983009808
        %v1890 = vunpack.c.0.s8 %v1889
        %v1891 = vlaneseq
        %v1892 = vshrl.u32 %v1891, 7
        %v1893 = vsub.s32 %v1890, %v1892
        %v1894 = vrot.slane %v1830, %v1893
        %v1895 = vcombine.high %v1894, %v1894
        %v1897 = vunpack.c.l.s4 1983009808
        %v1898 = vunpack.c.0.s8 %v1897
        %v1899 = vlaneseq
        %v1900 = vshrl.u32 %v1899, 7
        %v1901 = vsub.s32 %v1898, %v1900
        %v1902 = vrot.slane %v1831, %v1901
        %v1903 = vcombine.high %v1902, %v1902
        %v1905 = vshrl.u32 %v1846, 16
        %v1907 = vrot.slane %v1905, 6
        %v1908 = vshll.u32 %v1846, 16
        %v1910 = vrot.slane %v1908, 7
        %v1911 = vor.u32 %v1907, %v1910
        %v1912 = vrot.slane %v1911, 2
        %v1914 = vshll.u32 %v1847, 16
        %v1916 = vrot.slane %v1914, 7
        %v1917 = vsel %vm1006, %v1912, %v1916
        %v1919 = vshrl.u32 %v1854, 16
        %v1921 = vrot.slane %v1919, 6
        %v1922 = vshll.u32 %v1854, 16
        %v1924 = vrot.slane %v1922, 7
        %v1925 = vor.u32 %v1921, %v1924
        %v1926 = vrot.slane %v1925, 2
        %v1928 = vshll.u32 %v1855, 16
        %v1930 = vrot.slane %v1928, 7
        %v1931 = vsel %vm1006, %v1926, %v1930
        %v1933 = vshrl.u32 %v1862, 16
        %v1935 = vrot.slane %v1933, 6
        %v1936 = vshll.u32 %v1862, 16
        %v1938 = vrot.slane %v1936, 7
        %v1939 = vor.u32 %v1935, %v1938
        %v1940 = vrot.slane %v1939, 2
        %v1942 = vshll.u32 %v1863, 16
        %v1944 = vrot.slane %v1942, 7
        %v1945 = vsel %vm1006, %v1940, %v1944
        %v1947 = vshrl.u32 %v1870, 16
        %v1949 = vrot.slane %v1947, 6
        %v1950 = vshll.u32 %v1870, 16
        %v1952 = vrot.slane %v1950, 7
        %v1953 = vor.u32 %v1949, %v1952
        %v1954 = vrot.slane %v1953, 2
        %v1956 = vshll.u32 %v1871, 16
        %v1958 = vrot.slane %v1956, 7
        %v1959 = vsel %vm1006, %v1954, %v1958
        %v1961 = vshrl.u32 %v1878, 16
        %v1963 = vrot.slane %v1961, 6
        %v1964 = vshll.u32 %v1878, 16
        %v1966 = vrot.slane %v1964, 7
        %v1967 = vor.u32 %v1963, %v1966
        %v1968 = vrot.slane %v1967, 2
        %v1970 = vshll.u32 %v1879, 16
        %v1972 = vrot.slane %v1970, 7
        %v1973 = vsel %vm1006, %v1968, %v1972
        %v1975 = vshrl.u32 %v1886, 16
        %v1977 = vrot.slane %v1975, 6
        %v1978 = vshll.u32 %v1886, 16
        %v1980 = vrot.slane %v1978, 7
        %v1981 = vor.u32 %v1977, %v1980
        %v1982 = vrot.slane %v1981, 2
        %v1984 = vshll.u32 %v1887, 16
        %v1986 = vrot.slane %v1984, 7
        %v1987 = vsel %vm1006, %v1982, %v1986
        %v1989 = vshrl.u32 %v1894, 16
        %v1991 = vrot.slane %v1989, 6
        %v1992 = vshll.u32 %v1894, 16
        %v1994 = vrot.slane %v1992, 7
        %v1995 = vor.u32 %v1991, %v1994
        %v1996 = vrot.slane %v1995, 2
        %v1998 = vshll.u32 %v1895, 16
        %v2000 = vrot.slane %v1998, 7
        %v2001 = vsel %vm1006, %v1996, %v2000
        %v2003 = vshrl.u32 %v1902, 16
        %v2005 = vrot.slane %v2003, 6
        %v2006 = vshll.u32 %v1902, 16
        %v2008 = vrot.slane %v2006, 7
        %v2009 = vor.u32 %v2005, %v2008
        %v2010 = vrot.slane %v2009, 2
        %v2012 = vshll.u32 %v1903, 16
        %v2014 = vrot.slane %v2012, 7
        %v2015 = vsel %vm1006, %v2010, %v2014
        %v2016 = vld [vmem:[#allocation3] sm:$0xff]
        %v2017 = vld [vmem:[#allocation3 + $0x8] sm:$0xff]
        %v2018 = vld [vmem:[#allocation3 + $0x10] sm:$0xff]
        %v2019 = vld [vmem:[#allocation3 + $0x18] sm:$0xff]
        %v2020 = vcombine.low %v1917, %v1931
        %v2021 = vcombine.low %v1945, %v1959
        %v2023 = vunpack.c.l.s4 1983009808
        %v2024 = vunpack.c.0.s8 %v2023
        %v2025 = vlaneseq
        %v2026 = vshrl.u32 %v2025, 7
        %v2027 = vsub.s32 %v2024, %v2026
        %v2028 = vrot.slane %v2020, %v2027
        %v2030 = vunpack.c.l.s4 1983009808
        %v2031 = vunpack.c.0.s8 %v2030
        %v2032 = vlaneseq
        %v2033 = vshrl.u32 %v2032, 7
        %v2034 = vsub.s32 %v2031, %v2033
        %v2035 = vrot.slane %v2021, %v2034
        %v2036 = vcombine.low %v2028, %v2035
        %v2037 = vcombine.low %v1973, %v1987
        %v2038 = vcombine.low %v2001, %v2015
        %v2040 = vunpack.c.l.s4 1983009808
        %v2041 = vunpack.c.0.s8 %v2040
        %v2042 = vlaneseq
        %v2043 = vshrl.u32 %v2042, 7
        %v2044 = vsub.s32 %v2041, %v2043
        %v2045 = vrot.slane %v2037, %v2044
        %v2047 = vunpack.c.l.s4 1983009808
        %v2048 = vunpack.c.0.s8 %v2047
        %v2049 = vlaneseq
        %v2050 = vshrl.u32 %v2049, 7
        %v2051 = vsub.s32 %v2048, %v2050
        %v2052 = vrot.slane %v2038, %v2051
        %v2053 = vcombine.low %v2045, %v2052
        %v2055 = vsel %vm308, %v2036, 0
        %v2058 = vsel %vm308, %v2053, 0
        %2060 = vmatprep.subr.bf16.mxu0 0
        %2061 = vmatpush1.bf16.msra.mxu0 %v1765
        %2062 = vmatprep.subr.bf16.mxu0 0
        %2063 = vmatpush1.bf16.msra.mxu0 0
        %2064 = vmatprep.subr.bf16.mxu0 0
        %2065 = vmatpush1.bf16.msra.mxu0 0
        %2066 = vmatprep.subr.bf16.mxu0 0
        %2067 = vmatpush1.bf16.msra.mxu0 0
        %2068 = vmatprep.subr.bf16.mxu0 0
        %2069 = vmatpush1.bf16.msra.mxu0 0
        %2070 = vmatprep.subr.bf16.mxu0 0
        %2071 = vmatpush1.bf16.msra.mxu0 0
        %2072 = vmatprep.subr.bf16.mxu0 0
        %2073 = vmatpush1.bf16.msra.mxu0 0
        %2074 = vmatprep.subr.bf16.mxu0 0
        %2075 = vmatpush1.bf16.msra.mxu0 0
        %2076 = vmatprep.subr.bf16.mxu0 0
        %2077 = vmatpush1.bf16.msra.mxu0 0
        %2078 = vmatprep.subr.bf16.mxu0 0
        %2079 = vmatpush1.bf16.msra.mxu0 0
        %2080 = vmatprep.subr.bf16.mxu0 0
        %2081 = vmatpush1.bf16.msra.mxu0 0
        %2082 = vmatprep.subr.bf16.mxu0 0
        %2083 = vmatpush1.bf16.msra.mxu0 0
        %2084 = vmatprep.subr.bf16.mxu0 0
        %2085 = vmatpush1.bf16.msra.mxu0 0
        %2086 = vmatprep.subr.bf16.mxu0 0
        %2087 = vmatpush1.bf16.msra.mxu0 0
        %2088 = vmatprep.subr.bf16.mxu0 0
        %2089 = vmatpush1.bf16.msra.mxu0 0
        %2090 = vmatprep.subr.bf16.mxu0 0
        %2091 = vmatpush1.bf16.msra.mxu0 0
        %2092 = vmatprep.mubr.bf16.mxu0 0
        %2093 = vmatmul.mubr.bf16.gmra.mrb[0].mxu0 %v2055
        %v2094 = vpop.f32.mrb[0].mxu0
        %v2095 = vadd.f32 0.0, %v2094
        %v2096 = vpop.f32.mrb[0].mxu0
        %v2097 = vpop.f32.mrb[0].mxu0
        %v2098 = vadd.f32 0.0, %v2097
        %v2099 = vpop.f32.mrb[0].mxu0
        %2100 = vmatprep.mubr.bf16.mxu0 0
        %2101 = vmatmul.mubr.bf16.gmra.mrb[0].mxu0 %v2058
        %v2102 = vpop.f32.mrb[0].mxu0
        %v2103 = vadd.f32 0.0, %v2102
        %v2104 = vpop.f32.mrb[0].mxu0
        %v2105 = vpop.f32.mrb[0].mxu0
        %v2106 = vadd.f32 0.0, %v2105
        %v2107 = vpop.f32.mrb[0].mxu0
        %2108 = vdwg.mxu0
        %v2109 = vadd.f32 %v2016, %v2095
        %v2110 = vadd.f32 %v2017, %v2098
        %v2111 = vadd.f32 %v2018, %v2103
        %v2112 = vadd.f32 %v2019, %v2106
        %2113 = vst.msk [vmem:[#allocation3] sm:$0xff] %vm308, %v2109
        %2114 = vst.msk [vmem:[#allocation3 + $0x8] sm:$0xff] %vm308, %v2110
        %2115 = vst.msk [vmem:[#allocation3 + $0x10] sm:$0xff] %vm308, %v2111
        %2116 = vst.msk [vmem:[#allocation3 + $0x18] sm:$0xff] %vm308, %v2112
        %s2117 = scalar_lea.vmem %s1, 24
        %v2118 = vld [vmem:[%s2117] sm:$0xf]
        %s2119 = scalar_lea.vmem %s295, 4
        %v2120 = vld [vmem:[%s2119] sm:$0x3]
        %v2121 = vld [vmem:[%s2119 + $0x4] sm:$0x3]
        %v2122 = vld [vmem:[%s2119 + $0x8] sm:$0x3]
        %v2123 = vld [vmem:[%s2119 + $0xc] sm:$0x3]
        %v2124 = vld [vmem:[%s2119 + $0x10] sm:$0x3]
        %v2125 = vld [vmem:[%s2119 + $0x14] sm:$0x3]
        %v2126 = vld [vmem:[%s2119 + $0x18] sm:$0x3]
        %v2127 = vld [vmem:[%s2119 + $0x1c] sm:$0x3]
        %v2128 = vld [vmem:[#allocation2] sm:$0xff]
        %v2129 = vld [vmem:[#allocation2 + $0x8] sm:$0xff]
        %v2130 = vld [vmem:[#allocation2 + $0x10] sm:$0xff]
        %v2131 = vld [vmem:[#allocation2 + $0x18] sm:$0xff]
        %v2140 = vcombine.low %v2120, %v2121
        %v2141 = vcombine.low %v2122, %v2123
        %v2143 = vunpack.c.l.s4 1983009808
        %v2144 = vunpack.c.0.s8 %v2143
        %v2145 = vlaneseq
        %v2146 = vshrl.u32 %v2145, 7
        %v2147 = vsub.s32 %v2144, %v2146
        %v2148 = vrot.slane %v2140, %v2147
        %v2150 = vunpack.c.l.s4 1983009808
        %v2151 = vunpack.c.0.s8 %v2150
        %v2152 = vlaneseq
        %v2153 = vshrl.u32 %v2152, 7
        %v2154 = vsub.s32 %v2151, %v2153
        %v2155 = vrot.slane %v2141, %v2154
        %v2156 = vcombine.low %v2148, %v2155
        %v2157 = vcombine.low %v2124, %v2125
        %v2158 = vcombine.low %v2126, %v2127
        %v2160 = vunpack.c.l.s4 1983009808
        %v2161 = vunpack.c.0.s8 %v2160
        %v2162 = vlaneseq
        %v2163 = vshrl.u32 %v2162, 7
        %v2164 = vsub.s32 %v2161, %v2163
        %v2165 = vrot.slane %v2157, %v2164
        %v2167 = vunpack.c.l.s4 1983009808
        %v2168 = vunpack.c.0.s8 %v2167
        %v2169 = vlaneseq
        %v2170 = vshrl.u32 %v2169, 7
        %v2171 = vsub.s32 %v2168, %v2170
        %v2172 = vrot.slane %v2158, %v2171
        %v2173 = vcombine.low %v2165, %v2172
        %v2175 = vsel %vm308, %v2156, 0
        %v2178 = vsel %vm308, %v2173, 0
        %v2181 = vsel %vm378, %v2118, 0
        %2183 = vmatprep.subr.bf16.mxu0 0
        %2184 = vmatpush1.bf16.msra.mxu0 %v2181
        %2185 = vmatprep.subr.bf16.mxu0 0
        %2186 = vmatpush1.bf16.msra.mxu0 0
        %2187 = vmatprep.subr.bf16.mxu0 0
        %2188 = vmatpush1.bf16.msra.mxu0 0
        %2189 = vmatprep.subr.bf16.mxu0 0
        %2190 = vmatpush1.bf16.msra.mxu0 0
        %2191 = vmatprep.subr.bf16.mxu0 0
        %2192 = vmatpush1.bf16.msra.mxu0 0
        %2193 = vmatprep.subr.bf16.mxu0 0
        %2194 = vmatpush1.bf16.msra.mxu0 0
        %2195 = vmatprep.subr.bf16.mxu0 0
        %2196 = vmatpush1.bf16.msra.mxu0 0
        %2197 = vmatprep.subr.bf16.mxu0 0
        %2198 = vmatpush1.bf16.msra.mxu0 0
        %2199 = vmatprep.subr.bf16.mxu0 0
        %2200 = vmatpush1.bf16.msra.mxu0 0
        %2201 = vmatprep.subr.bf16.mxu0 0
        %2202 = vmatpush1.bf16.msra.mxu0 0
        %2203 = vmatprep.subr.bf16.mxu0 0
        %2204 = vmatpush1.bf16.msra.mxu0 0
        %2205 = vmatprep.subr.bf16.mxu0 0
        %2206 = vmatpush1.bf16.msra.mxu0 0
        %2207 = vmatprep.subr.bf16.mxu0 0
        %2208 = vmatpush1.bf16.msra.mxu0 0
        %2209 = vmatprep.subr.bf16.mxu0 0
        %2210 = vmatpush1.bf16.msra.mxu0 0
        %2211 = vmatprep.subr.bf16.mxu0 0
        %2212 = vmatpush1.bf16.msra.mxu0 0
        %2213 = vmatprep.subr.bf16.mxu0 0
        %2214 = vmatpush1.bf16.msra.mxu0 0
        %2215 = vmatprep.mubr.bf16.mxu0 0
        %2216 = vmatmul.mubr.bf16.gmra.mrb[0].mxu0 %v2175
        %v2217 = vpop.f32.mrb[0].mxu0
        %v2218 = vadd.f32 0.0, %v2217
        %v2219 = vpop.f32.mrb[0].mxu0
        %v2220 = vpop.f32.mrb[0].mxu0
        %v2221 = vadd.f32 0.0, %v2220
        %v2222 = vpop.f32.mrb[0].mxu0
        %2223 = vmatprep.mubr.bf16.mxu0 0
        %2224 = vmatmul.mubr.bf16.gmra.mrb[0].mxu0 %v2178
        %v2225 = vpop.f32.mrb[0].mxu0
        %v2226 = vadd.f32 0.0, %v2225
        %v2227 = vpop.f32.mrb[0].mxu0
        %v2228 = vpop.f32.mrb[0].mxu0
        %v2229 = vadd.f32 0.0, %v2228
        %v2230 = vpop.f32.mrb[0].mxu0
        %2231 = vdwg.mxu0
        %v2232 = vadd.f32 %v2128, %v2218
        %v2233 = vadd.f32 %v2129, %v2221
        %v2234 = vadd.f32 %v2130, %v2226
        %v2235 = vadd.f32 %v2131, %v2229
        %2236 = vst.msk [vmem:[#allocation2] sm:$0xff] %vm308, %v2232
        %2237 = vst.msk [vmem:[#allocation2 + $0x8] sm:$0xff] %vm308, %v2233
        %2238 = vst.msk [vmem:[#allocation2 + $0x10] sm:$0xff] %vm308, %v2234
        %2239 = vst.msk [vmem:[#allocation2 + $0x18] sm:$0xff] %vm308, %v2235
        %s2240 = scalar_lea.vmem %s295, 76
        %v2241 = vld [vmem:[%s2240] sm:$0x3]
        %v2242 = vld [vmem:[%s2240 + $0x4] sm:$0x3]
        %v2243 = vld [vmem:[%s2240 + $0x8] sm:$0x3]
        %v2244 = vld [vmem:[%s2240 + $0xc] sm:$0x3]
        %v2245 = vld [vmem:[%s2240 + $0x10] sm:$0x3]
        %v2246 = vld [vmem:[%s2240 + $0x14] sm:$0x3]
        %v2247 = vld [vmem:[%s2240 + $0x18] sm:$0x3]
        %v2248 = vld [vmem:[%s2240 + $0x1c] sm:$0x3]
        %v2249 = vld [vmem:[#allocation3] sm:$0xff]
        %v2250 = vld [vmem:[#allocation3 + $0x8] sm:$0xff]
        %v2251 = vld [vmem:[#allocation3 + $0x10] sm:$0xff]
        %v2252 = vld [vmem:[#allocation3 + $0x18] sm:$0xff]
        %v2261 = vcombine.low %v2241, %v2242
        %v2262 = vcombine.low %v2243, %v2244
        %v2264 = vunpack.c.l.s4 1983009808
        %v2265 = vunpack.c.0.s8 %v2264
        %v2266 = vlaneseq
        %v2267 = vshrl.u32 %v2266, 7
        %v2268 = vsub.s32 %v2265, %v2267
        %v2269 = vrot.slane %v2261, %v2268
        %v2271 = vunpack.c.l.s4 1983009808
        %v2272 = vunpack.c.0.s8 %v2271
        %v2273 = vlaneseq
        %v2274 = vshrl.u32 %v2273, 7
        %v2275 = vsub.s32 %v2272, %v2274
        %v2276 = vrot.slane %v2262, %v2275
        %v2277 = vcombine.low %v2269, %v2276
        %v2278 = vcombine.low %v2245, %v2246
        %v2279 = vcombine.low %v2247, %v2248
        %v2281 = vunpack.c.l.s4 1983009808
        %v2282 = vunpack.c.0.s8 %v2281
        %v2283 = vlaneseq
        %v2284 = vshrl.u32 %v2283, 7
        %v2285 = vsub.s32 %v2282, %v2284
        %v2286 = vrot.slane %v2278, %v2285
        %v2288 = vunpack.c.l.s4 1983009808
        %v2289 = vunpack.c.0.s8 %v2288
        %v2290 = vlaneseq
        %v2291 = vshrl.u32 %v2290, 7
        %v2292 = vsub.s32 %v2289, %v2291
        %v2293 = vrot.slane %v2279, %v2292
        %v2294 = vcombine.low %v2286, %v2293
        %v2296 = vsel %vm308, %v2277, 0
        %v2299 = vsel %vm308, %v2294, 0
        %2301 = vmatprep.subr.bf16.mxu0 0
        %2302 = vmatpush1.bf16.msra.mxu0 %v2181
        %2303 = vmatprep.subr.bf16.mxu0 0
        %2304 = vmatpush1.bf16.msra.mxu0 0
        %2305 = vmatprep.subr.bf16.mxu0 0
        %2306 = vmatpush1.bf16.msra.mxu0 0
        %2307 = vmatprep.subr.bf16.mxu0 0
        %2308 = vmatpush1.bf16.msra.mxu0 0
        %2309 = vmatprep.subr.bf16.mxu0 0
        %2310 = vmatpush1.bf16.msra.mxu0 0
        %2311 = vmatprep.subr.bf16.mxu0 0
        %2312 = vmatpush1.bf16.msra.mxu0 0
        %2313 = vmatprep.subr.bf16.mxu0 0
        %2314 = vmatpush1.bf16.msra.mxu0 0
        %2315 = vmatprep.subr.bf16.mxu0 0
        %2316 = vmatpush1.bf16.msra.mxu0 0
        %2317 = vmatprep.subr.bf16.mxu0 0
        %2318 = vmatpush1.bf16.msra.mxu0 0
        %2319 = vmatprep.subr.bf16.mxu0 0
        %2320 = vmatpush1.bf16.msra.mxu0 0
        %2321 = vmatprep.subr.bf16.mxu0 0
        %2322 = vmatpush1.bf16.msra.mxu0 0
        %2323 = vmatprep.subr.bf16.mxu0 0
        %2324 = vmatpush1.bf16.msra.mxu0 0
        %2325 = vmatprep.subr.bf16.mxu0 0
        %2326 = vmatpush1.bf16.msra.mxu0 0
        %2327 = vmatprep.subr.bf16.mxu0 0
        %2328 = vmatpush1.bf16.msra.mxu0 0
        %2329 = vmatprep.subr.bf16.mxu0 0
        %2330 = vmatpush1.bf16.msra.mxu0 0
        %2331 = vmatprep.subr.bf16.mxu0 0
        %2332 = vmatpush1.bf16.msra.mxu0 0
        %2333 = vmatprep.mubr.bf16.mxu0 0
        %2334 = vmatmul.mubr.bf16.gmra.mrb[0].mxu0 %v2296
        %v2335 = vpop.f32.mrb[0].mxu0
        %v2336 = vadd.f32 0.0, %v2335
        %v2337 = vpop.f32.mrb[0].mxu0
        %v2338 = vpop.f32.mrb[0].mxu0
        %v2339 = vadd.f32 0.0, %v2338
        %v2340 = vpop.f32.mrb[0].mxu0
        %2341 = vmatprep.mubr.bf16.mxu0 0
        %2342 = vmatmul.mubr.bf16.gmra.mrb[0].mxu0 %v2299
        %v2343 = vpop.f32.mrb[0].mxu0
        %v2344 = vadd.f32 0.0, %v2343
        %v2345 = vpop.f32.mrb[0].mxu0
        %v2346 = vpop.f32.mrb[0].mxu0
        %v2347 = vadd.f32 0.0, %v2346
        %v2348 = vpop.f32.mrb[0].mxu0
        %2349 = vdwg.mxu0
        %v2350 = vadd.f32 %v2249, %v2336
        %v2351 = vadd.f32 %v2250, %v2339
        %v2352 = vadd.f32 %v2251, %v2344
        %v2353 = vadd.f32 %v2252, %v2347
        %2354 = vst.msk [vmem:[#allocation3] sm:$0xff] %vm308, %v2350
        %2355 = vst.msk [vmem:[#allocation3 + $0x8] sm:$0xff] %vm308, %v2351
        %2356 = vst.msk [vmem:[#allocation3 + $0x10] sm:$0xff] %vm308, %v2352
        %2357 = vst.msk [vmem:[#allocation3 + $0x18] sm:$0xff] %vm308, %v2353
        %s2358 = scalar_lea.vmem %s1, 28
        %v2359 = vld [vmem:[%s2358] sm:$0xf]
        %s2360 = scalar_lea.vmem %s295, 40
        %v2361 = vld [vmem:[%s2360] sm:$0x3]
        %v2362 = vld [vmem:[%s2360 + $0x4] sm:$0x3]
        %v2363 = vld [vmem:[%s2360 + $0x8] sm:$0x3]
        %v2364 = vld [vmem:[%s2360 + $0xc] sm:$0x3]
        %v2365 = vld [vmem:[%s2360 + $0x10] sm:$0x3]
        %v2366 = vld [vmem:[%s2360 + $0x14] sm:$0x3]
        %v2367 = vld [vmem:[%s2360 + $0x18] sm:$0x3]
        %v2368 = vld [vmem:[%s2360 + $0x1c] sm:$0x3]
        %v2369 = vld [vmem:[#allocation2] sm:$0xff]
        %v2370 = vld [vmem:[#allocation2 + $0x8] sm:$0xff]
        %v2371 = vld [vmem:[#allocation2 + $0x10] sm:$0xff]
        %v2372 = vld [vmem:[#allocation2 + $0x18] sm:$0xff]
        %v2381 = vcombine.low %v2361, %v2362
        %v2382 = vcombine.low %v2363, %v2364
        %v2384 = vunpack.c.l.s4 1983009808
        %v2385 = vunpack.c.0.s8 %v2384
        %v2386 = vlaneseq
        %v2387 = vshrl.u32 %v2386, 7
        %v2388 = vsub.s32 %v2385, %v2387
        %v2389 = vrot.slane %v2381, %v2388
        %v2391 = vunpack.c.l.s4 1983009808
        %v2392 = vunpack.c.0.s8 %v2391
        %v2393 = vlaneseq
        %v2394 = vshrl.u32 %v2393, 7
        %v2395 = vsub.s32 %v2392, %v2394
        %v2396 = vrot.slane %v2382, %v2395
        %v2397 = vcombine.low %v2389, %v2396
        %v2398 = vcombine.low %v2365, %v2366
        %v2399 = vcombine.low %v2367, %v2368
        %v2401 = vunpack.c.l.s4 1983009808
        %v2402 = vunpack.c.0.s8 %v2401
        %v2403 = vlaneseq
        %v2404 = vshrl.u32 %v2403, 7
        %v2405 = vsub.s32 %v2402, %v2404
        %v2406 = vrot.slane %v2398, %v2405
        %v2408 = vunpack.c.l.s4 1983009808
        %v2409 = vunpack.c.0.s8 %v2408
        %v2410 = vlaneseq
        %v2411 = vshrl.u32 %v2410, 7
        %v2412 = vsub.s32 %v2409, %v2411
        %v2413 = vrot.slane %v2399, %v2412
        %v2414 = vcombine.low %v2406, %v2413
        %v2416 = vsel %vm308, %v2397, 0
        %v2419 = vsel %vm308, %v2414, 0
        %v2422 = vsel %vm378, %v2359, 0
        %2424 = vmatprep.subr.bf16.mxu0 0
        %2425 = vmatpush1.bf16.msra.mxu0 %v2422
        %2426 = vmatprep.subr.bf16.mxu0 0
        %2427 = vmatpush1.bf16.msra.mxu0 0
        %2428 = vmatprep.subr.bf16.mxu0 0
        %2429 = vmatpush1.bf16.msra.mxu0 0
        %2430 = vmatprep.subr.bf16.mxu0 0
        %2431 = vmatpush1.bf16.msra.mxu0 0
        %2432 = vmatprep.subr.bf16.mxu0 0
        %2433 = vmatpush1.bf16.msra.mxu0 0
        %2434 = vmatprep.subr.bf16.mxu0 0
        %2435 = vmatpush1.bf16.msra.mxu0 0
        %2436 = vmatprep.subr.bf16.mxu0 0
        %2437 = vmatpush1.bf16.msra.mxu0 0
        %2438 = vmatprep.subr.bf16.mxu0 0
        %2439 = vmatpush1.bf16.msra.mxu0 0
        %2440 = vmatprep.subr.bf16.mxu0 0
        %2441 = vmatpush1.bf16.msra.mxu0 0
        %2442 = vmatprep.subr.bf16.mxu0 0
        %2443 = vmatpush1.bf16.msra.mxu0 0
        %2444 = vmatprep.subr.bf16.mxu0 0
        %2445 = vmatpush1.bf16.msra.mxu0 0
        %2446 = vmatprep.subr.bf16.mxu0 0
        %2447 = vmatpush1.bf16.msra.mxu0 0
        %2448 = vmatprep.subr.bf16.mxu0 0
        %2449 = vmatpush1.bf16.msra.mxu0 0
        %2450 = vmatprep.subr.bf16.mxu0 0
        %2451 = vmatpush1.bf16.msra.mxu0 0
        %2452 = vmatprep.subr.bf16.mxu0 0
        %2453 = vmatpush1.bf16.msra.mxu0 0
        %2454 = vmatprep.subr.bf16.mxu0 0
        %2455 = vmatpush1.bf16.msra.mxu0 0
        %2456 = vmatprep.mubr.bf16.mxu0 0
        %2457 = vmatmul.mubr.bf16.gmra.mrb[0].mxu0 %v2416
        %v2458 = vpop.f32.mrb[0].mxu0
        %v2459 = vadd.f32 0.0, %v2458
        %v2460 = vpop.f32.mrb[0].mxu0
        %v2461 = vpop.f32.mrb[0].mxu0
        %v2462 = vadd.f32 0.0, %v2461
        %v2463 = vpop.f32.mrb[0].mxu0
        %2464 = vmatprep.mubr.bf16.mxu0 0
        %2465 = vmatmul.mubr.bf16.gmra.mrb[0].mxu0 %v2419
        %v2466 = vpop.f32.mrb[0].mxu0
        %v2467 = vadd.f32 0.0, %v2466
        %v2468 = vpop.f32.mrb[0].mxu0
        %v2469 = vpop.f32.mrb[0].mxu0
        %v2470 = vadd.f32 0.0, %v2469
        %v2471 = vpop.f32.mrb[0].mxu0
        %2472 = vdwg.mxu0
        %v2473 = vadd.f32 %v2369, %v2459
        %v2474 = vadd.f32 %v2370, %v2462
        %v2475 = vadd.f32 %v2371, %v2467
        %v2476 = vadd.f32 %v2372, %v2470
        %2477 = vst.msk [vmem:[#allocation2] sm:$0xff] %vm308, %v2473
        %2478 = vst.msk [vmem:[#allocation2 + $0x8] sm:$0xff] %vm308, %v2474
        %2479 = vst.msk [vmem:[#allocation2 + $0x10] sm:$0xff] %vm308, %v2475
        %2480 = vst.msk [vmem:[#allocation2 + $0x18] sm:$0xff] %vm308, %v2476
        %s2481 = scalar_lea.vmem %s295, 112
        %v2482 = vld [vmem:[%s2481] sm:$0x3]
        %v2483 = vld [vmem:[%s2481 + $0x4] sm:$0x3]
        %v2484 = vld [vmem:[%s2481 + $0x8] sm:$0x3]
        %v2485 = vld [vmem:[%s2481 + $0xc] sm:$0x3]
        %v2486 = vld [vmem:[%s2481 + $0x10] sm:$0x3]
        %v2487 = vld [vmem:[%s2481 + $0x14] sm:$0x3]
        %v2488 = vld [vmem:[%s2481 + $0x18] sm:$0x3]
        %v2489 = vld [vmem:[%s2481 + $0x1c] sm:$0x3]
        %v2490 = vld [vmem:[#allocation3] sm:$0xff]
        %v2491 = vld [vmem:[#allocation3 + $0x8] sm:$0xff]
        %v2492 = vld [vmem:[#allocation3 + $0x10] sm:$0xff]
        %v2493 = vld [vmem:[#allocation3 + $0x18] sm:$0xff]
        %v2502 = vcombine.low %v2482, %v2483
        %v2503 = vcombine.low %v2484, %v2485
        %v2505 = vunpack.c.l.s4 1983009808
        %v2506 = vunpack.c.0.s8 %v2505
        %v2507 = vlaneseq
        %v2508 = vshrl.u32 %v2507, 7
        %v2509 = vsub.s32 %v2506, %v2508
        %v2510 = vrot.slane %v2502, %v2509
        %v2512 = vunpack.c.l.s4 1983009808
        %v2513 = vunpack.c.0.s8 %v2512
        %v2514 = vlaneseq
        %v2515 = vshrl.u32 %v2514, 7
        %v2516 = vsub.s32 %v2513, %v2515
        %v2517 = vrot.slane %v2503, %v2516
        %v2518 = vcombine.low %v2510, %v2517
        %v2519 = vcombine.low %v2486, %v2487
        %v2520 = vcombine.low %v2488, %v2489
        %v2522 = vunpack.c.l.s4 1983009808
        %v2523 = vunpack.c.0.s8 %v2522
        %v2524 = vlaneseq
        %v2525 = vshrl.u32 %v2524, 7
        %v2526 = vsub.s32 %v2523, %v2525
        %v2527 = vrot.slane %v2519, %v2526
        %v2529 = vunpack.c.l.s4 1983009808
        %v2530 = vunpack.c.0.s8 %v2529
        %v2531 = vlaneseq
        %v2532 = vshrl.u32 %v2531, 7
        %v2533 = vsub.s32 %v2530, %v2532
        %v2534 = vrot.slane %v2520, %v2533
        %v2535 = vcombine.low %v2527, %v2534
        %v2537 = vsel %vm308, %v2518, 0
        %v2540 = vsel %vm308, %v2535, 0
        %2542 = vmatprep.subr.bf16.mxu0 0
        %2543 = vmatpush1.bf16.msra.mxu0 %v2422
        %2544 = vmatprep.subr.bf16.mxu0 0
        %2545 = vmatpush1.bf16.msra.mxu0 0
        %2546 = vmatprep.subr.bf16.mxu0 0
        %2547 = vmatpush1.bf16.msra.mxu0 0
        %2548 = vmatprep.subr.bf16.mxu0 0
        %2549 = vmatpush1.bf16.msra.mxu0 0
        %2550 = vmatprep.subr.bf16.mxu0 0
        %2551 = vmatpush1.bf16.msra.mxu0 0
        %2552 = vmatprep.subr.bf16.mxu0 0
        %2553 = vmatpush1.bf16.msra.mxu0 0
        %2554 = vmatprep.subr.bf16.mxu0 0
        %2555 = vmatpush1.bf16.msra.mxu0 0
        %2556 = vmatprep.subr.bf16.mxu0 0
        %2557 = vmatpush1.bf16.msra.mxu0 0
        %2558 = vmatprep.subr.bf16.mxu0 0
        %2559 = vmatpush1.bf16.msra.mxu0 0
        %2560 = vmatprep.subr.bf16.mxu0 0
        %2561 = vmatpush1.bf16.msra.mxu0 0
        %2562 = vmatprep.subr.bf16.mxu0 0
        %2563 = vmatpush1.bf16.msra.mxu0 0
        %2564 = vmatprep.subr.bf16.mxu0 0
        %2565 = vmatpush1.bf16.msra.mxu0 0
        %2566 = vmatprep.subr.bf16.mxu0 0
        %2567 = vmatpush1.bf16.msra.mxu0 0
        %2568 = vmatprep.subr.bf16.mxu0 0
        %2569 = vmatpush1.bf16.msra.mxu0 0
        %2570 = vmatprep.subr.bf16.mxu0 0
        %2571 = vmatpush1.bf16.msra.mxu0 0
        %2572 = vmatprep.subr.bf16.mxu0 0
        %2573 = vmatpush1.bf16.msra.mxu0 0
        %2574 = vmatprep.mubr.bf16.mxu0 0
        %2575 = vmatmul.mubr.bf16.gmra.mrb[0].mxu0 %v2537
        %v2576 = vpop.f32.mrb[0].mxu0
        %v2577 = vadd.f32 0.0, %v2576
        %v2578 = vpop.f32.mrb[0].mxu0
        %v2579 = vpop.f32.mrb[0].mxu0
        %v2580 = vadd.f32 0.0, %v2579
        %v2581 = vpop.f32.mrb[0].mxu0
        %2582 = vmatprep.mubr.bf16.mxu0 0
        %2583 = vmatmul.mubr.bf16.gmra.mrb[0].mxu0 %v2540
        %v2584 = vpop.f32.mrb[0].mxu0
        %v2585 = vadd.f32 0.0, %v2584
        %v2586 = vpop.f32.mrb[0].mxu0
        %v2587 = vpop.f32.mrb[0].mxu0
        %v2588 = vadd.f32 0.0, %v2587
        %v2589 = vpop.f32.mrb[0].mxu0
        %2590 = vdwg.mxu0
        %v2591 = vadd.f32 %v2490, %v2577
        %v2592 = vadd.f32 %v2491, %v2580
        %v2593 = vadd.f32 %v2492, %v2585
        %v2594 = vadd.f32 %v2493, %v2588
        %2595 = vst.msk [vmem:[#allocation3] sm:$0xff] %vm308, %v2591
        %2596 = vst.msk [vmem:[#allocation3 + $0x8] sm:$0xff] %vm308, %v2592
        %2597 = vst.msk [vmem:[#allocation3 + $0x10] sm:$0xff] %vm308, %v2593
        %2598 = vst.msk [vmem:[#allocation3 + $0x18] sm:$0xff] %vm308, %v2594
        %s2599 = scalar_lea.vmem %s1, 32
        %v2600 = vld [vmem:[%s2599] sm:$0xf]
        %v2601 = vld [vmem:[%s2240] sm:$0x3]
        %v2602 = vld [vmem:[%s2240 + $0x4] sm:$0x3]
        %v2603 = vld [vmem:[%s2240 + $0x8] sm:$0x3]
        %v2604 = vld [vmem:[%s2240 + $0xc] sm:$0x3]
        %v2605 = vld [vmem:[%s2240 + $0x10] sm:$0x3]
        %v2606 = vld [vmem:[%s2240 + $0x14] sm:$0x3]
        %v2607 = vld [vmem:[%s2240 + $0x18] sm:$0x3]
        %v2608 = vld [vmem:[%s2240 + $0x1c] sm:$0x3]
        %v2609 = vld [vmem:[#allocation2] sm:$0xff]
        %v2610 = vld [vmem:[#allocation2 + $0x8] sm:$0xff]
        %v2611 = vld [vmem:[#allocation2 + $0x10] sm:$0xff]
        %v2612 = vld [vmem:[#allocation2 + $0x18] sm:$0xff]
        %v2621 = vcombine.low %v2601, %v2602
        %v2622 = vcombine.low %v2603, %v2604
        %v2624 = vunpack.c.l.s4 1983009808
        %v2625 = vunpack.c.0.s8 %v2624
        %v2626 = vlaneseq
        %v2627 = vshrl.u32 %v2626, 7
        %v2628 = vsub.s32 %v2625, %v2627
        %v2629 = vrot.slane %v2621, %v2628
        %v2631 = vunpack.c.l.s4 1983009808
        %v2632 = vunpack.c.0.s8 %v2631
        %v2633 = vlaneseq
        %v2634 = vshrl.u32 %v2633, 7
        %v2635 = vsub.s32 %v2632, %v2634
        %v2636 = vrot.slane %v2622, %v2635
        %v2637 = vcombine.low %v2629, %v2636
        %v2638 = vcombine.low %v2605, %v2606
        %v2639 = vcombine.low %v2607, %v2608
        %v2641 = vunpack.c.l.s4 1983009808
        %v2642 = vunpack.c.0.s8 %v2641
        %v2643 = vlaneseq
        %v2644 = vshrl.u32 %v2643, 7
        %v2645 = vsub.s32 %v2642, %v2644
        %v2646 = vrot.slane %v2638, %v2645
        %v2648 = vunpack.c.l.s4 1983009808
        %v2649 = vunpack.c.0.s8 %v2648
        %v2650 = vlaneseq
        %v2651 = vshrl.u32 %v2650, 7
        %v2652 = vsub.s32 %v2649, %v2651
        %v2653 = vrot.slane %v2639, %v2652
        %v2654 = vcombine.low %v2646, %v2653
        %v2656 = vsel %vm308, %v2637, 0
        %v2659 = vsel %vm308, %v2654, 0
        %v2662 = vsel %vm378, %v2600, 0
        %2664 = vmatprep.subr.bf16.mxu0 0
        %2665 = vmatpush1.bf16.msra.mxu0 %v2662
        %2666 = vmatprep.subr.bf16.mxu0 0
        %2667 = vmatpush1.bf16.msra.mxu0 0
        %2668 = vmatprep.subr.bf16.mxu0 0
        %2669 = vmatpush1.bf16.msra.mxu0 0
        %2670 = vmatprep.subr.bf16.mxu0 0
        %2671 = vmatpush1.bf16.msra.mxu0 0
        %2672 = vmatprep.subr.bf16.mxu0 0
        %2673 = vmatpush1.bf16.msra.mxu0 0
        %2674 = vmatprep.subr.bf16.mxu0 0
        %2675 = vmatpush1.bf16.msra.mxu0 0
        %2676 = vmatprep.subr.bf16.mxu0 0
        %2677 = vmatpush1.bf16.msra.mxu0 0
        %2678 = vmatprep.subr.bf16.mxu0 0
        %2679 = vmatpush1.bf16.msra.mxu0 0
        %2680 = vmatprep.subr.bf16.mxu0 0
        %2681 = vmatpush1.bf16.msra.mxu0 0
        %2682 = vmatprep.subr.bf16.mxu0 0
        %2683 = vmatpush1.bf16.msra.mxu0 0
        %2684 = vmatprep.subr.bf16.mxu0 0
        %2685 = vmatpush1.bf16.msra.mxu0 0
        %2686 = vmatprep.subr.bf16.mxu0 0
        %2687 = vmatpush1.bf16.msra.mxu0 0
        %2688 = vmatprep.subr.bf16.mxu0 0
        %2689 = vmatpush1.bf16.msra.mxu0 0
        %2690 = vmatprep.subr.bf16.mxu0 0
        %2691 = vmatpush1.bf16.msra.mxu0 0
        %2692 = vmatprep.subr.bf16.mxu0 0
        %2693 = vmatpush1.bf16.msra.mxu0 0
        %2694 = vmatprep.subr.bf16.mxu0 0
        %2695 = vmatpush1.bf16.msra.mxu0 0
        %2696 = vmatprep.mubr.bf16.mxu0 0
        %2697 = vmatmul.mubr.bf16.gmra.mrb[0].mxu0 %v2656
        %v2698 = vpop.f32.mrb[0].mxu0
        %v2699 = vadd.f32 0.0, %v2698
        %v2700 = vpop.f32.mrb[0].mxu0
        %v2701 = vpop.f32.mrb[0].mxu0
        %v2702 = vadd.f32 0.0, %v2701
        %v2703 = vpop.f32.mrb[0].mxu0
        %2704 = vmatprep.mubr.bf16.mxu0 0
        %2705 = vmatmul.mubr.bf16.gmra.mrb[0].mxu0 %v2659
        %v2706 = vpop.f32.mrb[0].mxu0
        %v2707 = vadd.f32 0.0, %v2706
        %v2708 = vpop.f32.mrb[0].mxu0
        %v2709 = vpop.f32.mrb[0].mxu0
        %v2710 = vadd.f32 0.0, %v2709
        %v2711 = vpop.f32.mrb[0].mxu0
        %2712 = vdwg.mxu0
        %v2713 = vadd.f32 %v2609, %v2699
        %v2714 = vadd.f32 %v2610, %v2702
        %v2715 = vadd.f32 %v2611, %v2707
        %v2716 = vadd.f32 %v2612, %v2710
        %2717 = vst.msk [vmem:[#allocation2] sm:$0xff] %vm308, %v2713
        %2718 = vst.msk [vmem:[#allocation2 + $0x8] sm:$0xff] %vm308, %v2714
        %2719 = vst.msk [vmem:[#allocation2 + $0x10] sm:$0xff] %vm308, %v2715
        %2720 = vst.msk [vmem:[#allocation2 + $0x18] sm:$0xff] %vm308, %v2716
        %v2721 = vld [vmem:[%s2119] sm:$0x7]
        %v2722 = vld [vmem:[%s2119 + $0x4] sm:$0x7]
        %v2723 = vld [vmem:[%s2119 + $0x8] sm:$0x7]
        %v2724 = vld [vmem:[%s2119 + $0xc] sm:$0x7]
        %v2725 = vld [vmem:[%s2119 + $0x10] sm:$0x7]
        %v2726 = vld [vmem:[%s2119 + $0x14] sm:$0x7]
        %v2727 = vld [vmem:[%s2119 + $0x18] sm:$0x7]
        %v2728 = vld [vmem:[%s2119 + $0x1c] sm:$0x7]
        %v2738 = vunpack.c.l.s4 1983009808
        %v2739 = vunpack.c.0.s8 %v2738
        %v2740 = vlaneseq
        %v2741 = vshrl.u32 %v2740, 7
        %v2742 = vsub.s32 %v2739, %v2741
        %v2743 = vrot.slane %v2721, %v2742
        %v2744 = vcombine.high %v2743, %v2743
        %v2746 = vunpack.c.l.s4 1983009808
        %v2747 = vunpack.c.0.s8 %v2746
        %v2748 = vlaneseq
        %v2749 = vshrl.u32 %v2748, 7
        %v2750 = vsub.s32 %v2747, %v2749
        %v2751 = vrot.slane %v2722, %v2750
        %v2752 = vcombine.high %v2751, %v2751
        %v2754 = vunpack.c.l.s4 1983009808
        %v2755 = vunpack.c.0.s8 %v2754
        %v2756 = vlaneseq
        %v2757 = vshrl.u32 %v2756, 7
        %v2758 = vsub.s32 %v2755, %v2757
        %v2759 = vrot.slane %v2723, %v2758
        %v2760 = vcombine.high %v2759, %v2759
        %v2762 = vunpack.c.l.s4 1983009808
        %v2763 = vunpack.c.0.s8 %v2762
        %v2764 = vlaneseq
        %v2765 = vshrl.u32 %v2764, 7
        %v2766 = vsub.s32 %v2763, %v2765
        %v2767 = vrot.slane %v2724, %v2766
        %v2768 = vcombine.high %v2767, %v2767
        %v2770 = vunpack.c.l.s4 1983009808
        %v2771 = vunpack.c.0.s8 %v2770
        %v2772 = vlaneseq
        %v2773 = vshrl.u32 %v2772, 7
        %v2774 = vsub.s32 %v2771, %v2773
        %v2775 = vrot.slane %v2725, %v2774
        %v2776 = vcombine.high %v2775, %v2775
        %v2778 = vunpack.c.l.s4 1983009808
        %v2779 = vunpack.c.0.s8 %v2778
        %v2780 = vlaneseq
        %v2781 = vshrl.u32 %v2780, 7
        %v2782 = vsub.s32 %v2779, %v2781
        %v2783 = vrot.slane %v2726, %v2782
        %v2784 = vcombine.high %v2783, %v2783
        %v2786 = vunpack.c.l.s4 1983009808
        %v2787 = vunpack.c.0.s8 %v2786
        %v2788 = vlaneseq
        %v2789 = vshrl.u32 %v2788, 7
        %v2790 = vsub.s32 %v2787, %v2789
        %v2791 = vrot.slane %v2727, %v2790
        %v2792 = vcombine.high %v2791, %v2791
        %v2794 = vunpack.c.l.s4 1983009808
        %v2795 = vunpack.c.0.s8 %v2794
        %v2796 = vlaneseq
        %v2797 = vshrl.u32 %v2796, 7
        %v2798 = vsub.s32 %v2795, %v2797
        %v2799 = vrot.slane %v2728, %v2798
        %v2800 = vcombine.high %v2799, %v2799
        %v2802 = vshrl.u32 %v2743, 16
        %v2804 = vrot.slane %v2802, 6
        %v2805 = vshll.u32 %v2743, 16
        %v2807 = vrot.slane %v2805, 7
        %v2808 = vor.u32 %v2804, %v2807
        %v2809 = vrot.slane %v2808, 2
        %v2811 = vshll.u32 %v2744, 16
        %v2813 = vrot.slane %v2811, 7
        %v2814 = vsel %vm1006, %v2809, %v2813
        %v2816 = vshrl.u32 %v2751, 16
        %v2818 = vrot.slane %v2816, 6
        %v2819 = vshll.u32 %v2751, 16
        %v2821 = vrot.slane %v2819, 7
        %v2822 = vor.u32 %v2818, %v2821
        %v2823 = vrot.slane %v2822, 2
        %v2825 = vshll.u32 %v2752, 16
        %v2827 = vrot.slane %v2825, 7
        %v2828 = vsel %vm1006, %v2823, %v2827
        %v2830 = vshrl.u32 %v2759, 16
        %v2832 = vrot.slane %v2830, 6
        %v2833 = vshll.u32 %v2759, 16
        %v2835 = vrot.slane %v2833, 7
        %v2836 = vor.u32 %v2832, %v2835
        %v2837 = vrot.slane %v2836, 2
        %v2839 = vshll.u32 %v2760, 16
        %v2841 = vrot.slane %v2839, 7
        %v2842 = vsel %vm1006, %v2837, %v2841
        %v2844 = vshrl.u32 %v2767, 16
        %v2846 = vrot.slane %v2844, 6
        %v2847 = vshll.u32 %v2767, 16
        %v2849 = vrot.slane %v2847, 7
        %v2850 = vor.u32 %v2846, %v2849
        %v2851 = vrot.slane %v2850, 2
        %v2853 = vshll.u32 %v2768, 16
        %v2855 = vrot.slane %v2853, 7
        %v2856 = vsel %vm1006, %v2851, %v2855
        %v2858 = vshrl.u32 %v2775, 16
        %v2860 = vrot.slane %v2858, 6
        %v2861 = vshll.u32 %v2775, 16
        %v2863 = vrot.slane %v2861, 7
        %v2864 = vor.u32 %v2860, %v2863
        %v2865 = vrot.slane %v2864, 2
        %v2867 = vshll.u32 %v2776, 16
        %v2869 = vrot.slane %v2867, 7
        %v2870 = vsel %vm1006, %v2865, %v2869
        %v2872 = vshrl.u32 %v2783, 16
        %v2874 = vrot.slane %v2872, 6
        %v2875 = vshll.u32 %v2783, 16
        %v2877 = vrot.slane %v2875, 7
        %v2878 = vor.u32 %v2874, %v2877
        %v2879 = vrot.slane %v2878, 2
        %v2881 = vshll.u32 %v2784, 16
        %v2883 = vrot.slane %v2881, 7
        %v2884 = vsel %vm1006, %v2879, %v2883
        %v2886 = vshrl.u32 %v2791, 16
        %v2888 = vrot.slane %v2886, 6
        %v2889 = vshll.u32 %v2791, 16
        %v2891 = vrot.slane %v2889, 7
        %v2892 = vor.u32 %v2888, %v2891
        %v2893 = vrot.slane %v2892, 2
        %v2895 = vshll.u32 %v2792, 16
        %v2897 = vrot.slane %v2895, 7
        %v2898 = vsel %vm1006, %v2893, %v2897
        %v2900 = vshrl.u32 %v2799, 16
        %v2902 = vrot.slane %v2900, 6
        %v2903 = vshll.u32 %v2799, 16
        %v2905 = vrot.slane %v2903, 7
        %v2906 = vor.u32 %v2902, %v2905
        %v2907 = vrot.slane %v2906, 2
        %v2909 = vshll.u32 %v2800, 16
        %v2911 = vrot.slane %v2909, 7
        %v2912 = vsel %vm1006, %v2907, %v2911
        %v2913 = vld [vmem:[#allocation3] sm:$0xff]
        %v2914 = vld [vmem:[#allocation3 + $0x8] sm:$0xff]
        %v2915 = vld [vmem:[#allocation3 + $0x10] sm:$0xff]
        %v2916 = vld [vmem:[#allocation3 + $0x18] sm:$0xff]
        %v2917 = vcombine.low %v2814, %v2828
        %v2918 = vcombine.low %v2842, %v2856
        %v2920 = vunpack.c.l.s4 1983009808
        %v2921 = vunpack.c.0.s8 %v2920
        %v2922 = vlaneseq
        %v2923 = vshrl.u32 %v2922, 7
        %v2924 = vsub.s32 %v2921, %v2923
        %v2925 = vrot.slane %v2917, %v2924
        %v2927 = vunpack.c.l.s4 1983009808
        %v2928 = vunpack.c.0.s8 %v2927
        %v2929 = vlaneseq
        %v2930 = vshrl.u32 %v2929, 7
        %v2931 = vsub.s32 %v2928, %v2930
        %v2932 = vrot.slane %v2918, %v2931
        %v2933 = vcombine.low %v2925, %v2932
        %v2934 = vcombine.low %v2870, %v2884
        %v2935 = vcombine.low %v2898, %v2912
        %v2937 = vunpack.c.l.s4 1983009808
        %v2938 = vunpack.c.0.s8 %v2937
        %v2939 = vlaneseq
        %v2940 = vshrl.u32 %v2939, 7
        %v2941 = vsub.s32 %v2938, %v2940
        %v2942 = vrot.slane %v2934, %v2941
        %v2944 = vunpack.c.l.s4 1983009808
        %v2945 = vunpack.c.0.s8 %v2944
        %v2946 = vlaneseq
        %v2947 = vshrl.u32 %v2946, 7
        %v2948 = vsub.s32 %v2945, %v2947
        %v2949 = vrot.slane %v2935, %v2948
        %v2950 = vcombine.low %v2942, %v2949
        %v2952 = vsel %vm308, %v2933, 0
        %v2955 = vsel %vm308, %v2950, 0
        %2957 = vmatprep.subr.bf16.mxu0 0
        %2958 = vmatpush1.bf16.msra.mxu0 %v2662
        %2959 = vmatprep.subr.bf16.mxu0 0
        %2960 = vmatpush1.bf16.msra.mxu0 0
        %2961 = vmatprep.subr.bf16.mxu0 0
        %2962 = vmatpush1.bf16.msra.mxu0 0
        %2963 = vmatprep.subr.bf16.mxu0 0
        %2964 = vmatpush1.bf16.msra.mxu0 0
        %2965 = vmatprep.subr.bf16.mxu0 0
        %2966 = vmatpush1.bf16.msra.mxu0 0
        %2967 = vmatprep.subr.bf16.mxu0 0
        %2968 = vmatpush1.bf16.msra.mxu0 0
        %2969 = vmatprep.subr.bf16.mxu0 0
        %2970 = vmatpush1.bf16.msra.mxu0 0
        %2971 = vmatprep.subr.bf16.mxu0 0
        %2972 = vmatpush1.bf16.msra.mxu0 0
        %2973 = vmatprep.subr.bf16.mxu0 0
        %2974 = vmatpush1.bf16.msra.mxu0 0
        %2975 = vmatprep.subr.bf16.mxu0 0
        %2976 = vmatpush1.bf16.msra.mxu0 0
        %2977 = vmatprep.subr.bf16.mxu0 0
        %2978 = vmatpush1.bf16.msra.mxu0 0
        %2979 = vmatprep.subr.bf16.mxu0 0
        %2980 = vmatpush1.bf16.msra.mxu0 0
        %2981 = vmatprep.subr.bf16.mxu0 0
        %2982 = vmatpush1.bf16.msra.mxu0 0
        %2983 = vmatprep.subr.bf16.mxu0 0
        %2984 = vmatpush1.bf16.msra.mxu0 0
        %2985 = vmatprep.subr.bf16.mxu0 0
        %2986 = vmatpush1.bf16.msra.mxu0 0
        %2987 = vmatprep.subr.bf16.mxu0 0
        %2988 = vmatpush1.bf16.msra.mxu0 0
        %2989 = vmatprep.mubr.bf16.mxu0 0
        %2990 = vmatmul.mubr.bf16.gmra.mrb[0].mxu0 %v2952
        %v2991 = vpop.f32.mrb[0].mxu0
        %v2992 = vadd.f32 0.0, %v2991
        %v2993 = vpop.f32.mrb[0].mxu0
        %v2994 = vpop.f32.mrb[0].mxu0
        %v2995 = vadd.f32 0.0, %v2994
        %v2996 = vpop.f32.mrb[0].mxu0
        %2997 = vmatprep.mubr.bf16.mxu0 0
        %2998 = vmatmul.mubr.bf16.gmra.mrb[0].mxu0 %v2955
        %v2999 = vpop.f32.mrb[0].mxu0
        %v3000 = vadd.f32 0.0, %v2999
        %v3001 = vpop.f32.mrb[0].mxu0
        %v3002 = vpop.f32.mrb[0].mxu0
        %v3003 = vadd.f32 0.0, %v3002
        %v3004 = vpop.f32.mrb[0].mxu0
        %3005 = vdwg.mxu0
        %v3006 = vadd.f32 %v2913, %v2992
        %v3007 = vadd.f32 %v2914, %v2995
        %v3008 = vadd.f32 %v2915, %v3000
        %v3009 = vadd.f32 %v2916, %v3003
        %3010 = vst.msk [vmem:[#allocation3] sm:$0xff] %vm308, %v3006
        %3011 = vst.msk [vmem:[#allocation3 + $0x8] sm:$0xff] %vm308, %v3007
        %3012 = vst.msk [vmem:[#allocation3 + $0x10] sm:$0xff] %vm308, %v3008
        %3013 = vst.msk [vmem:[#allocation3 + $0x18] sm:$0xff] %vm308, %v3009
        %v3014 = vld [vmem:[%s2] sm:$0x1]
        %v3015 = vld [vmem:[#allocation2] sm:$0xff]
        %v3016 = vld [vmem:[#allocation2 + $0x8] sm:$0xff]
        %v3017 = vld [vmem:[#allocation2 + $0x10] sm:$0xff]
        %v3018 = vld [vmem:[#allocation2 + $0x18] sm:$0xff]
        %v3020 = vlaneseq
        %v3021 = vshrl.u32 %v3020, 7
        %v3022 = vsub.s32 0, %v3021
        %v3023 = vrot.slane %v3014, %v3022
        %v3025 = vadd.f32 %v3015, %v3023
        %v3026 = vadd.f32 %v3016, %v3023
        %v3027 = vadd.f32 %v3017, %v3023
        %v3028 = vadd.f32 %v3018, %v3023
        %3029 = vst.msk [vmem:[#allocation2] sm:$0xff] %vm308, %v3025
        %3030 = vst.msk [vmem:[#allocation2 + $0x8] sm:$0xff] %vm308, %v3026
        %3031 = vst.msk [vmem:[#allocation2 + $0x10] sm:$0xff] %vm308, %v3027
        %3032 = vst.msk [vmem:[#allocation2 + $0x18] sm:$0xff] %vm308, %v3028
        %v3033 = vld [vmem:[#allocation3] sm:$0xff]
        %v3034 = vld [vmem:[#allocation3 + $0x8] sm:$0xff]
        %v3035 = vld [vmem:[#allocation3 + $0x10] sm:$0xff]
        %v3036 = vld [vmem:[#allocation3 + $0x18] sm:$0xff]
        %v3037 = vadd.f32 %v3033, %v3023
        %v3038 = vadd.f32 %v3034, %v3023
        %v3039 = vadd.f32 %v3035, %v3023
        %v3040 = vadd.f32 %v3036, %v3023
        %3041 = vst.msk [vmem:[#allocation3] sm:$0xff] %vm308, %v3037
        %3042 = vst.msk [vmem:[#allocation3 + $0x8] sm:$0xff] %vm308, %v3038
        %3043 = vst.msk [vmem:[#allocation3 + $0x10] sm:$0xff] %vm308, %v3039
        %3044 = vst.msk [vmem:[#allocation3 + $0x18] sm:$0xff] %vm308, %v3040
        %v3045 = vld [vmem:[#allocation2] sm:$0xff]
        %v3046 = vld [vmem:[#allocation2 + $0x8] sm:$0xff]
        %v3047 = vld [vmem:[#allocation2 + $0x10] sm:$0xff]
        %v3048 = vld [vmem:[#allocation2 + $0x18] sm:$0xff]
        %v3053 = vcombine.high %v3045, %v3045
        %v3054 = vcombine.high %v3046, %v3046
        %v3055 = vcombine.high %v3047, %v3047
        %v3056 = vcombine.high %v3048, %v3048
        %vm3061 = vcmask 60416
        %3062 = vst.msk [vmem:[%s301] sm:$0xf] %vm3061, %v3045
        %3063 = vst.msk [vmem:[%s301 + $0x4] sm:$0xf] %vm3061, %v3053
        %3064 = vst.msk [vmem:[%s301 + $0x8] sm:$0xf] %vm3061, %v3046
        %3065 = vst.msk [vmem:[%s301 + $0xc] sm:$0xf] %vm3061, %v3054
        %3066 = vst.msk [vmem:[%s301 + $0x10] sm:$0xf] %vm3061, %v3047
        %3067 = vst.msk [vmem:[%s301 + $0x14] sm:$0xf] %vm3061, %v3055
        %3068 = vst.msk [vmem:[%s301 + $0x18] sm:$0xf] %vm3061, %v3048
        %3069 = vst.msk [vmem:[%s301 + $0x1c] sm:$0xf] %vm3061, %v3056
        %v3070 = vld [vmem:[#allocation3] sm:$0xff]
        %v3071 = vld [vmem:[#allocation3 + $0x8] sm:$0xff]
        %v3072 = vld [vmem:[#allocation3 + $0x10] sm:$0xff]
        %v3073 = vld [vmem:[#allocation3 + $0x18] sm:$0xff]
        %v3078 = vcombine.high %v3070, %v3070
        %v3079 = vcombine.high %v3071, %v3071
        %v3080 = vcombine.high %v3072, %v3072
        %v3081 = vcombine.high %v3073, %v3073
        %3086 = vst.msk [vmem:[%s306] sm:$0xf] %vm3061, %v3070
        %3087 = vst.msk [vmem:[%s306 + $0x4] sm:$0xf] %vm3061, %v3078
        %3088 = vst.msk [vmem:[%s306 + $0x8] sm:$0xf] %vm3061, %v3071
        %3089 = vst.msk [vmem:[%s306 + $0xc] sm:$0xf] %vm3061, %v3079
        %3090 = vst.msk [vmem:[%s306 + $0x10] sm:$0xf] %vm3061, %v3072
        %3091 = vst.msk [vmem:[%s306 + $0x14] sm:$0xf] %vm3061, %v3080
        %3092 = vst.msk [vmem:[%s306 + $0x18] sm:$0xf] %vm3061, %v3073
        %3093 = vst.msk [vmem:[%s306 + $0x1c] sm:$0xf] %vm3061, %v3081
        %vm3094 = vcmask 59392
        %vm3095 = vsmask.f32 2304
        %vm3096 = vmand %vm3094, %vm3095
        %v3097 = vld [vmem:[#allocation4] sm:$0x7]
        %v3098 = vsel %vm3096, 0, %v3097
        %3099 = vst [vmem:[#allocation4] sm:$0x7] %v3098
        %v3100 = vld [vmem:[#allocation4 + $0x4] sm:$0x7]
        %v3101 = vsel %vm3096, 0, %v3100
        %3102 = vst [vmem:[#allocation4 + $0x4] sm:$0x7] %v3101
        %v3103 = vld [vmem:[#allocation4 + $0x8] sm:$0x7]
        %v3104 = vsel %vm3096, 0, %v3103
        %3105 = vst [vmem:[#allocation4 + $0x8] sm:$0x7] %v3104
        %v3106 = vld [vmem:[#allocation4 + $0xc] sm:$0x7]
        %v3107 = vsel %vm3096, 0, %v3106
        %3108 = vst [vmem:[#allocation4 + $0xc] sm:$0x7] %v3107
        %v3109 = vld [vmem:[#allocation4 + $0x10] sm:$0x7]
        %v3110 = vsel %vm3096, 0, %v3109
        %3111 = vst [vmem:[#allocation4 + $0x10] sm:$0x7] %v3110
        %v3112 = vld [vmem:[#allocation4 + $0x14] sm:$0x7]
        %v3113 = vsel %vm3096, 0, %v3112
        %3114 = vst [vmem:[#allocation4 + $0x14] sm:$0x7] %v3113
        %v3115 = vld [vmem:[#allocation4 + $0x18] sm:$0x7]
        %v3116 = vsel %vm3096, 0, %v3115
        %3117 = vst [vmem:[#allocation4 + $0x18] sm:$0x7] %v3116
        %v3118 = vld [vmem:[#allocation4 + $0x1c] sm:$0x7]
        %v3119 = vsel %vm3096, 0, %v3118
        %3120 = vst [vmem:[#allocation4 + $0x1c] sm:$0x7] %v3119
        %v3121 = vld [vmem:[#allocation4 + $0x20] sm:$0x7]
        %v3122 = vsel %vm3096, 0, %v3121
        %3123 = vst [vmem:[#allocation4 + $0x20] sm:$0x7] %v3122
        %v3124 = vld [vmem:[#allocation4 + $0x24] sm:$0x7]
        %v3125 = vsel %vm3096, 0, %v3124
        %3126 = vst [vmem:[#allocation4 + $0x24] sm:$0x7] %v3125
        %v3127 = vld [vmem:[#allocation4 + $0x28] sm:$0x7]
        %v3128 = vsel %vm3096, 0, %v3127
        %3129 = vst [vmem:[#allocation4 + $0x28] sm:$0x7] %v3128
        %v3130 = vld [vmem:[#allocation4 + $0x2c] sm:$0x7]
        %v3131 = vsel %vm3096, 0, %v3130
        %3132 = vst [vmem:[#allocation4 + $0x2c] sm:$0x7] %v3131
        %v3133 = vld [vmem:[#allocation4 + $0x30] sm:$0x7]
        %v3134 = vsel %vm3096, 0, %v3133
        %3135 = vst [vmem:[#allocation4 + $0x30] sm:$0x7] %v3134
        %v3136 = vld [vmem:[#allocation4 + $0x34] sm:$0x7]
        %v3137 = vsel %vm3096, 0, %v3136
        %3138 = vst [vmem:[#allocation4 + $0x34] sm:$0x7] %v3137
        %v3139 = vld [vmem:[#allocation4 + $0x38] sm:$0x7]
        %v3140 = vsel %vm3096, 0, %v3139
        %3141 = vst [vmem:[#allocation4 + $0x38] sm:$0x7] %v3140
        %v3142 = vld [vmem:[#allocation4 + $0x3c] sm:$0x7]
        %v3143 = vsel %vm3096, 0, %v3142
        %3144 = vst [vmem:[#allocation4 + $0x3c] sm:$0x7] %v3143
        %v3145 = vld [vmem:[#allocation4 + $0x40] sm:$0x7]
        %v3146 = vsel %vm3096, 0, %v3145
        %3147 = vst [vmem:[#allocation4 + $0x40] sm:$0x7] %v3146
        %v3148 = vld [vmem:[#allocation4 + $0x44] sm:$0x7]
        %v3149 = vsel %vm3096, 0, %v3148
        %3150 = vst [vmem:[#allocation4 + $0x44] sm:$0x7] %v3149
        %v3151 = vld [vmem:[#allocation4 + $0x48] sm:$0x7]
        %v3152 = vsel %vm3096, 0, %v3151
        %3153 = vst [vmem:[#allocation4 + $0x48] sm:$0x7] %v3152
        %v3154 = vld [vmem:[#allocation4 + $0x4c] sm:$0x7]
        %v3155 = vsel %vm3096, 0, %v3154
        %3156 = vst [vmem:[#allocation4 + $0x4c] sm:$0x7] %v3155
        %v3157 = vld [vmem:[#allocation2] sm:$0xff]
        %v3158 = vld [vmem:[#allocation2 + $0x8] sm:$0xff]
        %v3159 = vld [vmem:[#allocation2 + $0x10] sm:$0xff]
        %v3160 = vld [vmem:[#allocation2 + $0x18] sm:$0xff]
        %v3161 = vmax.f32 %v3157, 0.0
        %v3162 = vmax.f32 %v3158, 0.0
        %v3163 = vmax.f32 %v3159, 0.0
        %v3164 = vmax.f32 %v3160, 0.0
        %v3169 = vcombine.high %v3161, %v3161
        %v3170 = vcombine.high %v3162, %v3162
        %v3171 = vcombine.high %v3163, %v3163
        %v3172 = vcombine.high %v3164, %v3164
        %v3177 = vpack.c.bf16 %v3161, %v3161
        %v3178 = vpack.c.bf16 %v3169, %v3169
        %v3179 = vpack.c.bf16 %v3162, %v3162
        %v3180 = vpack.c.bf16 %v3170, %v3170
        %v3181 = vpack.c.bf16 %v3163, %v3163
        %v3182 = vpack.c.bf16 %v3171, %v3171
        %v3183 = vpack.c.bf16 %v3164, %v3164
        %v3184 = vpack.c.bf16 %v3172, %v3172
        %v3185 = vld [vmem:[#allocation3] sm:$0xff]
        %v3186 = vld [vmem:[#allocation3 + $0x8] sm:$0xff]
        %v3187 = vld [vmem:[#allocation3 + $0x10] sm:$0xff]
        %v3188 = vld [vmem:[#allocation3 + $0x18] sm:$0xff]
        %v3189 = vmax.f32 %v3185, 0.0
        %v3190 = vmax.f32 %v3186, 0.0
        %v3191 = vmax.f32 %v3187, 0.0
        %v3192 = vmax.f32 %v3188, 0.0
        %v3197 = vcombine.high %v3189, %v3189
        %v3198 = vcombine.high %v3190, %v3190
        %v3199 = vcombine.high %v3191, %v3191
        %v3200 = vcombine.high %v3192, %v3192
        %v3205 = vpack.c.bf16 %v3189, %v3189
        %v3206 = vpack.c.bf16 %v3197, %v3197
        %v3207 = vpack.c.bf16 %v3190, %v3190
        %v3208 = vpack.c.bf16 %v3198, %v3198
        %v3209 = vpack.c.bf16 %v3191, %v3191
        %v3210 = vpack.c.bf16 %v3199, %v3199
        %v3211 = vpack.c.bf16 %v3192, %v3192
        %v3212 = vpack.c.bf16 %v3200, %v3200
        %s3213 = scalar_lea.vmem [#allocation4], 60
        %vm3214 = vcmask 58368
        %3215 = vst.msk [vmem:[%s3213] sm:$0x3] %vm3214, %v3177
        %3216 = vst.msk [vmem:[%s3213 + $0x4] sm:$0x3] %vm3214, %v3179
        %3217 = vst.msk [vmem:[%s3213 + $0x8] sm:$0x3] %vm3214, %v3181
        %3218 = vst.msk [vmem:[%s3213 + $0xc] sm:$0x3] %vm3214, %v3183
        %s3219 = scalar_lea.vmem [#allocation4], 24
        %3220 = vst.msk [vmem:[%s3219] sm:$0x3] %vm3214, %v3178
        %3221 = vst.msk [vmem:[%s3219 + $0x4] sm:$0x3] %vm3214, %v3180
        %3222 = vst.msk [vmem:[%s3219 + $0x8] sm:$0x3] %vm3214, %v3182
        %3223 = vst.msk [vmem:[%s3219 + $0xc] sm:$0x3] %vm3214, %v3184
        %v3228 = vunpack.c.l.b16 %v3205
        %v3229 = vunpack.c.l.b16 %v3207
        %v3230 = vunpack.c.l.b16 %v3209
        %v3231 = vunpack.c.l.b16 %v3211
        %v3232 = vpack.c.b16 %v3228, %v3228
        %v3233 = vpack.c.b16 %v3229, %v3229
        %v3234 = vpack.c.b16 %v3230, %v3230
        %v3235 = vpack.c.b16 %v3231, %v3231
        %v3237 = vshrl.u32 %v3232, 16
        %v3239 = vrot.slane %v3237, 7
        %v3240 = vshll.u32 %v3232, 16
        %v3242 = vor.u32 %v3239, %v3240
        %v3244 = vshrl.u32 %v3233, 16
        %v3246 = vrot.slane %v3244, 7
        %v3247 = vshll.u32 %v3233, 16
        %v3249 = vor.u32 %v3246, %v3247
        %v3251 = vshrl.u32 %v3234, 16
        %v3253 = vrot.slane %v3251, 7
        %v3254 = vshll.u32 %v3234, 16
        %v3256 = vor.u32 %v3253, %v3254
        %v3258 = vshrl.u32 %v3235, 16
        %v3260 = vrot.slane %v3258, 7
        %v3261 = vshll.u32 %v3235, 16
        %v3263 = vor.u32 %v3260, %v3261
        %s3268 = scalar_lea.vmem [#allocation4], 40
        %vm3269 = vsmask.f32 2306
        %vm3270 = vmand %vm3094, %vm3269
        %v3271 = vld [vmem:[%s3268] sm:$0x7]
        %v3272 = vsel %vm3270, %v3242, %v3271
        %3273 = vst [vmem:[%s3268] sm:$0x7] %v3272
        %v3274 = vld [vmem:[%s3268 + $0x4] sm:$0x7]
        %v3275 = vsel %vm3270, %v3249, %v3274
        %3276 = vst [vmem:[%s3268 + $0x4] sm:$0x7] %v3275
        %v3277 = vld [vmem:[%s3268 + $0x8] sm:$0x7]
        %v3278 = vsel %vm3270, %v3256, %v3277
        %3279 = vst [vmem:[%s3268 + $0x8] sm:$0x7] %v3278
        %v3280 = vld [vmem:[%s3268 + $0xc] sm:$0x7]
        %v3281 = vsel %vm3270, %v3263, %v3280
        %3282 = vst [vmem:[%s3268 + $0xc] sm:$0x7] %v3281
        %v3287 = vunpack.c.l.b16 %v3206
        %v3288 = vunpack.c.l.b16 %v3208
        %v3289 = vunpack.c.l.b16 %v3210
        %v3290 = vunpack.c.l.b16 %v3212
        %v3291 = vpack.c.b16 %v3287, %v3287
        %v3292 = vpack.c.b16 %v3288, %v3288
        %v3293 = vpack.c.b16 %v3289, %v3289
        %v3294 = vpack.c.b16 %v3290, %v3290
        %v3296 = vshrl.u32 %v3291, 16
        %v3298 = vrot.slane %v3296, 7
        %v3299 = vshll.u32 %v3291, 16
        %v3301 = vor.u32 %v3298, %v3299
        %v3303 = vshrl.u32 %v3292, 16
        %v3305 = vrot.slane %v3303, 7
        %v3306 = vshll.u32 %v3292, 16
        %v3308 = vor.u32 %v3305, %v3306
        %v3310 = vshrl.u32 %v3293, 16
        %v3312 = vrot.slane %v3310, 7
        %v3313 = vshll.u32 %v3293, 16
        %v3315 = vor.u32 %v3312, %v3313
        %v3317 = vshrl.u32 %v3294, 16
        %v3319 = vrot.slane %v3317, 7
        %v3320 = vshll.u32 %v3294, 16
        %v3322 = vor.u32 %v3319, %v3320
        %s3327 = scalar_lea.vmem [#allocation4], 4
        %v3328 = vld [vmem:[%s3327] sm:$0x7]
        %v3329 = vsel %vm3270, %v3301, %v3328
        %3330 = vst [vmem:[%s3327] sm:$0x7] %v3329
        %v3331 = vld [vmem:[%s3327 + $0x4] sm:$0x7]
        %v3332 = vsel %vm3270, %v3308, %v3331
        %3333 = vst [vmem:[%s3327 + $0x4] sm:$0x7] %v3332
        %v3334 = vld [vmem:[%s3327 + $0x8] sm:$0x7]
        %v3335 = vsel %vm3270, %v3315, %v3334
        %3336 = vst [vmem:[%s3327 + $0x8] sm:$0x7] %v3335
        %v3337 = vld [vmem:[%s3327 + $0xc] sm:$0x7]
        %v3338 = vsel %vm3270, %v3322, %v3337
        %3339 = vst [vmem:[%s3327 + $0xc] sm:$0x7] %v3338
        %3340 = vst.msk [vmem:[#allocation5] sm:$0xff] %vm308, 0.0
        %3341 = vst.msk [vmem:[#allocation5 + $0x8] sm:$0xff] %vm308, 0.0
        %v3342 = vld [vmem:[%s3] sm:$0xf]
        %v3343 = vld [vmem:[#allocation4] sm:$0x3]
        %v3344 = vld [vmem:[#allocation4 + $0x4] sm:$0x3]
        %v3345 = vld [vmem:[#allocation4 + $0x8] sm:$0x3]
        %v3346 = vld [vmem:[#allocation4 + $0xc] sm:$0x3]
        %v3347 = vld [vmem:[#allocation5] sm:$0xff]
        %v3348 = vld [vmem:[#allocation5 + $0x8] sm:$0xff]
        %v3353 = vcombine.low %v3343, %v3344
        %v3354 = vcombine.low %v3345, %v3346
        %v3356 = vunpack.c.l.s4 1983009808
        %v3357 = vunpack.c.0.s8 %v3356
        %v3358 = vlaneseq
        %v3359 = vshrl.u32 %v3358, 7
        %v3360 = vsub.s32 %v3357, %v3359
        %v3361 = vrot.slane %v3353, %v3360
        %v3363 = vunpack.c.l.s4 1983009808
        %v3364 = vunpack.c.0.s8 %v3363
        %v3365 = vlaneseq
        %v3366 = vshrl.u32 %v3365, 7
        %v3367 = vsub.s32 %v3364, %v3366
        %v3368 = vrot.slane %v3354, %v3367
        %v3369 = vcombine.low %v3361, %v3368
        %v3371 = vsel %vm308, %v3369, 0
        %v3374 = vsel %vm378, %v3342, 0
        %3376 = vmatprep.subr.bf16.mxu0 0
        %3377 = vmatpush1.bf16.msra.mxu0 %v3374
        %3378 = vmatprep.subr.bf16.mxu0 0
        %3379 = vmatpush1.bf16.msra.mxu0 0
        %3380 = vmatprep.subr.bf16.mxu0 0
        %3381 = vmatpush1.bf16.msra.mxu0 0
        %3382 = vmatprep.subr.bf16.mxu0 0
        %3383 = vmatpush1.bf16.msra.mxu0 0
        %3384 = vmatprep.subr.bf16.mxu0 0
        %3385 = vmatpush1.bf16.msra.mxu0 0
        %3386 = vmatprep.subr.bf16.mxu0 0
        %3387 = vmatpush1.bf16.msra.mxu0 0
        %3388 = vmatprep.subr.bf16.mxu0 0
        %3389 = vmatpush1.bf16.msra.mxu0 0
        %3390 = vmatprep.subr.bf16.mxu0 0
        %3391 = vmatpush1.bf16.msra.mxu0 0
        %3392 = vmatprep.subr.bf16.mxu0 0
        %3393 = vmatpush1.bf16.msra.mxu0 0
        %3394 = vmatprep.subr.bf16.mxu0 0
        %3395 = vmatpush1.bf16.msra.mxu0 0
        %3396 = vmatprep.subr.bf16.mxu0 0
        %3397 = vmatpush1.bf16.msra.mxu0 0
        %3398 = vmatprep.subr.bf16.mxu0 0
        %3399 = vmatpush1.bf16.msra.mxu0 0
        %3400 = vmatprep.subr.bf16.mxu0 0
        %3401 = vmatpush1.bf16.msra.mxu0 0
        %3402 = vmatprep.subr.bf16.mxu0 0
        %3403 = vmatpush1.bf16.msra.mxu0 0
        %3404 = vmatprep.subr.bf16.mxu0 0
        %3405 = vmatpush1.bf16.msra.mxu0 0
        %3406 = vmatprep.subr.bf16.mxu0 0
        %3407 = vmatpush1.bf16.msra.mxu0 0
        %3408 = vmatprep.mubr.bf16.mxu0 0
        %3409 = vmatmul.mubr.bf16.gmra.mrb[0].mxu0 %v3371
        %v3410 = vpop.f32.mrb[0].mxu0
        %v3411 = vadd.f32 0.0, %v3410
        %v3412 = vpop.f32.mrb[0].mxu0
        %v3413 = vpop.f32.mrb[0].mxu0
        %v3414 = vadd.f32 0.0, %v3413
        %v3415 = vpop.f32.mrb[0].mxu0
        %3416 = vdwg.mxu0
        %v3417 = vadd.f32 %v3347, %v3411
        %v3418 = vadd.f32 %v3348, %v3414
        %3419 = vst.msk [vmem:[#allocation5] sm:$0xff] %vm308, %v3417
        %3420 = vst.msk [vmem:[#allocation5 + $0x8] sm:$0xff] %vm308, %v3418
        %s3421 = scalar_lea.vmem %s3, 4
        %v3422 = vld [vmem:[%s3421] sm:$0xf]
        %s3423 = scalar_lea.vmem [#allocation4], 20
        %v3424 = vld [vmem:[%s3423] sm:$0x3]
        %v3425 = vld [vmem:[%s3423 + $0x4] sm:$0x3]
        %v3426 = vld [vmem:[%s3423 + $0x8] sm:$0x3]
        %v3427 = vld [vmem:[%s3423 + $0xc] sm:$0x3]
        %v3428 = vld [vmem:[#allocation5] sm:$0xff]
        %v3429 = vld [vmem:[#allocation5 + $0x8] sm:$0xff]
        %v3434 = vcombine.low %v3424, %v3425
        %v3435 = vcombine.low %v3426, %v3427
        %v3437 = vunpack.c.l.s4 1983009808
        %v3438 = vunpack.c.0.s8 %v3437
        %v3439 = vlaneseq
        %v3440 = vshrl.u32 %v3439, 7
        %v3441 = vsub.s32 %v3438, %v3440
        %v3442 = vrot.slane %v3434, %v3441
        %v3444 = vunpack.c.l.s4 1983009808
        %v3445 = vunpack.c.0.s8 %v3444
        %v3446 = vlaneseq
        %v3447 = vshrl.u32 %v3446, 7
        %v3448 = vsub.s32 %v3445, %v3447
        %v3449 = vrot.slane %v3435, %v3448
        %v3450 = vcombine.low %v3442, %v3449
        %v3452 = vsel %vm308, %v3450, 0
        %v3455 = vsel %vm378, %v3422, 0
        %3457 = vmatprep.subr.bf16.mxu0 0
        %3458 = vmatpush1.bf16.msra.mxu0 %v3455
        %3459 = vmatprep.subr.bf16.mxu0 0
        %3460 = vmatpush1.bf16.msra.mxu0 0
        %3461 = vmatprep.subr.bf16.mxu0 0
        %3462 = vmatpush1.bf16.msra.mxu0 0
        %3463 = vmatprep.subr.bf16.mxu0 0
        %3464 = vmatpush1.bf16.msra.mxu0 0
        %3465 = vmatprep.subr.bf16.mxu0 0
        %3466 = vmatpush1.bf16.msra.mxu0 0
        %3467 = vmatprep.subr.bf16.mxu0 0
        %3468 = vmatpush1.bf16.msra.mxu0 0
        %3469 = vmatprep.subr.bf16.mxu0 0
        %3470 = vmatpush1.bf16.msra.mxu0 0
        %3471 = vmatprep.subr.bf16.mxu0 0
        %3472 = vmatpush1.bf16.msra.mxu0 0
        %3473 = vmatprep.subr.bf16.mxu0 0
        %3474 = vmatpush1.bf16.msra.mxu0 0
        %3475 = vmatprep.subr.bf16.mxu0 0
        %3476 = vmatpush1.bf16.msra.mxu0 0
        %3477 = vmatprep.subr.bf16.mxu0 0
        %3478 = vmatpush1.bf16.msra.mxu0 0
        %3479 = vmatprep.subr.bf16.mxu0 0
        %3480 = vmatpush1.bf16.msra.mxu0 0
        %3481 = vmatprep.subr.bf16.mxu0 0
        %3482 = vmatpush1.bf16.msra.mxu0 0
        %3483 = vmatprep.subr.bf16.mxu0 0
        %3484 = vmatpush1.bf16.msra.mxu0 0
        %3485 = vmatprep.subr.bf16.mxu0 0
        %3486 = vmatpush1.bf16.msra.mxu0 0
        %3487 = vmatprep.subr.bf16.mxu0 0
        %3488 = vmatpush1.bf16.msra.mxu0 0
        %3489 = vmatprep.mubr.bf16.mxu0 0
        %3490 = vmatmul.mubr.bf16.gmra.mrb[0].mxu0 %v3452
        %v3491 = vpop.f32.mrb[0].mxu0
        %v3492 = vadd.f32 0.0, %v3491
        %v3493 = vpop.f32.mrb[0].mxu0
        %v3494 = vpop.f32.mrb[0].mxu0
        %v3495 = vadd.f32 0.0, %v3494
        %v3496 = vpop.f32.mrb[0].mxu0
        %3497 = vdwg.mxu0
        %v3498 = vadd.f32 %v3428, %v3492
        %v3499 = vadd.f32 %v3429, %v3495
        %3500 = vst.msk [vmem:[#allocation5] sm:$0xff] %vm308, %v3498
        %3501 = vst.msk [vmem:[#allocation5 + $0x8] sm:$0xff] %vm308, %v3499
        %s3502 = scalar_lea.vmem %s3, 8
        %v3503 = vld [vmem:[%s3502] sm:$0xf]
        %v3504 = vld [vmem:[#allocation4] sm:$0x7]
        %v3505 = vld [vmem:[#allocation4 + $0x4] sm:$0x7]
        %v3506 = vld [vmem:[#allocation4 + $0x8] sm:$0x7]
        %v3507 = vld [vmem:[#allocation4 + $0xc] sm:$0x7]
        %v3513 = vunpack.c.l.s4 1983009808
        %v3514 = vunpack.c.0.s8 %v3513
        %v3515 = vlaneseq
        %v3516 = vshrl.u32 %v3515, 7
        %v3517 = vsub.s32 %v3514, %v3516
        %v3518 = vrot.slane %v3504, %v3517
        %v3519 = vcombine.high %v3518, %v3518
        %v3521 = vunpack.c.l.s4 1983009808
        %v3522 = vunpack.c.0.s8 %v3521
        %v3523 = vlaneseq
        %v3524 = vshrl.u32 %v3523, 7
        %v3525 = vsub.s32 %v3522, %v3524
        %v3526 = vrot.slane %v3505, %v3525
        %v3527 = vcombine.high %v3526, %v3526
        %v3529 = vunpack.c.l.s4 1983009808
        %v3530 = vunpack.c.0.s8 %v3529
        %v3531 = vlaneseq
        %v3532 = vshrl.u32 %v3531, 7
        %v3533 = vsub.s32 %v3530, %v3532
        %v3534 = vrot.slane %v3506, %v3533
        %v3535 = vcombine.high %v3534, %v3534
        %v3537 = vunpack.c.l.s4 1983009808
        %v3538 = vunpack.c.0.s8 %v3537
        %v3539 = vlaneseq
        %v3540 = vshrl.u32 %v3539, 7
        %v3541 = vsub.s32 %v3538, %v3540
        %v3542 = vrot.slane %v3507, %v3541
        %v3543 = vcombine.high %v3542, %v3542
        %v3545 = vshrl.u32 %v3518, 16
        %v3547 = vrot.slane %v3545, 6
        %v3548 = vshll.u32 %v3518, 16
        %v3550 = vrot.slane %v3548, 7
        %v3551 = vor.u32 %v3547, %v3550
        %v3552 = vrot.slane %v3551, 2
        %v3554 = vshll.u32 %v3519, 16
        %v3556 = vrot.slane %v3554, 7
        %v3557 = vsel %vm1006, %v3552, %v3556
        %v3559 = vshrl.u32 %v3526, 16
        %v3561 = vrot.slane %v3559, 6
        %v3562 = vshll.u32 %v3526, 16
        %v3564 = vrot.slane %v3562, 7
        %v3565 = vor.u32 %v3561, %v3564
        %v3566 = vrot.slane %v3565, 2
        %v3568 = vshll.u32 %v3527, 16
        %v3570 = vrot.slane %v3568, 7
        %v3571 = vsel %vm1006, %v3566, %v3570
        %v3573 = vshrl.u32 %v3534, 16
        %v3575 = vrot.slane %v3573, 6
        %v3576 = vshll.u32 %v3534, 16
        %v3578 = vrot.slane %v3576, 7
        %v3579 = vor.u32 %v3575, %v3578
        %v3580 = vrot.slane %v3579, 2
        %v3582 = vshll.u32 %v3535, 16
        %v3584 = vrot.slane %v3582, 7
        %v3585 = vsel %vm1006, %v3580, %v3584
        %v3587 = vshrl.u32 %v3542, 16
        %v3589 = vrot.slane %v3587, 6
        %v3590 = vshll.u32 %v3542, 16
        %v3592 = vrot.slane %v3590, 7
        %v3593 = vor.u32 %v3589, %v3592
        %v3594 = vrot.slane %v3593, 2
        %v3596 = vshll.u32 %v3543, 16
        %v3598 = vrot.slane %v3596, 7
        %v3599 = vsel %vm1006, %v3594, %v3598
        %v3600 = vld [vmem:[#allocation5] sm:$0xff]
        %v3601 = vld [vmem:[#allocation5 + $0x8] sm:$0xff]
        %v3602 = vcombine.low %v3557, %v3571
        %v3603 = vcombine.low %v3585, %v3599
        %v3605 = vunpack.c.l.s4 1983009808
        %v3606 = vunpack.c.0.s8 %v3605
        %v3607 = vlaneseq
        %v3608 = vshrl.u32 %v3607, 7
        %v3609 = vsub.s32 %v3606, %v3608
        %v3610 = vrot.slane %v3602, %v3609
        %v3612 = vunpack.c.l.s4 1983009808
        %v3613 = vunpack.c.0.s8 %v3612
        %v3614 = vlaneseq
        %v3615 = vshrl.u32 %v3614, 7
        %v3616 = vsub.s32 %v3613, %v3615
        %v3617 = vrot.slane %v3603, %v3616
        %v3618 = vcombine.low %v3610, %v3617
        %v3620 = vsel %vm308, %v3618, 0
        %v3623 = vsel %vm378, %v3503, 0
        %3625 = vmatprep.subr.bf16.mxu0 0
        %3626 = vmatpush1.bf16.msra.mxu0 %v3623
        %3627 = vmatprep.subr.bf16.mxu0 0
        %3628 = vmatpush1.bf16.msra.mxu0 0
        %3629 = vmatprep.subr.bf16.mxu0 0
        %3630 = vmatpush1.bf16.msra.mxu0 0
        %3631 = vmatprep.subr.bf16.mxu0 0
        %3632 = vmatpush1.bf16.msra.mxu0 0
        %3633 = vmatprep.subr.bf16.mxu0 0
        %3634 = vmatpush1.bf16.msra.mxu0 0
        %3635 = vmatprep.subr.bf16.mxu0 0
        %3636 = vmatpush1.bf16.msra.mxu0 0
        %3637 = vmatprep.subr.bf16.mxu0 0
        %3638 = vmatpush1.bf16.msra.mxu0 0
        %3639 = vmatprep.subr.bf16.mxu0 0
        %3640 = vmatpush1.bf16.msra.mxu0 0
        %3641 = vmatprep.subr.bf16.mxu0 0
        %3642 = vmatpush1.bf16.msra.mxu0 0
        %3643 = vmatprep.subr.bf16.mxu0 0
        %3644 = vmatpush1.bf16.msra.mxu0 0
        %3645 = vmatprep.subr.bf16.mxu0 0
        %3646 = vmatpush1.bf16.msra.mxu0 0
        %3647 = vmatprep.subr.bf16.mxu0 0
        %3648 = vmatpush1.bf16.msra.mxu0 0
        %3649 = vmatprep.subr.bf16.mxu0 0
        %3650 = vmatpush1.bf16.msra.mxu0 0
        %3651 = vmatprep.subr.bf16.mxu0 0
        %3652 = vmatpush1.bf16.msra.mxu0 0
        %3653 = vmatprep.subr.bf16.mxu0 0
        %3654 = vmatpush1.bf16.msra.mxu0 0
        %3655 = vmatprep.subr.bf16.mxu0 0
        %3656 = vmatpush1.bf16.msra.mxu0 0
        %3657 = vmatprep.mubr.bf16.mxu0 0
        %3658 = vmatmul.mubr.bf16.gmra.mrb[0].mxu0 %v3620
        %v3659 = vpop.f32.mrb[0].mxu0
        %v3660 = vadd.f32 0.0, %v3659
        %v3661 = vpop.f32.mrb[0].mxu0
        %v3662 = vpop.f32.mrb[0].mxu0
        %v3663 = vadd.f32 0.0, %v3662
        %v3664 = vpop.f32.mrb[0].mxu0
        %3665 = vdwg.mxu0
        %v3666 = vadd.f32 %v3600, %v3660
        %v3667 = vadd.f32 %v3601, %v3663
        %3668 = vst.msk [vmem:[#allocation5] sm:$0xff] %vm308, %v3666
        %3669 = vst.msk [vmem:[#allocation5 + $0x8] sm:$0xff] %vm308, %v3667
        %s3670 = scalar_lea.vmem %s3, 12
        %v3671 = vld [vmem:[%s3670] sm:$0xf]
        %v3672 = vld [vmem:[%s3268] sm:$0x3]
        %v3673 = vld [vmem:[%s3268 + $0x4] sm:$0x3]
        %v3674 = vld [vmem:[%s3268 + $0x8] sm:$0x3]
        %v3675 = vld [vmem:[%s3268 + $0xc] sm:$0x3]
        %v3676 = vld [vmem:[#allocation5] sm:$0xff]
        %v3677 = vld [vmem:[#allocation5 + $0x8] sm:$0xff]
        %v3682 = vcombine.low %v3672, %v3673
        %v3683 = vcombine.low %v3674, %v3675
        %v3685 = vunpack.c.l.s4 1983009808
        %v3686 = vunpack.c.0.s8 %v3685
        %v3687 = vlaneseq
        %v3688 = vshrl.u32 %v3687, 7
        %v3689 = vsub.s32 %v3686, %v3688
        %v3690 = vrot.slane %v3682, %v3689
        %v3692 = vunpack.c.l.s4 1983009808
        %v3693 = vunpack.c.0.s8 %v3692
        %v3694 = vlaneseq
        %v3695 = vshrl.u32 %v3694, 7
        %v3696 = vsub.s32 %v3693, %v3695
        %v3697 = vrot.slane %v3683, %v3696
        %v3698 = vcombine.low %v3690, %v3697
        %v3700 = vsel %vm308, %v3698, 0
        %v3703 = vsel %vm378, %v3671, 0
        %3705 = vmatprep.subr.bf16.mxu0 0
        %3706 = vmatpush1.bf16.msra.mxu0 %v3703
        %3707 = vmatprep.subr.bf16.mxu0 0
        %3708 = vmatpush1.bf16.msra.mxu0 0
        %3709 = vmatprep.subr.bf16.mxu0 0
        %3710 = vmatpush1.bf16.msra.mxu0 0
        %3711 = vmatprep.subr.bf16.mxu0 0
        %3712 = vmatpush1.bf16.msra.mxu0 0
        %3713 = vmatprep.subr.bf16.mxu0 0
        %3714 = vmatpush1.bf16.msra.mxu0 0
        %3715 = vmatprep.subr.bf16.mxu0 0
        %3716 = vmatpush1.bf16.msra.mxu0 0
        %3717 = vmatprep.subr.bf16.mxu0 0
        %3718 = vmatpush1.bf16.msra.mxu0 0
        %3719 = vmatprep.subr.bf16.mxu0 0
        %3720 = vmatpush1.bf16.msra.mxu0 0
        %3721 = vmatprep.subr.bf16.mxu0 0
        %3722 = vmatpush1.bf16.msra.mxu0 0
        %3723 = vmatprep.subr.bf16.mxu0 0
        %3724 = vmatpush1.bf16.msra.mxu0 0
        %3725 = vmatprep.subr.bf16.mxu0 0
        %3726 = vmatpush1.bf16.msra.mxu0 0
        %3727 = vmatprep.subr.bf16.mxu0 0
        %3728 = vmatpush1.bf16.msra.mxu0 0
        %3729 = vmatprep.subr.bf16.mxu0 0
        %3730 = vmatpush1.bf16.msra.mxu0 0
        %3731 = vmatprep.subr.bf16.mxu0 0
        %3732 = vmatpush1.bf16.msra.mxu0 0
        %3733 = vmatprep.subr.bf16.mxu0 0
        %3734 = vmatpush1.bf16.msra.mxu0 0
        %3735 = vmatprep.subr.bf16.mxu0 0
        %3736 = vmatpush1.bf16.msra.mxu0 0
        %3737 = vmatprep.mubr.bf16.mxu0 0
        %3738 = vmatmul.mubr.bf16.gmra.mrb[0].mxu0 %v3700
        %v3739 = vpop.f32.mrb[0].mxu0
        %v3740 = vadd.f32 0.0, %v3739
        %v3741 = vpop.f32.mrb[0].mxu0
        %v3742 = vpop.f32.mrb[0].mxu0
        %v3743 = vadd.f32 0.0, %v3742
        %v3744 = vpop.f32.mrb[0].mxu0
        %3745 = vdwg.mxu0
        %v3746 = vadd.f32 %v3676, %v3740
        %v3747 = vadd.f32 %v3677, %v3743
        %3748 = vst.msk [vmem:[#allocation5] sm:$0xff] %vm308, %v3746
        %3749 = vst.msk [vmem:[#allocation5 + $0x8] sm:$0xff] %vm308, %v3747
        %s3750 = scalar_lea.vmem %s3, 16
        %v3751 = vld [vmem:[%s3750] sm:$0xf]
        %v3752 = vld [vmem:[%s3213] sm:$0x3]
        %v3753 = vld [vmem:[%s3213 + $0x4] sm:$0x3]
        %v3754 = vld [vmem:[%s3213 + $0x8] sm:$0x3]
        %v3755 = vld [vmem:[%s3213 + $0xc] sm:$0x3]
        %v3756 = vld [vmem:[#allocation5] sm:$0xff]
        %v3757 = vld [vmem:[#allocation5 + $0x8] sm:$0xff]
        %v3762 = vcombine.low %v3752, %v3753
        %v3763 = vcombine.low %v3754, %v3755
        %v3765 = vunpack.c.l.s4 1983009808
        %v3766 = vunpack.c.0.s8 %v3765
        %v3767 = vlaneseq
        %v3768 = vshrl.u32 %v3767, 7
        %v3769 = vsub.s32 %v3766, %v3768
        %v3770 = vrot.slane %v3762, %v3769
        %v3772 = vunpack.c.l.s4 1983009808
        %v3773 = vunpack.c.0.s8 %v3772
        %v3774 = vlaneseq
        %v3775 = vshrl.u32 %v3774, 7
        %v3776 = vsub.s32 %v3773, %v3775
        %v3777 = vrot.slane %v3763, %v3776
        %v3778 = vcombine.low %v3770, %v3777
        %v3780 = vsel %vm308, %v3778, 0
        %v3783 = vsel %vm378, %v3751, 0
        %3785 = vmatprep.subr.bf16.mxu0 0
        %3786 = vmatpush1.bf16.msra.mxu0 %v3783
        %3787 = vmatprep.subr.bf16.mxu0 0
        %3788 = vmatpush1.bf16.msra.mxu0 0
        %3789 = vmatprep.subr.bf16.mxu0 0
        %3790 = vmatpush1.bf16.msra.mxu0 0
        %3791 = vmatprep.subr.bf16.mxu0 0
        %3792 = vmatpush1.bf16.msra.mxu0 0
        %3793 = vmatprep.subr.bf16.mxu0 0
        %3794 = vmatpush1.bf16.msra.mxu0 0
        %3795 = vmatprep.subr.bf16.mxu0 0
        %3796 = vmatpush1.bf16.msra.mxu0 0
        %3797 = vmatprep.subr.bf16.mxu0 0
        %3798 = vmatpush1.bf16.msra.mxu0 0
        %3799 = vmatprep.subr.bf16.mxu0 0
        %3800 = vmatpush1.bf16.msra.mxu0 0
        %3801 = vmatprep.subr.bf16.mxu0 0
        %3802 = vmatpush1.bf16.msra.mxu0 0
        %3803 = vmatprep.subr.bf16.mxu0 0
        %3804 = vmatpush1.bf16.msra.mxu0 0
        %3805 = vmatprep.subr.bf16.mxu0 0
        %3806 = vmatpush1.bf16.msra.mxu0 0
        %3807 = vmatprep.subr.bf16.mxu0 0
        %3808 = vmatpush1.bf16.msra.mxu0 0
        %3809 = vmatprep.subr.bf16.mxu0 0
        %3810 = vmatpush1.bf16.msra.mxu0 0
        %3811 = vmatprep.subr.bf16.mxu0 0
        %3812 = vmatpush1.bf16.msra.mxu0 0
        %3813 = vmatprep.subr.bf16.mxu0 0
        %3814 = vmatpush1.bf16.msra.mxu0 0
        %3815 = vmatprep.subr.bf16.mxu0 0
        %3816 = vmatpush1.bf16.msra.mxu0 0
        %3817 = vmatprep.mubr.bf16.mxu0 0
        %3818 = vmatmul.mubr.bf16.gmra.mrb[0].mxu0 %v3780
        %v3819 = vpop.f32.mrb[0].mxu0
        %v3820 = vadd.f32 0.0, %v3819
        %v3821 = vpop.f32.mrb[0].mxu0
        %v3822 = vpop.f32.mrb[0].mxu0
        %v3823 = vadd.f32 0.0, %v3822
        %v3824 = vpop.f32.mrb[0].mxu0
        %3825 = vdwg.mxu0
        %v3826 = vadd.f32 %v3756, %v3820
        %v3827 = vadd.f32 %v3757, %v3823
        %3828 = vst.msk [vmem:[#allocation5] sm:$0xff] %vm308, %v3826
        %3829 = vst.msk [vmem:[#allocation5 + $0x8] sm:$0xff] %vm308, %v3827
        %s3830 = scalar_lea.vmem %s3, 20
        %v3831 = vld [vmem:[%s3830] sm:$0xf]
        %v3832 = vld [vmem:[%s3268] sm:$0x7]
        %v3833 = vld [vmem:[%s3268 + $0x4] sm:$0x7]
        %v3834 = vld [vmem:[%s3268 + $0x8] sm:$0x7]
        %v3835 = vld [vmem:[%s3268 + $0xc] sm:$0x7]
        %v3841 = vunpack.c.l.s4 1983009808
        %v3842 = vunpack.c.0.s8 %v3841
        %v3843 = vlaneseq
        %v3844 = vshrl.u32 %v3843, 7
        %v3845 = vsub.s32 %v3842, %v3844
        %v3846 = vrot.slane %v3832, %v3845
        %v3847 = vcombine.high %v3846, %v3846
        %v3849 = vunpack.c.l.s4 1983009808
        %v3850 = vunpack.c.0.s8 %v3849
        %v3851 = vlaneseq
        %v3852 = vshrl.u32 %v3851, 7
        %v3853 = vsub.s32 %v3850, %v3852
        %v3854 = vrot.slane %v3833, %v3853
        %v3855 = vcombine.high %v3854, %v3854
        %v3857 = vunpack.c.l.s4 1983009808
        %v3858 = vunpack.c.0.s8 %v3857
        %v3859 = vlaneseq
        %v3860 = vshrl.u32 %v3859, 7
        %v3861 = vsub.s32 %v3858, %v3860
        %v3862 = vrot.slane %v3834, %v3861
        %v3863 = vcombine.high %v3862, %v3862
        %v3865 = vunpack.c.l.s4 1983009808
        %v3866 = vunpack.c.0.s8 %v3865
        %v3867 = vlaneseq
        %v3868 = vshrl.u32 %v3867, 7
        %v3869 = vsub.s32 %v3866, %v3868
        %v3870 = vrot.slane %v3835, %v3869
        %v3871 = vcombine.high %v3870, %v3870
        %v3873 = vshrl.u32 %v3846, 16
        %v3875 = vrot.slane %v3873, 6
        %v3876 = vshll.u32 %v3846, 16
        %v3878 = vrot.slane %v3876, 7
        %v3879 = vor.u32 %v3875, %v3878
        %v3880 = vrot.slane %v3879, 2
        %v3882 = vshll.u32 %v3847, 16
        %v3884 = vrot.slane %v3882, 7
        %v3885 = vsel %vm1006, %v3880, %v3884
        %v3887 = vshrl.u32 %v3854, 16
        %v3889 = vrot.slane %v3887, 6
        %v3890 = vshll.u32 %v3854, 16
        %v3892 = vrot.slane %v3890, 7
        %v3893 = vor.u32 %v3889, %v3892
        %v3894 = vrot.slane %v3893, 2
        %v3896 = vshll.u32 %v3855, 16
        %v3898 = vrot.slane %v3896, 7
        %v3899 = vsel %vm1006, %v3894, %v3898
        %v3901 = vshrl.u32 %v3862, 16
        %v3903 = vrot.slane %v3901, 6
        %v3904 = vshll.u32 %v3862, 16
        %v3906 = vrot.slane %v3904, 7
        %v3907 = vor.u32 %v3903, %v3906
        %v3908 = vrot.slane %v3907, 2
        %v3910 = vshll.u32 %v3863, 16
        %v3912 = vrot.slane %v3910, 7
        %v3913 = vsel %vm1006, %v3908, %v3912
        %v3915 = vshrl.u32 %v3870, 16
        %v3917 = vrot.slane %v3915, 6
        %v3918 = vshll.u32 %v3870, 16
        %v3920 = vrot.slane %v3918, 7
        %v3921 = vor.u32 %v3917, %v3920
        %v3922 = vrot.slane %v3921, 2
        %v3924 = vshll.u32 %v3871, 16
        %v3926 = vrot.slane %v3924, 7
        %v3927 = vsel %vm1006, %v3922, %v3926
        %v3928 = vld [vmem:[#allocation5] sm:$0xff]
        %v3929 = vld [vmem:[#allocation5 + $0x8] sm:$0xff]
        %v3930 = vcombine.low %v3885, %v3899
        %v3931 = vcombine.low %v3913, %v3927
        %v3933 = vunpack.c.l.s4 1983009808
        %v3934 = vunpack.c.0.s8 %v3933
        %v3935 = vlaneseq
        %v3936 = vshrl.u32 %v3935, 7
        %v3937 = vsub.s32 %v3934, %v3936
        %v3938 = vrot.slane %v3930, %v3937
        %v3940 = vunpack.c.l.s4 1983009808
        %v3941 = vunpack.c.0.s8 %v3940
        %v3942 = vlaneseq
        %v3943 = vshrl.u32 %v3942, 7
        %v3944 = vsub.s32 %v3941, %v3943
        %v3945 = vrot.slane %v3931, %v3944
        %v3946 = vcombine.low %v3938, %v3945
        %v3948 = vsel %vm308, %v3946, 0
        %v3951 = vsel %vm378, %v3831, 0
        %3953 = vmatprep.subr.bf16.mxu0 0
        %3954 = vmatpush1.bf16.msra.mxu0 %v3951
        %3955 = vmatprep.subr.bf16.mxu0 0
        %3956 = vmatpush1.bf16.msra.mxu0 0
        %3957 = vmatprep.subr.bf16.mxu0 0
        %3958 = vmatpush1.bf16.msra.mxu0 0
        %3959 = vmatprep.subr.bf16.mxu0 0
        %3960 = vmatpush1.bf16.msra.mxu0 0
        %3961 = vmatprep.subr.bf16.mxu0 0
        %3962 = vmatpush1.bf16.msra.mxu0 0
        %3963 = vmatprep.subr.bf16.mxu0 0
        %3964 = vmatpush1.bf16.msra.mxu0 0
        %3965 = vmatprep.subr.bf16.mxu0 0
        %3966 = vmatpush1.bf16.msra.mxu0 0
        %3967 = vmatprep.subr.bf16.mxu0 0
        %3968 = vmatpush1.bf16.msra.mxu0 0
        %3969 = vmatprep.subr.bf16.mxu0 0
        %3970 = vmatpush1.bf16.msra.mxu0 0
        %3971 = vmatprep.subr.bf16.mxu0 0
        %3972 = vmatpush1.bf16.msra.mxu0 0
        %3973 = vmatprep.subr.bf16.mxu0 0
        %3974 = vmatpush1.bf16.msra.mxu0 0
        %3975 = vmatprep.subr.bf16.mxu0 0
        %3976 = vmatpush1.bf16.msra.mxu0 0
        %3977 = vmatprep.subr.bf16.mxu0 0
        %3978 = vmatpush1.bf16.msra.mxu0 0
        %3979 = vmatprep.subr.bf16.mxu0 0
        %3980 = vmatpush1.bf16.msra.mxu0 0
        %3981 = vmatprep.subr.bf16.mxu0 0
        %3982 = vmatpush1.bf16.msra.mxu0 0
        %3983 = vmatprep.subr.bf16.mxu0 0
        %3984 = vmatpush1.bf16.msra.mxu0 0
        %3985 = vmatprep.mubr.bf16.mxu0 0
        %3986 = vmatmul.mubr.bf16.gmra.mrb[0].mxu0 %v3948
        %v3987 = vpop.f32.mrb[0].mxu0
        %v3988 = vadd.f32 0.0, %v3987
        %v3989 = vpop.f32.mrb[0].mxu0
        %v3990 = vpop.f32.mrb[0].mxu0
        %v3991 = vadd.f32 0.0, %v3990
        %v3992 = vpop.f32.mrb[0].mxu0
        %3993 = vdwg.mxu0
        %v3994 = vadd.f32 %v3928, %v3988
        %v3995 = vadd.f32 %v3929, %v3991
        %3996 = vst.msk [vmem:[#allocation5] sm:$0xff] %vm308, %v3994
        %3997 = vst.msk [vmem:[#allocation5 + $0x8] sm:$0xff] %vm308, %v3995
        %s3998 = scalar_lea.vmem %s3, 24
        %v3999 = vld [vmem:[%s3998] sm:$0xf]
        %v4000 = vld [vmem:[%s3327] sm:$0x3]
        %v4001 = vld [vmem:[%s3327 + $0x4] sm:$0x3]
        %v4002 = vld [vmem:[%s3327 + $0x8] sm:$0x3]
        %v4003 = vld [vmem:[%s3327 + $0xc] sm:$0x3]
        %v4004 = vld [vmem:[#allocation5] sm:$0xff]
        %v4005 = vld [vmem:[#allocation5 + $0x8] sm:$0xff]
        %v4010 = vcombine.low %v4000, %v4001
        %v4011 = vcombine.low %v4002, %v4003
        %v4013 = vunpack.c.l.s4 1983009808
        %v4014 = vunpack.c.0.s8 %v4013
        %v4015 = vlaneseq
        %v4016 = vshrl.u32 %v4015, 7
        %v4017 = vsub.s32 %v4014, %v4016
        %v4018 = vrot.slane %v4010, %v4017
        %v4020 = vunpack.c.l.s4 1983009808
        %v4021 = vunpack.c.0.s8 %v4020
        %v4022 = vlaneseq
        %v4023 = vshrl.u32 %v4022, 7
        %v4024 = vsub.s32 %v4021, %v4023
        %v4025 = vrot.slane %v4011, %v4024
        %v4026 = vcombine.low %v4018, %v4025
        %v4028 = vsel %vm308, %v4026, 0
        %v4031 = vsel %vm378, %v3999, 0
        %4033 = vmatprep.subr.bf16.mxu0 0
        %4034 = vmatpush1.bf16.msra.mxu0 %v4031
        %4035 = vmatprep.subr.bf16.mxu0 0
        %4036 = vmatpush1.bf16.msra.mxu0 0
        %4037 = vmatprep.subr.bf16.mxu0 0
        %4038 = vmatpush1.bf16.msra.mxu0 0
        %4039 = vmatprep.subr.bf16.mxu0 0
        %4040 = vmatpush1.bf16.msra.mxu0 0
        %4041 = vmatprep.subr.bf16.mxu0 0
        %4042 = vmatpush1.bf16.msra.mxu0 0
        %4043 = vmatprep.subr.bf16.mxu0 0
        %4044 = vmatpush1.bf16.msra.mxu0 0
        %4045 = vmatprep.subr.bf16.mxu0 0
        %4046 = vmatpush1.bf16.msra.mxu0 0
        %4047 = vmatprep.subr.bf16.mxu0 0
        %4048 = vmatpush1.bf16.msra.mxu0 0
        %4049 = vmatprep.subr.bf16.mxu0 0
        %4050 = vmatpush1.bf16.msra.mxu0 0
        %4051 = vmatprep.subr.bf16.mxu0 0
        %4052 = vmatpush1.bf16.msra.mxu0 0
        %4053 = vmatprep.subr.bf16.mxu0 0
        %4054 = vmatpush1.bf16.msra.mxu0 0
        %4055 = vmatprep.subr.bf16.mxu0 0
        %4056 = vmatpush1.bf16.msra.mxu0 0
        %4057 = vmatprep.subr.bf16.mxu0 0
        %4058 = vmatpush1.bf16.msra.mxu0 0
        %4059 = vmatprep.subr.bf16.mxu0 0
        %4060 = vmatpush1.bf16.msra.mxu0 0
        %4061 = vmatprep.subr.bf16.mxu0 0
        %4062 = vmatpush1.bf16.msra.mxu0 0
        %4063 = vmatprep.subr.bf16.mxu0 0
        %4064 = vmatpush1.bf16.msra.mxu0 0
        %4065 = vmatprep.mubr.bf16.mxu0 0
        %4066 = vmatmul.mubr.bf16.gmra.mrb[0].mxu0 %v4028
        %v4067 = vpop.f32.mrb[0].mxu0
        %v4068 = vadd.f32 0.0, %v4067
        %v4069 = vpop.f32.mrb[0].mxu0
        %v4070 = vpop.f32.mrb[0].mxu0
        %v4071 = vadd.f32 0.0, %v4070
        %v4072 = vpop.f32.mrb[0].mxu0
        %4073 = vdwg.mxu0
        %v4074 = vadd.f32 %v4004, %v4068
        %v4075 = vadd.f32 %v4005, %v4071
        %4076 = vst.msk [vmem:[#allocation5] sm:$0xff] %vm308, %v4074
        %4077 = vst.msk [vmem:[#allocation5 + $0x8] sm:$0xff] %vm308, %v4075
        %s4078 = scalar_lea.vmem %s3, 28
        %v4079 = vld [vmem:[%s4078] sm:$0xf]
        %v4080 = vld [vmem:[%s3219] sm:$0x3]
        %v4081 = vld [vmem:[%s3219 + $0x4] sm:$0x3]
        %v4082 = vld [vmem:[%s3219 + $0x8] sm:$0x3]
        %v4083 = vld [vmem:[%s3219 + $0xc] sm:$0x3]
        %v4084 = vld [vmem:[#allocation5] sm:$0xff]
        %v4085 = vld [vmem:[#allocation5 + $0x8] sm:$0xff]
        %v4090 = vcombine.low %v4080, %v4081
        %v4091 = vcombine.low %v4082, %v4083
        %v4093 = vunpack.c.l.s4 1983009808
        %v4094 = vunpack.c.0.s8 %v4093
        %v4095 = vlaneseq
        %v4096 = vshrl.u32 %v4095, 7
        %v4097 = vsub.s32 %v4094, %v4096
        %v4098 = vrot.slane %v4090, %v4097
        %v4100 = vunpack.c.l.s4 1983009808
        %v4101 = vunpack.c.0.s8 %v4100
        %v4102 = vlaneseq
        %v4103 = vshrl.u32 %v4102, 7
        %v4104 = vsub.s32 %v4101, %v4103
        %v4105 = vrot.slane %v4091, %v4104
        %v4106 = vcombine.low %v4098, %v4105
        %v4108 = vsel %vm308, %v4106, 0
        %v4111 = vsel %vm378, %v4079, 0
        %4113 = vmatprep.subr.bf16.mxu0 0
        %4114 = vmatpush1.bf16.msra.mxu0 %v4111
        %4115 = vmatprep.subr.bf16.mxu0 0
        %4116 = vmatpush1.bf16.msra.mxu0 0
        %4117 = vmatprep.subr.bf16.mxu0 0
        %4118 = vmatpush1.bf16.msra.mxu0 0
        %4119 = vmatprep.subr.bf16.mxu0 0
        %4120 = vmatpush1.bf16.msra.mxu0 0
        %4121 = vmatprep.subr.bf16.mxu0 0
        %4122 = vmatpush1.bf16.msra.mxu0 0
        %4123 = vmatprep.subr.bf16.mxu0 0
        %4124 = vmatpush1.bf16.msra.mxu0 0
        %4125 = vmatprep.subr.bf16.mxu0 0
        %4126 = vmatpush1.bf16.msra.mxu0 0
        %4127 = vmatprep.subr.bf16.mxu0 0
        %4128 = vmatpush1.bf16.msra.mxu0 0
        %4129 = vmatprep.subr.bf16.mxu0 0
        %4130 = vmatpush1.bf16.msra.mxu0 0
        %4131 = vmatprep.subr.bf16.mxu0 0
        %4132 = vmatpush1.bf16.msra.mxu0 0
        %4133 = vmatprep.subr.bf16.mxu0 0
        %4134 = vmatpush1.bf16.msra.mxu0 0
        %4135 = vmatprep.subr.bf16.mxu0 0
        %4136 = vmatpush1.bf16.msra.mxu0 0
        %4137 = vmatprep.subr.bf16.mxu0 0
        %4138 = vmatpush1.bf16.msra.mxu0 0
        %4139 = vmatprep.subr.bf16.mxu0 0
        %4140 = vmatpush1.bf16.msra.mxu0 0
        %4141 = vmatprep.subr.bf16.mxu0 0
        %4142 = vmatpush1.bf16.msra.mxu0 0
        %4143 = vmatprep.subr.bf16.mxu0 0
        %4144 = vmatpush1.bf16.msra.mxu0 0
        %4145 = vmatprep.mubr.bf16.mxu0 0
        %4146 = vmatmul.mubr.bf16.gmra.mrb[0].mxu0 %v4108
        %v4147 = vpop.f32.mrb[0].mxu0
        %v4148 = vadd.f32 0.0, %v4147
        %v4149 = vpop.f32.mrb[0].mxu0
        %v4150 = vpop.f32.mrb[0].mxu0
        %v4151 = vadd.f32 0.0, %v4150
        %v4152 = vpop.f32.mrb[0].mxu0
        %4153 = vdwg.mxu0
        %v4154 = vadd.f32 %v4084, %v4148
        %v4155 = vadd.f32 %v4085, %v4151
        %4156 = vst.msk [vmem:[#allocation5] sm:$0xff] %vm308, %v4154
        %4157 = vst.msk [vmem:[#allocation5 + $0x8] sm:$0xff] %vm308, %v4155
        %s4158 = scalar_lea.vmem %s3, 32
        %v4159 = vld [vmem:[%s4158] sm:$0xf]
        %v4160 = vld [vmem:[%s3327] sm:$0x7]
        %v4161 = vld [vmem:[%s3327 + $0x4] sm:$0x7]
        %v4162 = vld [vmem:[%s3327 + $0x8] sm:$0x7]
        %v4163 = vld [vmem:[%s3327 + $0xc] sm:$0x7]
        %v4169 = vunpack.c.l.s4 1983009808
        %v4170 = vunpack.c.0.s8 %v4169
        %v4171 = vlaneseq
        %v4172 = vshrl.u32 %v4171, 7
        %v4173 = vsub.s32 %v4170, %v4172
        %v4174 = vrot.slane %v4160, %v4173
        %v4175 = vcombine.high %v4174, %v4174
        %v4177 = vunpack.c.l.s4 1983009808
        %v4178 = vunpack.c.0.s8 %v4177
        %v4179 = vlaneseq
        %v4180 = vshrl.u32 %v4179, 7
        %v4181 = vsub.s32 %v4178, %v4180
        %v4182 = vrot.slane %v4161, %v4181
        %v4183 = vcombine.high %v4182, %v4182
        %v4185 = vunpack.c.l.s4 1983009808
        %v4186 = vunpack.c.0.s8 %v4185
        %v4187 = vlaneseq
        %v4188 = vshrl.u32 %v4187, 7
        %v4189 = vsub.s32 %v4186, %v4188
        %v4190 = vrot.slane %v4162, %v4189
        %v4191 = vcombine.high %v4190, %v4190
        %v4193 = vunpack.c.l.s4 1983009808
        %v4194 = vunpack.c.0.s8 %v4193
        %v4195 = vlaneseq
        %v4196 = vshrl.u32 %v4195, 7
        %v4197 = vsub.s32 %v4194, %v4196
        %v4198 = vrot.slane %v4163, %v4197
        %v4199 = vcombine.high %v4198, %v4198
        %v4201 = vshrl.u32 %v4174, 16
        %v4203 = vrot.slane %v4201, 6
        %v4204 = vshll.u32 %v4174, 16
        %v4206 = vrot.slane %v4204, 7
        %v4207 = vor.u32 %v4203, %v4206
        %v4208 = vrot.slane %v4207, 2
        %v4210 = vshll.u32 %v4175, 16
        %v4212 = vrot.slane %v4210, 7
        %v4213 = vsel %vm1006, %v4208, %v4212
        %v4215 = vshrl.u32 %v4182, 16
        %v4217 = vrot.slane %v4215, 6
        %v4218 = vshll.u32 %v4182, 16
        %v4220 = vrot.slane %v4218, 7
        %v4221 = vor.u32 %v4217, %v4220
        %v4222 = vrot.slane %v4221, 2
        %v4224 = vshll.u32 %v4183, 16
        %v4226 = vrot.slane %v4224, 7
        %v4227 = vsel %vm1006, %v4222, %v4226
        %v4229 = vshrl.u32 %v4190, 16
        %v4231 = vrot.slane %v4229, 6
        %v4232 = vshll.u32 %v4190, 16
        %v4234 = vrot.slane %v4232, 7
        %v4235 = vor.u32 %v4231, %v4234
        %v4236 = vrot.slane %v4235, 2
        %v4238 = vshll.u32 %v4191, 16
        %v4240 = vrot.slane %v4238, 7
        %v4241 = vsel %vm1006, %v4236, %v4240
        %v4243 = vshrl.u32 %v4198, 16
        %v4245 = vrot.slane %v4243, 6
        %v4246 = vshll.u32 %v4198, 16
        %v4248 = vrot.slane %v4246, 7
        %v4249 = vor.u32 %v4245, %v4248
        %v4250 = vrot.slane %v4249, 2
        %v4252 = vshll.u32 %v4199, 16
        %v4254 = vrot.slane %v4252, 7
        %v4255 = vsel %vm1006, %v4250, %v4254
        %v4256 = vld [vmem:[#allocation5] sm:$0xff]
        %v4257 = vld [vmem:[#allocation5 + $0x8] sm:$0xff]
        %v4258 = vcombine.low %v4213, %v4227
        %v4259 = vcombine.low %v4241, %v4255
        %v4261 = vunpack.c.l.s4 1983009808
        %v4262 = vunpack.c.0.s8 %v4261
        %v4263 = vlaneseq
        %v4264 = vshrl.u32 %v4263, 7
        %v4265 = vsub.s32 %v4262, %v4264
        %v4266 = vrot.slane %v4258, %v4265
        %v4268 = vunpack.c.l.s4 1983009808
        %v4269 = vunpack.c.0.s8 %v4268
        %v4270 = vlaneseq
        %v4271 = vshrl.u32 %v4270, 7
        %v4272 = vsub.s32 %v4269, %v4271
        %v4273 = vrot.slane %v4259, %v4272
        %v4274 = vcombine.low %v4266, %v4273
        %v4276 = vsel %vm308, %v4274, 0
        %v4279 = vsel %vm378, %v4159, 0
        %4281 = vmatprep.subr.bf16.mxu0 0
        %4282 = vmatpush1.bf16.msra.mxu0 %v4279
        %4283 = vmatprep.subr.bf16.mxu0 0
        %4284 = vmatpush1.bf16.msra.mxu0 0
        %4285 = vmatprep.subr.bf16.mxu0 0
        %4286 = vmatpush1.bf16.msra.mxu0 0
        %4287 = vmatprep.subr.bf16.mxu0 0
        %4288 = vmatpush1.bf16.msra.mxu0 0
        %4289 = vmatprep.subr.bf16.mxu0 0
        %4290 = vmatpush1.bf16.msra.mxu0 0
        %4291 = vmatprep.subr.bf16.mxu0 0
        %4292 = vmatpush1.bf16.msra.mxu0 0
        %4293 = vmatprep.subr.bf16.mxu0 0
        %4294 = vmatpush1.bf16.msra.mxu0 0
        %4295 = vmatprep.subr.bf16.mxu0 0
        %4296 = vmatpush1.bf16.msra.mxu0 0
        %4297 = vmatprep.subr.bf16.mxu0 0
        %4298 = vmatpush1.bf16.msra.mxu0 0
        %4299 = vmatprep.subr.bf16.mxu0 0
        %4300 = vmatpush1.bf16.msra.mxu0 0
        %4301 = vmatprep.subr.bf16.mxu0 0
        %4302 = vmatpush1.bf16.msra.mxu0 0
        %4303 = vmatprep.subr.bf16.mxu0 0
        %4304 = vmatpush1.bf16.msra.mxu0 0
        %4305 = vmatprep.subr.bf16.mxu0 0
        %4306 = vmatpush1.bf16.msra.mxu0 0
        %4307 = vmatprep.subr.bf16.mxu0 0
        %4308 = vmatpush1.bf16.msra.mxu0 0
        %4309 = vmatprep.subr.bf16.mxu0 0
        %4310 = vmatpush1.bf16.msra.mxu0 0
        %4311 = vmatprep.subr.bf16.mxu0 0
        %4312 = vmatpush1.bf16.msra.mxu0 0
        %4313 = vmatprep.mubr.bf16.mxu0 0
        %4314 = vmatmul.mubr.bf16.gmra.mrb[0].mxu0 %v4276
        %v4315 = vpop.f32.mrb[0].mxu0
        %v4316 = vadd.f32 0.0, %v4315
        %v4317 = vpop.f32.mrb[0].mxu0
        %v4318 = vpop.f32.mrb[0].mxu0
        %v4319 = vadd.f32 0.0, %v4318
        %v4320 = vpop.f32.mrb[0].mxu0
        %4321 = vdwg.mxu0
        %v4322 = vadd.f32 %v4256, %v4316
        %v4323 = vadd.f32 %v4257, %v4319
        %4324 = vst.msk [vmem:[#allocation5] sm:$0xff] %vm308, %v4322
        %4325 = vst.msk [vmem:[#allocation5 + $0x8] sm:$0xff] %vm308, %v4323
        %v4326 = vld [vmem:[#allocation5] sm:$0xff]
        %v4327 = vld [vmem:[#allocation5 + $0x8] sm:$0xff]
        %v4328 = vld [vmem:[%s4] sm:$0x1]
        %v4330 = vlaneseq
        %v4331 = vshrl.u32 %v4330, 7
        %v4332 = vsub.s32 0, %v4331
        %v4333 = vrot.slane %v4328, %v4332
        %v4335 = vadd.f32 %v4326, %v4333
        %v4336 = vadd.f32 %v4327, %v4333
        %v4339 = vcombine.high %v4335, %v4335
        %v4340 = vcombine.high %v4336, %v4336
        %4343 = vst.msk [vmem:[%s289] sm:$0xf] %vm3061, %v4335
        %4344 = vst.msk [vmem:[%s289 + $0x4] sm:$0xf] %vm3061, %v4339
        %4345 = vst.msk [vmem:[%s289 + $0x8] sm:$0xf] %vm3061, %v4336
        %4346 = vst.msk [vmem:[%s289 + $0xc] sm:$0xf] %vm3061, %v4340
        %p4347 = scmp.lt.s32.totalorder %s22, 1
        %s4348 = scalar_select %p4347, %s22, 1
        %s4349 = smul.addr %s4348, 8
        %s4350 = smul.addr %s4349, 4
        %s4351 = scalar_lea.vmem %s5, %s4350
        %p4352 = scmp.lt.s32.totalorder %s22, 1
        %s4353 = scalar_select %p4352, %s22, 1
        %s4354 = smul.addr %s4353, 8
        %s4355 = smul.addr %s4354, 4
        %s4356 = scalar_lea.vmem %s6, %s4355
        %s4357 = sand.u32 %s192, 1
        %s4358 = scalar_lea.sflag [#allocation7], %s4357
        %s4359 = sand.u32 %s192, 1
        %s4360 = smul.addr %s4359, 16
        %s4361 = scalar_lea.vmem [#allocation6], %s4360
        // Predicated region
        $region41: #{last_level_p6p7_fused.1} parent=39 // pred_check
          %p4362 = pneg %p150
        $region42: #{last_level_p6p7_fused.1} parent=39 // pred_check_branch
          %4364 = sbr.rel (%p4362) target = $region44
        $region43: #{last_level_p6p7_fused.1} parent=39 // pred_region
          _
        $region44: #{last_level_p6p7_fused.1} parent=39 // pred_fallthru
          _
        // Predicated region
        $region45: #{last_level_p6p7_fused.1} parent=39 // pred_check
          %p4365 = pneg %p176
        $region46: #{last_level_p6p7_fused.1} parent=39 // pred_check_branch
          %4367 = sbr.rel (%p4365) target = $region48
        $region47: #{last_level_p6p7_fused.1} parent=39 // pred_region
          _
        $region48: #{last_level_p6p7_fused.1} parent=39 // pred_fallthru
          _
        // Predicated region
        $region49: #{last_level_p6p7_fused.1} parent=39 // pred_check
          %p4368 = pneg %p202
        $region50: #{last_level_p6p7_fused.1} parent=39 // pred_check_branch
          %4370 = sbr.rel (%p4368) target = $region52
        $region51: #{last_level_p6p7_fused.1} parent=39 // pred_region
          %s4372 = ssub.s32 256, 256
          %4373 = vsyncadd %s4358, %s4372
          %s4374 = smul.addr %s22, 4
          %s4375 = smul.addr %s4374, 64
          %s4376 = scalar_lea.hbm %s7, %s4375
          %s4377 = sshll.u32 %s4361, 4
          %s4378 = int_to_ptr.vmem [resolvable:$true] %s4377
          %4383 = dma.vmem_to_hbm [thread:$0]  %s4378, 256, %s4376, %s4358, 64, 64, 4
        $region52: #{last_level_p6p7_fused.1} parent=39 // pred_fallthru
          _
      $region40: #{last_level_p6p7_fused.1} parent=5 // pred_fallthru
        _
      %p4384 = scmp.le.s32.totalorder 2, %s17
      // Predicated region
      $region53: #{last_level_p6p7_fused.1} parent=5 // pred_check
        %p4385 = pneg %p4384
      $region54: #{last_level_p6p7_fused.1} parent=5 // pred_check_branch
        %4387 = sbr.rel (%p4385) target = $region56
      $region55: #{last_level_p6p7_fused.1} parent=5 // pred_region
        %s4388 = ssub.s32 %s17, 2
        // Predicated region
        $region57: #{last_level_p6p7_fused.1} parent=55 // pred_check
          %p4389 = pneg %p156
        $region58: #{last_level_p6p7_fused.1} parent=55 // pred_check_branch
          %4391 = sbr.rel (%p4389) target = $region60
        $region59: #{last_level_p6p7_fused.1} parent=55 // pred_region
          %p4392 = scmp.lt.s32.totalorder %s23, 1
          %s4393 = scalar_select %p4392, %s23, 1
          %s4394 = smul.addr %s4393, 8
          %s4395 = smul.addr %s4394, 4
          %s4396 = scalar_lea.vmem %s5, %s4395
        $region60: #{last_level_p6p7_fused.1} parent=55 // pred_fallthru
          _
        // Predicated region
        $region61: #{last_level_p6p7_fused.1} parent=55 // pred_check
          %p4397 = pneg %p182
        $region62: #{last_level_p6p7_fused.1} parent=55 // pred_check_branch
          %4399 = sbr.rel (%p4397) target = $region64
        $region63: #{last_level_p6p7_fused.1} parent=55 // pred_region
          %p4400 = scmp.lt.s32.totalorder %s23, 1
          %s4401 = scalar_select %p4400, %s23, 1
          %s4402 = smul.addr %s4401, 8
          %s4403 = smul.addr %s4402, 4
          %s4404 = scalar_lea.vmem %s6, %s4403
        $region64: #{last_level_p6p7_fused.1} parent=55 // pred_fallthru
          _
        // Predicated region
        $region65: #{last_level_p6p7_fused.1} parent=55 // pred_check
          %p4405 = pneg %p208
        $region66: #{last_level_p6p7_fused.1} parent=55 // pred_check_branch
          %4407 = sbr.rel (%p4405) target = $region68
        $region67: #{last_level_p6p7_fused.1} parent=55 // pred_region
          %s4408 = sand.u32 %s193, 1
          %s4409 = scalar_lea.sflag [#allocation7], %s4408
          %s4410 = sand.u32 %s193, 1
          %s4411 = smul.addr %s4410, 16
          %s4412 = scalar_lea.vmem [#allocation6], %s4411
          %4413 = dma.done %s4409, 256
        $region68: #{last_level_p6p7_fused.1} parent=55 // pred_fallthru
          _
      $region56: #{last_level_p6p7_fused.1} parent=5 // pred_fallthru
        _
    $region6: #{last_level_p6p7_fused.1} parent=1 // loop_footer
      %s21 = sadd.s32 1, %s17
    $region7: #{last_level_p6p7_fused.1} parent=1 // loop_footer_branch
      %16 = sbr.rel target = $region3
    $region8: #{last_level_p6p7_fused.1} parent=1 // loop_exit
      _
    %4414 = vsyncpa [#allocation7], 1
    %s4415 = scalar_lea.sflag [#allocation7], 1
    %4416 = vsyncpa %s4415, 1

</llo_original>
